<compile_context>
chip_gen: v7x
topology: tpu7x:2x2x1
jax: 0.10.0
libtpu: 0.0.40
codegen_flags: <defaults>
</compile_context>

<pallas_src>
import functools
import math

import jax
import jax.numpy as jnp
from jax.experimental import pallas as pl
from jax.experimental.pallas import tpu as pltpu

_VMEM_LIMIT = 64 * 1024 * 1024  # raise scoped VMEM limit (v7x physical cap)


# ----------------------------------------------------------------------------- tiling helper

def _pick_tile(dim, pref, align):
    """Largest tile <= pref that divides dim and is `align`-aligned, else the full dim."""
    if dim <= pref:
        return dim
    t = (pref // align) * align
    while t >= align:
        if dim % t == 0:
            return t
        t -= align
    return dim


# ----------------------------------------------------------------------------- linear (tiled matmul)

def _linear_kernel(x_ref, w_ref, b_ref, o_ref, acc_ref, *, activation):
    @pl.when(pl.program_id(2) == 0)
    def _():
        acc_ref[...] = jnp.zeros_like(acc_ref)

    # bf16 operands straight from HBM (no in-kernel cast), f32 accumulate.
    acc_ref[...] += jnp.dot(x_ref[...], w_ref[...], preferred_element_type=jnp.float32)

    @pl.when(pl.program_id(2) == pl.num_programs(2) - 1)
    def _():
        y = acc_ref[...] + b_ref[...]
        if activation == "relu":
            y = jnp.maximum(y, 0.0)
        o_ref[...] = y.astype(o_ref.dtype)


def linear(x, w, b, activation=None, out_dtype=jnp.bfloat16):
    """x:(M,K) bf16 @ w:(K,N) bf16 + b:(N,) f32 -> (M,N) out_dtype, optional fused ReLU."""
    M, K = x.shape
    _, N = w.shape
    tm = _pick_tile(M, 512, 16)    # 16-aligned for bf16 sublane packing
    tn = _pick_tile(N, 512, 128)
    tk = _pick_tile(K, 1024, 128)
    grid = (M // tm, N // tn, K // tk)
    flops = int(2 * M * N * K)
    bytes_accessed = int(2 * M * K + 2 * K * N + 4 * N + jnp.dtype(out_dtype).itemsize * M * N)
    return pl.pallas_call(
        functools.partial(_linear_kernel, activation=activation),
        out_shape=jax.ShapeDtypeStruct((M, N), out_dtype),
        grid=grid,
        in_specs=[
            pl.BlockSpec((tm, tk), lambda i, j, k: (i, k)),
            pl.BlockSpec((tk, tn), lambda i, j, k: (k, j)),
            pl.BlockSpec((1, tn), lambda i, j, k: (0, j)),
        ],
        out_specs=pl.BlockSpec((tm, tn), lambda i, j, k: (i, j)),
        scratch_shapes=[pltpu.VMEM((tm, tn), jnp.float32)],
        compiler_params=pltpu.CompilerParams(
            dimension_semantics=("parallel", "parallel", "arbitrary"),
            vmem_limit_bytes=_VMEM_LIMIT),
        cost_estimate=pl.CostEstimate(flops=flops, transcendentals=0,
                                      bytes_accessed=bytes_accessed),
    )(x.astype(jnp.bfloat16), w, b.reshape(1, N))


# ----------------------------------------------------------------------------- linear + residual + LayerNorm (fused epilogue)

def _linear_add_ln_kernel(x_ref, w_ref, b_ref, r_ref, g_ref, be_ref, o_ref, acc_ref, *, eps):
    @pl.when(pl.program_id(1) == 0)
    def _():
        acc_ref[...] = jnp.zeros_like(acc_ref)

    acc_ref[...] += jnp.dot(x_ref[...], w_ref[...], preferred_element_type=jnp.float32)

    @pl.when(pl.program_id(1) == pl.num_programs(1) - 1)
    def _():
        y = acc_ref[...] + b_ref[...] + r_ref[...].astype(jnp.float32)   # fused residual
        mean = jnp.mean(y, axis=-1, keepdims=True)
        var = jnp.mean(y * y, axis=-1, keepdims=True) - mean * mean      # E[x^2] - mean^2
        o_ref[...] = ((y - mean) * jax.lax.rsqrt(var + eps)
                      * g_ref[...] + be_ref[...]).astype(o_ref.dtype)


def linear_add_ln(x, w, b, res, gamma, beta, eps=1e-5, out_dtype=jnp.bfloat16):
    """LayerNorm((x @ w + b) + res) over the last dim; LN fused into the matmul epilogue."""
    M, K = x.shape
    _, N = w.shape                      # N == embed dim (full, LN needs the whole row)
    tm = _pick_tile(M, 512, 16)
    tk = _pick_tile(K, 1024, 128)
    grid = (M // tm, K // tk)
    flops = int(2 * M * N * K)
    bytes_accessed = int(2 * M * K + 2 * K * N + 2 * M * N + 4 * 3 * N
                         + jnp.dtype(out_dtype).itemsize * M * N)
    return pl.pallas_call(
        functools.partial(_linear_add_ln_kernel, eps=eps),
        out_shape=jax.ShapeDtypeStruct((M, N), out_dtype),
        grid=grid,
        in_specs=[
            pl.BlockSpec((tm, tk), lambda i, k: (i, k)),
            pl.BlockSpec((tk, N), lambda i, k: (k, 0)),
            pl.BlockSpec((1, N), lambda i, k: (0, 0)),
            pl.BlockSpec((tm, N), lambda i, k: (i, 0)),
            pl.BlockSpec((1, N), lambda i, k: (0, 0)),
            pl.BlockSpec((1, N), lambda i, k: (0, 0)),
        ],
        out_specs=pl.BlockSpec((tm, N), lambda i, k: (i, 0)),
        scratch_shapes=[pltpu.VMEM((tm, N), jnp.float32)],
        compiler_params=pltpu.CompilerParams(
            dimension_semantics=("parallel", "arbitrary"),
            vmem_limit_bytes=_VMEM_LIMIT),
        cost_estimate=pl.CostEstimate(flops=flops, transcendentals=0,
                                      bytes_accessed=bytes_accessed),
    )(x.astype(jnp.bfloat16), w, b.reshape(1, N), res, gamma.reshape(1, N), beta.reshape(1, N))


# ----------------------------------------------------------------------------- fused attention (+ residual + LayerNorm)

def _attn_ln_kernel(xq_ref, xkv_ref, m_ref, wq_ref, bq_ref, wkv_ref, bkv_ref,
                    wo_ref, bo_ref, g_ref, be_ref, o_ref,
                    q_sc, k_sc, v_sc, ao_sc, *, num_heads, scale, eps):
    E = wq_ref.shape[1]
    H = num_heads
    d = E // H
    xq = xq_ref[0]                                   # (tq, E)  bf16
    xkv = xkv_ref[0]                                 # (Sk, E)  bf16
    keep = m_ref[0] != 0                             # (1, Sk)  bool (hoisted, computed once)

    # Fused projections: single wide MXU matmuls (bf16 in, f32 accumulate).
    q = jnp.dot(xq, wq_ref[...], preferred_element_type=jnp.float32) + bq_ref[...]      # (tq, E)
    kv = jnp.dot(xkv, wkv_ref[...], preferred_element_type=jnp.float32) + bkv_ref[...]  # (Sk, 2E)

    # Repack heads into (H, S, d) scratch (cheap lane-slice copies); keeps matmuls batched.
    for h in range(H):
        lo = h * d
        q_sc[h] = q[:, lo:lo + d].astype(q_sc.dtype)
        k_sc[h] = kv[:, lo:lo + d].astype(k_sc.dtype)
        v_sc[h] = kv[:, E + lo:E + lo + d].astype(v_sc.dtype)

    # Head-batched scores / softmax / PV (f32 softmax math).
    s = jnp.einsum('hqd,hkd->hqk', q_sc[...], k_sc[...],
                   preferred_element_type=jnp.float32)              # (H, tq, Sk)
    s = jnp.where(keep[None], s * scale, -1e9)                      # masked_fill semantics
    s = s - jnp.max(s, axis=-1, keepdims=True)
    p = jnp.exp(s)
    p = p * pl.reciprocal(jnp.sum(p, axis=-1, keepdims=True), approx=True)
    o3 = jnp.einsum('hqk,hkd->hqd', p.astype(v_sc.dtype), v_sc[...],
                    preferred_element_type=jnp.float32)             # (H, tq, d)

    # Re-concatenate heads -> (tq, E), then one wide output projection.
    for h in range(H):
        ao_sc[:, h * d:(h + 1) * d] = o3[h].astype(ao_sc.dtype)
    y = jnp.dot(ao_sc[...], wo_ref[...], preferred_element_type=jnp.float32) + bo_ref[...]

    # Fused residual + LayerNorm epilogue.
    y = y + xq.astype(jnp.float32)
    mean = jnp.mean(y, axis=-1, keepdims=True)
    var = jnp.mean(y * y, axis=-1, keepdims=True) - mean * mean
    o_ref[0] = ((y - mean) * jax.lax.rsqrt(var + eps)
                * g_ref[...] + be_ref[...]).astype(o_ref.dtype)


def attention_block(x_q, x_kv, key_mask, p, num_heads, ln_g, ln_b, eps=1e-5):
    """LayerNorm(MHA(x_q, x_kv, x_kv, key_mask) + x_q).

    x_q: (N,Sq,E) bf16, x_kv: (N,Sk,E) bf16, key_mask: (N,Sk) int8 -> (N,Sq,E) bf16.
    One fused pallas_call; grid parallel over (batch, Sq tiles).
    """
    N, Sq, E = x_q.shape
    Sk = x_kv.shape[1]
    H = num_heads
    d = E // H
    scale = 1.0 / math.sqrt(d)
    tq = _pick_tile(Sq, 512, 16)
    # TODO(synk): for very long Sk, add flash-style online-softmax blocking over Sk to bound
    #             the (H, tq, Sk) score footprint (needed for v7x's 64 MiB VMEM).
    flops = int(N * (2 * Sq * E * E + 2 * Sk * E * 2 * E + 4 * Sq * Sk * E + 2 * Sq * E * E))
    bytes_accessed = int(N * (2 * Sq * E * 2 + 2 * Sk * E + Sk) + 2 * 4 * E * E + 4 * 6 * E)
    transcendentals = int(N * H * Sq * Sk)

    def const_spec(shape):
        # Weights / LN params: constant block index across the whole grid.
        # TODO(synk): add pipeline_mode=pl.Buffered(1) here once single-buffered constant
        #             blocks are needed to fit very large E on v7x.
        return pl.BlockSpec(shape, lambda b, qi: (0, 0))

    out = pl.pallas_call(
        functools.partial(_attn_ln_kernel, num_heads=H, scale=scale, eps=eps),
        out_shape=jax.ShapeDtypeStruct((N, Sq, E), jnp.bfloat16),
        grid=(N, Sq // tq),
        in_specs=[
            pl.BlockSpec((1, tq, E), lambda b, qi: (b, qi, 0)),       # x_q tile
            pl.BlockSpec((1, Sk, E), lambda b, qi: (b, 0, 0)),        # x_kv (full keys)
            pl.BlockSpec((1, 1, Sk), lambda b, qi: (b, 0, 0)),        # int8 key mask
            const_spec((E, E)),                                       # wq   (bf16)
            const_spec((1, E)),                                       # bq   (f32)
            const_spec((E, 2 * E)),                                   # wkv  (bf16, fused K|V)
            const_spec((1, 2 * E)),                                   # bkv  (f32)
            const_spec((E, E)),                                       # wo   (bf16)
            const_spec((1, E)),                                       # bo   (f32)
            const_spec((1, E)),                                       # LN gamma
            const_spec((1, E)),                                       # LN beta
        ],
        out_specs=pl.BlockSpec((1, tq, E), lambda b, qi: (b, qi, 0)),
        scratch_shapes=[
            pltpu.VMEM((H, tq, d), jnp.bfloat16),                     # q heads
            pltpu.VMEM((H, Sk, d), jnp.bfloat16),                     # k heads
            pltpu.VMEM((H, Sk, d), jnp.bfloat16),                     # v heads
            pltpu.VMEM((tq, E), jnp.bfloat16),                        # concat(attn heads)
        ],
        compiler_params=pltpu.CompilerParams(
            dimension_semantics=("parallel", "parallel"),
            vmem_limit_bytes=_VMEM_LIMIT),
        cost_estimate=pl.CostEstimate(flops=flops, transcendentals=transcendentals,
                                      bytes_accessed=bytes_accessed),
    )(x_q, x_kv, key_mask.reshape(N, 1, Sk),
      p["wq"], p["bq"].reshape(1, E), p["wkv"], p["bkv"].reshape(1, 2 * E),
      p["wo"], p["bo"].reshape(1, E), ln_g.reshape(1, E), ln_b.reshape(1, E))
    return out


# ----------------------------------------------------------------------------- model glue

def _ffn_block(x, w1, b1, w2, b2, ln_g, ln_b):
    """LayerNorm(FFN(x) + x); hidden activation kept bf16, LN fused into 2nd matmul."""
    # TODO(synk): fully fuse both FFN linears into one pallas_call (loop over F tiles) to
    #             also eliminate the bf16 hidden HBM round-trip.
    N, S, E = x.shape
    x2 = x.reshape(N * S, E)
    h = linear(x2, w1, b1, activation="relu", out_dtype=jnp.bfloat16)
    y = linear_add_ln(h, w2, b2, x2, ln_g, ln_b)
    return y.reshape(N, S, E)


def encoder_forward(p, src, src_key_mask, cfg):
    N, S = src.shape
    # TODO(synk): embedding-table gather kept as a plain JAX gather (no rectangular BlockSpec).
    x = (p["tok_embed"][src] + p["pos_embed"][jnp.arange(S)][None]).astype(jnp.bfloat16)
    for lp in p["layers"]:
        x = attention_block(x, x, src_key_mask, lp["attn"], cfg["word_heads"],
                            lp["ln1_g"], lp["ln1_b"])
        x = _ffn_block(x, lp["w1"], lp["b1"], lp["w2"], lp["b2"], lp["ln2_g"], lp["ln2_b"])
    word_emb = x
    para_emb = attention_block(x, x, src_key_mask, p["para_attn"], cfg["para_heads"],
                               p["para_ln_g"], p["para_ln_b"])
    return word_emb, para_emb


def decoder_forward(p, tgt, word_emb, para_emb, src_key_mask, tgt_key_mask, cfg):
    N, T = tgt.shape
    E = cfg["embed_size"]
    y = (p["tok_embed"][tgt] + p["pos_embed"][jnp.arange(T)][None]).astype(jnp.bfloat16)
    for lp in p["layers"]:
        # faithful to make_tgt_mask: all-ones mask -> non-causal self-attention.
        y = attention_block(y, y, tgt_key_mask, lp["self_attn"], cfg["word_heads"],
                            lp["ln1_g"], lp["ln1_b"])
        y = attention_block(y, word_emb, src_key_mask, lp["word_attn"], cfg["word_heads"],
                            lp["ln2_g"], lp["ln2_b"])
        y = attention_block(y, para_emb, src_key_mask, lp["para_attn"], cfg["para_heads"],
                            lp["ln3_g"], lp["ln3_b"])
        y = _ffn_block(y, lp["w1"], lp["b1"], lp["w2"], lp["b2"], lp["ln4_g"], lp["ln4_b"])
    out = linear(y.reshape(N * T, E), p["fc_w"], p["fc_b"], out_dtype=jnp.float32)
    return out.reshape(N, T, cfg["tgt_vocab"])


def pht_transformer_forward(params, src, tgt, cfg):
    N, T = tgt.shape
    # make_src_mask: (src != pad).unsqueeze(1).unsqueeze(2) -> a key-only padding mask (int8).
    src_key_mask = (src != cfg["src_pad_idx"]).astype(jnp.int8)           # (N, Ssrc)
    # make_tgt_mask: tril over trailing (T,1) of ones == all ones -> all-keep key mask.
    tgt_key_mask = jnp.ones((N, T), jnp.int8)
    word_emb, para_emb = encoder_forward(params["encoder"], src, src_key_mask, cfg)
    return decoder_forward(params["decoder"], tgt, word_emb, para_emb,
                           src_key_mask, tgt_key_mask, cfg)


# ----------------------------------------------------------------------------- params (weights stored bf16)

def _init_linear(key, din, dout):
    w = (jax.random.normal(key, (din, dout), jnp.float32) * 0.02).astype(jnp.bfloat16)
    b = jnp.zeros((dout,), jnp.float32)
    return w, b


def _init_attn(key, E):
    kq, kk, kv, ko = jax.random.split(key, 4)
    wq, bq = _init_linear(kq, E, E)
    wk, bk = _init_linear(kk, E, E)
    wv, bv = _init_linear(kv, E, E)
    wo, bo = _init_linear(ko, E, E)
    return {"wq": wq, "bq": bq,
            "wkv": jnp.concatenate([wk, wv], axis=1),     # fused K|V projection (bf16)
            "bkv": jnp.concatenate([bk, bv], axis=0),
            "wo": wo, "bo": bo}


def _init_enc_layer(key, E, F):
    k1, k2, k3 = jax.random.split(key, 3)
    w1, b1 = _init_linear(k2, E, F)
    w2, b2 = _init_linear(k3, F, E)
    return {"attn": _init_attn(k1, E),
            "ln1_g": jnp.ones((E,), jnp.float32), "ln1_b": jnp.zeros((E,), jnp.float32),
            "w1": w1, "b1": b1, "w2": w2, "b2": b2,
            "ln2_g": jnp.ones((E,), jnp.float32), "ln2_b": jnp.zeros((E,), jnp.float32)}


def _init_dec_layer(key, E, F):
    k1, k2, k3, k4, k5 = jax.random.split(key, 5)
    w1, b1 = _init_linear(k4, E, F)
    w2, b2 = _init_linear(k5, F, E)
    ones = jnp.ones((E,), jnp.float32)
    zeros = jnp.zeros((E,), jnp.float32)
    return {"self_attn": _init_attn(k1, E), "word_attn": _init_attn(k2, E),
            "para_attn": _init_attn(k3, E),
            "ln1_g": ones, "ln1_b": zeros, "ln2_g": ones, "ln2_b": zeros,
            "ln3_g": ones, "ln3_b": zeros, "ln4_g": ones, "ln4_b": zeros,
            "w1": w1, "b1": b1, "w2": w2, "b2": b2}


def init_params(key, cfg):
    E, F, L = cfg["embed_size"], cfg["forward_expansion"], cfg["num_layers"]
    ke, kd = jax.random.split(key)
    kes = jax.random.split(ke, L + 4)
    kds = jax.random.split(kd, L + 4)
    encoder = {
        "tok_embed": jax.random.normal(kes[0], (cfg["src_vocab"], E), jnp.float32) * 0.02,
        "pos_embed": jax.random.normal(kes[1], (cfg["max_length"], E), jnp.float32) * 0.02,
        "layers": [_init_enc_layer(kes[3 + i], E, F) for i in range(L)],
        "para_attn": _init_attn(kes[2], E),
        "para_ln_g": jnp.ones((E,), jnp.float32), "para_ln_b": jnp.zeros((E,), jnp.float32),
    }
    fc_w, fc_b = _init_linear(kds[2], E, cfg["tgt_vocab"])
    decoder = {
        "tok_embed": jax.random.normal(kds[0], (cfg["tgt_vocab"], E), jnp.float32) * 0.02,
        "pos_embed": jax.random.normal(kds[1], (cfg["max_length"], E), jnp.float32) * 0.02,
        "layers": [_init_dec_layer(kds[3 + i], E, F) for i in range(L)],
        "fc_w": fc_w, "fc_b": fc_b,
    }
    return {"encoder": encoder, "decoder": decoder}


# ----------------------------------------------------------------------------- main

if __name__ == "__main__":
    cfg = dict(
        src_vocab=50, tgt_vocab=60, src_pad_idx=0, tgt_pad_idx=0,
        embed_size=32, word_heads=4, para_heads=2, num_layers=2,
        forward_expansion=64, max_length=64,
    )
    key = jax.random.PRNGKey(0)
    kp, ks, kt = jax.random.split(key, 3)
    params = init_params(kp, cfg)

    batch, src_len, tgt_len = 2, 8, 8
    src = jax.random.randint(ks, (batch, src_len), 0, cfg["src_vocab"], dtype=jnp.int32)
    tgt = jax.random.randint(kt, (batch, tgt_len), 0, cfg["tgt_vocab"], dtype=jnp.int32)

    fwd = jax.jit(lambda s, t: pht_transformer_forward(params, s, t, cfg))
    out = fwd(src, tgt)
    out = jax.block_until_ready(out)
    assert out.shape == (batch, tgt_len, cfg["tgt_vocab"])
    assert bool(jnp.all(jnp.isfinite(out)))
    print("KERNEL_OK")
</pallas_src>

<mosaic_0001>
module attributes {stable_mosaic.version = 11 : i64} {
  func.func @_linear_add_ln_kernel(%arg0: i32, %arg1: i32, %arg2: memref<16x64xbf16, #tpu.memory_space<vmem>>, %arg3: memref<64x32xbf16, #tpu.memory_space<vmem>>, %arg4: memref<1x32xf32, #tpu.memory_space<vmem>>, %arg5: memref<16x32xbf16, #tpu.memory_space<vmem>>, %arg6: memref<1x32xf32, #tpu.memory_space<vmem>>, %arg7: memref<1x32xf32, #tpu.memory_space<vmem>>, %arg8: memref<16x32xbf16, #tpu.memory_space<vmem>>, %arg9: memref<16x32xf32, #tpu.memory_space<vmem>>) attributes {dimension_semantics = [#tpu.dimension_semantics<parallel>, #tpu.dimension_semantics<arbitrary>], iteration_bounds = array<i64: 1, 1>, scalar_prefetch = 0 : i64, scratch_operands = 1 : i64, tpu.core_type = #tpu.core_type<tc>, window_params = [{transform_indices = @transform_0, window_bounds = array<i64: 16, 64>}, {transform_indices = @transform_1, window_bounds = array<i64: 64, 32>}, {pipeline_mode = #tpu.pipeline_mode<synchronous>, transform_indices = @transform_2, window_bounds = array<i64: 1, 32>}, {transform_indices = @transform_3, window_bounds = array<i64: 16, 32>}, {pipeline_mode = #tpu.pipeline_mode<synchronous>, transform_indices = @transform_4, window_bounds = array<i64: 1, 32>}, {pipeline_mode = #tpu.pipeline_mode<synchronous>, transform_indices = @transform_5, window_bounds = array<i64: 1, 32>}, {transform_indices = @transform_6, window_bounds = array<i64: 16, 32>}]} {
    %c0_i32 = arith.constant 0 : i32
    %0 = arith.cmpi eq, %arg1, %c0_i32 : i32
    %1 = arith.extui %0 : i1 to i32
    %c0_i32_0 = arith.constant 0 : i32
    %2 = arith.cmpi ne, %1, %c0_i32_0 : i32
    scf.if %2 {
      %cst_10 = arith.constant 0.000000e+00 : f32
      %12 = vector.broadcast %cst_10 : f32 to vector<16x32xf32>
      %c0_11 = arith.constant 0 : index
      %c0_12 = arith.constant 0 : index
      %13 = vector.load %arg9[%c0_11, %c0_12] : memref<16x32xf32, #tpu.memory_space<vmem>>, vector<16x32xf32>
      tpu.vector_store %arg9[%c0_11, %c0_12], %12 {strides = array<i32>} : memref<16x32xf32, #tpu.memory_space<vmem>>, vector<16x32xf32>,
    } else {
    }
    %c0 = arith.constant 0 : index
    %c0_1 = arith.constant 0 : index
    %3 = vector.load %arg9[%c0, %c0_1] : memref<16x32xf32, #tpu.memory_space<vmem>>, vector<16x32xf32>
    %c0_2 = arith.constant 0 : index
    %c0_3 = arith.constant 0 : index
    %4 = vector.load %arg2[%c0_2, %c0_3] : memref<16x64xbf16, #tpu.memory_space<vmem>>, vector<16x64xbf16>
    %c0_4 = arith.constant 0 : index
    %c0_5 = arith.constant 0 : index
    %5 = vector.load %arg3[%c0_4, %c0_5] : memref<64x32xbf16, #tpu.memory_space<vmem>>, vector<64x32xbf16>
    %cst = arith.constant dense<0.000000e+00> : vector<16x32xf32>
    %6 = tpu.matmul %4, %5, %cst {dimension_numbers = #tpu.dot_dimension_numbers<[1], [0], [0], [1], [0, 0, 1, 1], [], []>} : vector<16x64xbf16>, vector<64x32xbf16>, vector<16x32xf32> -> vector<16x32xf32>
    %7 = arith.addf %3, %6 : vector<16x32xf32>
    %c0_6 = arith.constant 0 : index
    %c0_7 = arith.constant 0 : index
    %8 = vector.load %arg9[%c0_6, %c0_7] : memref<16x32xf32, #tpu.memory_space<vmem>>, vector<16x32xf32>
    tpu.vector_store %arg9[%c0_6, %c0_7], %7 {strides = array<i32>} : memref<16x32xf32, #tpu.memory_space<vmem>>, vector<16x32xf32>,
    %c0_i32_8 = arith.constant 0 : i32
    %9 = arith.cmpi eq, %arg1, %c0_i32_8 : i32
    %10 = arith.extui %9 : i1 to i32
    %c0_i32_9 = arith.constant 0 : i32
    %11 = arith.cmpi ne, %10, %c0_i32_9 : i32
    scf.if %11 {
      %c0_10 = arith.constant 0 : index
      %c0_11 = arith.constant 0 : index
      %12 = vector.load %arg9[%c0_10, %c0_11] : memref<16x32xf32, #tpu.memory_space<vmem>>, vector<16x32xf32>
      %c0_12 = arith.constant 0 : index
      %c0_13 = arith.constant 0 : index
      %13 = vector.load %arg4[%c0_12, %c0_13] : memref<1x32xf32, #tpu.memory_space<vmem>>, vector<1x32xf32>
      %14 = vector.broadcast %13 : vector<1x32xf32> to vector<16x32xf32>
      %15 = arith.addf %12, %14 : vector<16x32xf32>
      %c0_14 = arith.constant 0 : index
      %c0_15 = arith.constant 0 : index
      %16 = vector.load %arg5[%c0_14, %c0_15] : memref<16x32xbf16, #tpu.memory_space<vmem>>, vector<16x32xbf16>
      %17 = arith.extf %16 : vector<16x32xbf16> to vector<16x32xf32>
      %18 = arith.addf %15, %17 : vector<16x32xf32>
      %cst_16 = arith.constant dense<0.000000e+00> : vector<16xf32>
      %19 = vector.multi_reduction <add>, %18, %cst_16 [1] : vector<16x32xf32> to vector<16xf32>
      %20 = vector.shape_cast %19 : vector<16xf32> to vector<16x1xf32>
      %cst_17 = arith.constant 3.200000e+01 : f32
      %21 = vector.broadcast %cst_17 : f32 to vector<16x1xf32>
      %22 = arith.divf %20, %21 : vector<16x1xf32>
      %23 = arith.mulf %18, %18 : vector<16x32xf32>
      %cst_18 = arith.constant dense<0.000000e+00> : vector<16xf32>
      %24 = vector.multi_reduction <add>, %23, %cst_18 [1] : vector<16x32xf32> to vector<16xf32>
      %25 = vector.shape_cast %24 : vector<16xf32> to vector<16x1xf32>
      %cst_19 = arith.constant 3.200000e+01 : f32
      %26 = vector.broadcast %cst_19 : f32 to vector<16x1xf32>
      %27 = arith.divf %25, %26 : vector<16x1xf32>
      %28 = arith.mulf %22, %22 : vector<16x1xf32>
      %29 = arith.subf %27, %28 : vector<16x1xf32>
      %30 = vector.broadcast %22 : vector<16x1xf32> to vector<16x32xf32>
      %31 = arith.subf %18, %30 : vector<16x32xf32>
      %cst_20 = arith.constant 9.99999974E-6 : f32
      %32 = vector.broadcast %cst_20 : f32 to vector<16x1xf32>
      %33 = arith.addf %29, %32 : vector<16x1xf32>
      %34 = math.rsqrt %33 : vector<16x1xf32>
      %35 = vector.broadcast %34 : vector<16x1xf32> to vector<16x32xf32>
      %36 = arith.mulf %31, %35 : vector<16x32xf32>
      %c0_21 = arith.constant 0 : index
      %c0_22 = arith.constant 0 : index
      %37 = vector.load %arg6[%c0_21, %c0_22] : memref<1x32xf32, #tpu.memory_space<vmem>>, vector<1x32xf32>
      %38 = vector.broadcast %37 : vector<1x32xf32> to vector<16x32xf32>
      %39 = arith.mulf %36, %38 : vector<16x32xf32>
      %c0_23 = arith.constant 0 : index
      %c0_24 = arith.constant 0 : index
      %40 = vector.load %arg7[%c0_23, %c0_24] : memref<1x32xf32, #tpu.memory_space<vmem>>, vector<1x32xf32>
      %41 = vector.broadcast %40 : vector<1x32xf32> to vector<16x32xf32>
      %42 = arith.addf %39, %41 : vector<16x32xf32>
      %43 = arith.truncf %42 : vector<16x32xf32> to vector<16x32xbf16>
      %c0_25 = arith.constant 0 : index
      %c0_26 = arith.constant 0 : index
      %44 = vector.load %arg8[%c0_25, %c0_26] : memref<16x32xbf16, #tpu.memory_space<vmem>>, vector<16x32xbf16>
      tpu.vector_store %arg8[%c0_25, %c0_26], %43 {strides = array<i32>} : memref<16x32xbf16, #tpu.memory_space<vmem>>, vector<16x32xbf16>,
    } else {
    }
    return
  }
  func.func @transform_0(%arg0: i32, %arg1: i32) -> (i32, i32) {
    %c0_i32 = arith.constant 0 : i32
    return %arg0, %arg1 : i32, i32
  }
  func.func @transform_1(%arg0: i32, %arg1: i32) -> (i32, i32) {
    %c0_i32 = arith.constant 0 : i32
    %c0_i32_0 = arith.constant 0 : i32
    return %arg1, %c0_i32 : i32, i32
  }
  func.func @transform_2(%arg0: i32, %arg1: i32) -> (i32, i32) {
    %c0_i32 = arith.constant 0 : i32
    %c0_i32_0 = arith.constant 0 : i32
    %c0_i32_1 = arith.constant 0 : i32
    return %c0_i32, %c0_i32_0 : i32, i32
  }
  func.func @transform_3(%arg0: i32, %arg1: i32) -> (i32, i32) {
    %c0_i32 = arith.constant 0 : i32
    %c0_i32_0 = arith.constant 0 : i32
    return %arg0, %c0_i32 : i32, i32
  }
  func.func @transform_4(%arg0: i32, %arg1: i32) -> (i32, i32) {
    %c0_i32 = arith.constant 0 : i32
    %c0_i32_0 = arith.constant 0 : i32
    %c0_i32_1 = arith.constant 0 : i32
    return %c0_i32, %c0_i32_0 : i32, i32
  }
  func.func @transform_5(%arg0: i32, %arg1: i32) -> (i32, i32) {
    %c0_i32 = arith.constant 0 : i32
    %c0_i32_0 = arith.constant 0 : i32
    %c0_i32_1 = arith.constant 0 : i32
    return %c0_i32, %c0_i32_0 : i32, i32
  }
  func.func @transform_6(%arg0: i32, %arg1: i32) -> (i32, i32) {
    %c0_i32 = arith.constant 0 : i32
    %c0_i32_0 = arith.constant 0 : i32
    return %arg0, %c0_i32 : i32, i32
  }
}

module attributes {stable_mosaic.version = 11 : i64} {
  func.func @_linear_kernel(%arg0: i32, %arg1: i32, %arg2: i32, %arg3: memref<16x32xbf16, #tpu.memory_space<vmem>>, %arg4: memref<32x64xbf16, #tpu.memory_space<vmem>>, %arg5: memref<1x64xf32, #tpu.memory_space<vmem>>, %arg6: memref<16x64xbf16, #tpu.memory_space<vmem>>, %arg7: memref<16x64xf32, #tpu.memory_space<vmem>>) attributes {dimension_semantics = [#tpu.dimension_semantics<parallel>, #tpu.dimension_semantics<parallel>, #tpu.dimension_semantics<arbitrary>], iteration_bounds = array<i64: 1, 1, 1>, scalar_prefetch = 0 : i64, scratch_operands = 1 : i64, tpu.core_type = #tpu.core_type<tc>, window_params = [{transform_indices = @transform_0, window_bounds = array<i64: 16, 32>}, {transform_indices = @transform_1, window_bounds = array<i64: 32, 64>}, {transform_indices = @transform_2, window_bounds = array<i64: 1, 64>}, {transform_indices = @transform_3, window_bounds = array<i64: 16, 64>}]} {
    %c0_i32 = arith.constant 0 : i32
    %0 = arith.cmpi eq, %arg2, %c0_i32 : i32
    %1 = arith.extui %0 : i1 to i32
    %c0_i32_0 = arith.constant 0 : i32
    %2 = arith.cmpi ne, %1, %c0_i32_0 : i32
    scf.if %2 {
      %cst_10 = arith.constant 0.000000e+00 : f32
      %12 = vector.broadcast %cst_10 : f32 to vector<16x64xf32>
      %c0_11 = arith.constant 0 : index
      %c0_12 = arith.constant 0 : index
      %13 = vector.load %arg7[%c0_11, %c0_12] : memref<16x64xf32, #tpu.memory_space<vmem>>, vector<16x64xf32>
      tpu.vector_store %arg7[%c0_11, %c0_12], %12 {strides = array<i32>} : memref<16x64xf32, #tpu.memory_space<vmem>>, vector<16x64xf32>,
    } else {
    }
    %c0 = arith.constant 0 : index
    %c0_1 = arith.constant 0 : index
    %3 = vector.load %arg7[%c0, %c0_1] : memref<16x64xf32, #tpu.memory_space<vmem>>, vector<16x64xf32>
    %c0_2 = arith.constant 0 : index
    %c0_3 = arith.constant 0 : index
    %4 = vector.load %arg3[%c0_2, %c0_3] : memref<16x32xbf16, #tpu.memory_space<vmem>>, vector<16x32xbf16>
    %c0_4 = arith.constant 0 : index
    %c0_5 = arith.constant 0 : index
    %5 = vector.load %arg4[%c0_4, %c0_5] : memref<32x64xbf16, #tpu.memory_space<vmem>>, vector<32x64xbf16>
    %cst = arith.constant dense<0.000000e+00> : vector<16x64xf32>
    %6 = tpu.matmul %4, %5, %cst {dimension_numbers = #tpu.dot_dimension_numbers<[1], [0], [0], [1], [0, 0, 1, 1], [], []>} : vector<16x32xbf16>, vector<32x64xbf16>, vector<16x64xf32> -> vector<16x64xf32>
    %7 = arith.addf %3, %6 : vector<16x64xf32>
    %c0_6 = arith.constant 0 : index
    %c0_7 = arith.constant 0 : index
    %8 = vector.load %arg7[%c0_6, %c0_7] : memref<16x64xf32, #tpu.memory_space<vmem>>, vector<16x64xf32>
    tpu.vector_store %arg7[%c0_6, %c0_7], %7 {strides = array<i32>} : memref<16x64xf32, #tpu.memory_space<vmem>>, vector<16x64xf32>,
    %c0_i32_8 = arith.constant 0 : i32
    %9 = arith.cmpi eq, %arg2, %c0_i32_8 : i32
    %10 = arith.extui %9 : i1 to i32
    %c0_i32_9 = arith.constant 0 : i32
    %11 = arith.cmpi ne, %10, %c0_i32_9 : i32
    scf.if %11 {
      %c0_10 = arith.constant 0 : index
      %c0_11 = arith.constant 0 : index
      %12 = vector.load %arg7[%c0_10, %c0_11] : memref<16x64xf32, #tpu.memory_space<vmem>>, vector<16x64xf32>
      %c0_12 = arith.constant 0 : index
      %c0_13 = arith.constant 0 : index
      %13 = vector.load %arg5[%c0_12, %c0_13] : memref<1x64xf32, #tpu.memory_space<vmem>>, vector<1x64xf32>
      %14 = vector.broadcast %13 : vector<1x64xf32> to vector<16x64xf32>
      %15 = arith.addf %12, %14 : vector<16x64xf32>
      %cst_14 = arith.constant 0.000000e+00 : f32
      %16 = vector.broadcast %cst_14 : f32 to vector<16x64xf32>
      %17 = arith.maximumf %15, %16 : vector<16x64xf32>
      %18 = arith.truncf %17 : vector<16x64xf32> to vector<16x64xbf16>
      %c0_15 = arith.constant 0 : index
      %c0_16 = arith.constant 0 : index
      %19 = vector.load %arg6[%c0_15, %c0_16] : memref<16x64xbf16, #tpu.memory_space<vmem>>, vector<16x64xbf16>
      tpu.vector_store %arg6[%c0_15, %c0_16], %18 {strides = array<i32>} : memref<16x64xbf16, #tpu.memory_space<vmem>>, vector<16x64xbf16>,
    } else {
    }
    return
  }
  func.func @transform_0(%arg0: i32, %arg1: i32, %arg2: i32) -> (i32, i32) {
    %c0_i32 = arith.constant 0 : i32
    return %arg0, %arg2 : i32, i32
  }
  func.func @transform_1(%arg0: i32, %arg1: i32, %arg2: i32) -> (i32, i32) {
    %c0_i32 = arith.constant 0 : i32
    return %arg2, %arg1 : i32, i32
  }
  func.func @transform_2(%arg0: i32, %arg1: i32, %arg2: i32) -> (i32, i32) {
    %c0_i32 = arith.constant 0 : i32
    %c0_i32_0 = arith.constant 0 : i32
    return %c0_i32, %arg1 : i32, i32
  }
  func.func @transform_3(%arg0: i32, %arg1: i32, %arg2: i32) -> (i32, i32) {
    %c0_i32 = arith.constant 0 : i32
    return %arg0, %arg1 : i32, i32
  }
}

module attributes {stable_mosaic.version = 11 : i64} {
  func.func @_attn_ln_kernel(%arg0: i32, %arg1: i32, %arg2: memref<1x8x32xbf16, #tpu.memory_space<vmem>>, %arg3: memref<1x8x32xbf16, #tpu.memory_space<vmem>>, %arg4: memref<1x1x8xi8, #tpu.memory_space<vmem>>, %arg5: memref<32x32xbf16, #tpu.memory_space<vmem>>, %arg6: memref<1x32xf32, #tpu.memory_space<vmem>>, %arg7: memref<32x64xbf16, #tpu.memory_space<vmem>>, %arg8: memref<1x64xf32, #tpu.memory_space<vmem>>, %arg9: memref<32x32xbf16, #tpu.memory_space<vmem>>, %arg10: memref<1x32xf32, #tpu.memory_space<vmem>>, %arg11: memref<1x32xf32, #tpu.memory_space<vmem>>, %arg12: memref<1x32xf32, #tpu.memory_space<vmem>>, %arg13: memref<1x8x32xbf16, #tpu.memory_space<vmem>>, %arg14: memref<4x8x8xbf16, #tpu.memory_space<vmem>>, %arg15: memref<4x8x8xbf16, #tpu.memory_space<vmem>>, %arg16: memref<4x8x8xbf16, #tpu.memory_space<vmem>>, %arg17: memref<8x32xbf16, #tpu.memory_space<vmem>>) attributes {dimension_semantics = [#tpu.dimension_semantics<parallel>, #tpu.dimension_semantics<parallel>], iteration_bounds = array<i64: 2, 1>, scalar_prefetch = 0 : i64, scratch_operands = 4 : i64, tpu.core_type = #tpu.core_type<tc>, window_params = [{transform_indices = @transform_0, window_bounds = array<i64: 1, 8, 32>}, {transform_indices = @transform_1, window_bounds = array<i64: 1, 8, 32>}, {transform_indices = @transform_2, window_bounds = array<i64: 1, 1, 8>}, {pipeline_mode = #tpu.pipeline_mode<synchronous>, transform_indices = @transform_3, window_bounds = array<i64: 32, 32>}, {pipeline_mode = #tpu.pipeline_mode<synchronous>, transform_indices = @transform_4, window_bounds = array<i64: 1, 32>}, {pipeline_mode = #tpu.pipeline_mode<synchronous>, transform_indices = @transform_5, window_bounds = array<i64: 32, 64>}, {pipeline_mode = #tpu.pipeline_mode<synchronous>, transform_indices = @transform_6, window_bounds = array<i64: 1, 64>}, {pipeline_mode = #tpu.pipeline_mode<synchronous>, transform_indices = @transform_7, window_bounds = array<i64: 32, 32>}, {pipeline_mode = #tpu.pipeline_mode<synchronous>, transform_indices = @transform_8, window_bounds = array<i64: 1, 32>}, {pipeline_mode = #tpu.pipeline_mode<synchronous>, transform_indices = @transform_9, window_bounds = array<i64: 1, 32>}, {pipeline_mode = #tpu.pipeline_mode<synchronous>, transform_indices = @transform_10, window_bounds = array<i64: 1, 32>}, {transform_indices = @transform_11, window_bounds = array<i64: 1, 8, 32>}]} {
    %c0 = arith.constant 0 : index
    %c0_0 = arith.constant 0 : index
    %c0_1 = arith.constant 0 : index
    %0 = vector.load %arg2[%c0, %c0_0, %c0_1] : memref<1x8x32xbf16, #tpu.memory_space<vmem>>, vector<1x8x32xbf16>
    %1 = vector.shape_cast %0 : vector<1x8x32xbf16> to vector<8x32xbf16>
    %c0_2 = arith.constant 0 : index
    %c0_3 = arith.constant 0 : index
    %c0_4 = arith.constant 0 : index
    %2 = vector.load %arg3[%c0_2, %c0_3, %c0_4] : memref<1x8x32xbf16, #tpu.memory_space<vmem>>, vector<1x8x32xbf16>
    %3 = vector.shape_cast %2 : vector<1x8x32xbf16> to vector<8x32xbf16>
    %c0_5 = arith.constant 0 : index
    %c0_6 = arith.constant 0 : index
    %c0_7 = arith.constant 0 : index
    %4 = vector.load %arg4[%c0_5, %c0_6, %c0_7] : memref<1x1x8xi8, #tpu.memory_space<vmem>>, vector<1x1x8xi8>
    %5 = vector.shape_cast %4 : vector<1x1x8xi8> to vector<1x8xi8>
    %c0_i8 = arith.constant 0 : i8
    %6 = vector.broadcast %c0_i8 : i8 to vector<1x8xi8>
    %7 = arith.cmpi ne, %5, %6 : vector<1x8xi8>
    %c0_8 = arith.constant 0 : index
    %c0_9 = arith.constant 0 : index
    %8 = vector.load %arg5[%c0_8, %c0_9] : memref<32x32xbf16, #tpu.memory_space<vmem>>, vector<32x32xbf16>
    %cst = arith.constant dense<0.000000e+00> : vector<8x32xf32>
    %9 = tpu.matmul %1, %8, %cst {dimension_numbers = #tpu.dot_dimension_numbers<[1], [0], [0], [1], [0, 0, 1, 1], [], []>} : vector<8x32xbf16>, vector<32x32xbf16>, vector<8x32xf32> -> vector<8x32xf32>
    %c0_10 = arith.constant 0 : index
    %c0_11 = arith.constant 0 : index
    %10 = vector.load %arg6[%c0_10, %c0_11] : memref<1x32xf32, #tpu.memory_space<vmem>>, vector<1x32xf32>
    %11 = vector.broadcast %10 : vector<1x32xf32> to vector<8x32xf32>
    %12 = arith.addf %9, %11 : vector<8x32xf32>
    %c0_12 = arith.constant 0 : index
    %c0_13 = arith.constant 0 : index
    %13 = vector.load %arg7[%c0_12, %c0_13] : memref<32x64xbf16, #tpu.memory_space<vmem>>, vector<32x64xbf16>
    %cst_14 = arith.constant dense<0.000000e+00> : vector<8x64xf32>
    %14 = tpu.matmul %3, %13, %cst_14 {dimension_numbers = #tpu.dot_dimension_numbers<[1], [0], [0], [1], [0, 0, 1, 1], [], []>} : vector<8x32xbf16>, vector<32x64xbf16>, vector<8x64xf32> -> vector<8x64xf32>
    %c0_15 = arith.constant 0 : index
    %c0_16 = arith.constant 0 : index
    %15 = vector.load %arg8[%c0_15, %c0_16] : memref<1x64xf32, #tpu.memory_space<vmem>>, vector<1x64xf32>
    %16 = vector.broadcast %15 : vector<1x64xf32> to vector<8x64xf32>
    %17 = arith.addf %14, %16 : vector<8x64xf32>
    %18 = vector.extract_strided_slice %12 {offsets = [0, 0], sizes = [8, 8], strides = [1, 1]} : vector<8x32xf32> to vector<8x8xf32>
    %19 = arith.truncf %18 : vector<8x8xf32> to vector<8x8xbf16>
    %c0_17 = arith.constant 0 : index
    %c0_18 = arith.constant 0 : index
    %c0_19 = arith.constant 0 : index
    %20 = vector.load %arg14[%c0_17, %c0_18, %c0_19] : memref<4x8x8xbf16, #tpu.memory_space<vmem>>, vector<1x8x8xbf16>
    %21 = vector.shape_cast %20 : vector<1x8x8xbf16> to vector<8x8xbf16>
    %22 = vector.shape_cast %19 : vector<8x8xbf16> to vector<1x8x8xbf16>
    tpu.vector_store %arg14[%c0_17, %c0_18, %c0_19], %22 {strides = array<i32>} : memref<4x8x8xbf16, #tpu.memory_space<vmem>>, vector<1x8x8xbf16>,
    %23 = vector.extract_strided_slice %17 {offsets = [0, 0], sizes = [8, 8], strides = [1, 1]} : vector<8x64xf32> to vector<8x8xf32>
    %24 = arith.truncf %23 : vector<8x8xf32> to vector<8x8xbf16>
    %c0_20 = arith.constant 0 : index
    %c0_21 = arith.constant 0 : index
    %c0_22 = arith.constant 0 : index
    %25 = vector.load %arg15[%c0_20, %c0_21, %c0_22] : memref<4x8x8xbf16, #tpu.memory_space<vmem>>, vector<1x8x8xbf16>
    %26 = vector.shape_cast %25 : vector<1x8x8xbf16> to vector<8x8xbf16>
    %27 = vector.shape_cast %24 : vector<8x8xbf16> to vector<1x8x8xbf16>
    tpu.vector_store %arg15[%c0_20, %c0_21, %c0_22], %27 {strides = array<i32>} : memref<4x8x8xbf16, #tpu.memory_space<vmem>>, vector<1x8x8xbf16>,
    %28 = vector.extract_strided_slice %17 {offsets = [0, 32], sizes = [8, 8], strides = [1, 1]} : vector<8x64xf32> to vector<8x8xf32>
    %29 = arith.truncf %28 : vector<8x8xf32> to vector<8x8xbf16>
    %c0_23 = arith.constant 0 : index
    %c0_24 = arith.constant 0 : index
    %c0_25 = arith.constant 0 : index
    %30 = vector.load %arg16[%c0_23, %c0_24, %c0_25] : memref<4x8x8xbf16, #tpu.memory_space<vmem>>, vector<1x8x8xbf16>
    %31 = vector.shape_cast %30 : vector<1x8x8xbf16> to vector<8x8xbf16>
    %32 = vector.shape_cast %29 : vector<8x8xbf16> to vector<1x8x8xbf16>
    tpu.vector_store %arg16[%c0_23, %c0_24, %c0_25], %32 {strides = array<i32>} : memref<4x8x8xbf16, #tpu.memory_space<vmem>>, vector<1x8x8xbf16>,
    %33 = vector.extract_strided_slice %12 {offsets = [0, 8], sizes = [8, 8], strides = [1, 1]} : vector<8x32xf32> to vector<8x8xf32>
    %34 = arith.truncf %33 : vector<8x8xf32> to vector<8x8xbf16>
    %c1 = arith.constant 1 : index
    %c0_26 = arith.constant 0 : index
    %c0_27 = arith.constant 0 : index
    %35 = vector.load %arg14[%c1, %c0_26, %c0_27] : memref<4x8x8xbf16, #tpu.memory_space<vmem>>, vector<1x8x8xbf16>
    %36 = vector.shape_cast %35 : vector<1x8x8xbf16> to vector<8x8xbf16>
    %37 = vector.shape_cast %34 : vector<8x8xbf16> to vector<1x8x8xbf16>
    tpu.vector_store %arg14[%c1, %c0_26, %c0_27], %37 {strides = array<i32>} : memref<4x8x8xbf16, #tpu.memory_space<vmem>>, vector<1x8x8xbf16>,
    %38 = vector.extract_strided_slice %17 {offsets = [0, 8], sizes = [8, 8], strides = [1, 1]} : vector<8x64xf32> to vector<8x8xf32>
    %39 = arith.truncf %38 : vector<8x8xf32> to vector<8x8xbf16>
    %c1_28 = arith.constant 1 : index
    %c0_29 = arith.constant 0 : index
    %c0_30 = arith.constant 0 : index
    %40 = vector.load %arg15[%c1_28, %c0_29, %c0_30] : memref<4x8x8xbf16, #tpu.memory_space<vmem>>, vector<1x8x8xbf16>
    %41 = vector.shape_cast %40 : vector<1x8x8xbf16> to vector<8x8xbf16>
    %42 = vector.shape_cast %39 : vector<8x8xbf16> to vector<1x8x8xbf16>
    tpu.vector_store %arg15[%c1_28, %c0_29, %c0_30], %42 {strides = array<i32>} : memref<4x8x8xbf16, #tpu.memory_space<vmem>>, vector<1x8x8xbf16>,
    %43 = vector.extract_strided_slice %17 {offsets = [0, 40], sizes = [8, 8], strides = [1, 1]} : vector<8x64xf32> to vector<8x8xf32>
    %44 = arith.truncf %43 : vector<8x8xf32> to vector<8x8xbf16>
    %c1_31 = arith.constant 1 : index
    %c0_32 = arith.constant 0 : index
    %c0_33 = arith.constant 0 : index
    %45 = vector.load %arg16[%c1_31, %c0_32, %c0_33] : memref<4x8x8xbf16, #tpu.memory_space<vmem>>, vector<1x8x8xbf16>
    %46 = vector.shape_cast %45 : vector<1x8x8xbf16> to vector<8x8xbf16>
    %47 = vector.shape_cast %44 : vector<8x8xbf16> to vector<1x8x8xbf16>
    tpu.vector_store %arg16[%c1_31, %c0_32, %c0_33], %47 {strides = array<i32>} : memref<4x8x8xbf16, #tpu.memory_space<vmem>>, vector<1x8x8xbf16>,
    %48 = vector.extract_strided_slice %12 {offsets = [0, 16], sizes = [8, 8], strides = [1, 1]} : vector<8x32xf32> to vector<8x8xf32>
    %49 = arith.truncf %48 : vector<8x8xf32> to vector<8x8xbf16>
    %c2 = arith.constant 2 : index
    %c0_34 = arith.constant 0 : index
    %c0_35 = arith.constant 0 : index
    %50 = vector.load %arg14[%c2, %c0_34, %c0_35] : memref<4x8x8xbf16, #tpu.memory_space<vmem>>, vector<1x8x8xbf16>
    %51 = vector.shape_cast %50 : vector<1x8x8xbf16> to vector<8x8xbf16>
    %52 = vector.shape_cast %49 : vector<8x8xbf16> to vector<1x8x8xbf16>
    tpu.vector_store %arg14[%c2, %c0_34, %c0_35], %52 {strides = array<i32>} : memref<4x8x8xbf16, #tpu.memory_space<vmem>>, vector<1x8x8xbf16>,
    %53 = vector.extract_strided_slice %17 {offsets = [0, 16], sizes = [8, 8], strides = [1, 1]} : vector<8x64xf32> to vector<8x8xf32>
    %54 = arith.truncf %53 : vector<8x8xf32> to vector<8x8xbf16>
    %c2_36 = arith.constant 2 : index
    %c0_37 = arith.constant 0 : index
    %c0_38 = arith.constant 0 : index
    %55 = vector.load %arg15[%c2_36, %c0_37, %c0_38] : memref<4x8x8xbf16, #tpu.memory_space<vmem>>, vector<1x8x8xbf16>
    %56 = vector.shape_cast %55 : vector<1x8x8xbf16> to vector<8x8xbf16>
    %57 = vector.shape_cast %54 : vector<8x8xbf16> to vector<1x8x8xbf16>
    tpu.vector_store %arg15[%c2_36, %c0_37, %c0_38], %57 {strides = array<i32>} : memref<4x8x8xbf16, #tpu.memory_space<vmem>>, vector<1x8x8xbf16>,
    %58 = vector.extract_strided_slice %17 {offsets = [0, 48], sizes = [8, 8], strides = [1, 1]} : vector<8x64xf32> to vector<8x8xf32>
    %59 = arith.truncf %58 : vector<8x8xf32> to vector<8x8xbf16>
    %c2_39 = arith.constant 2 : index
    %c0_40 = arith.constant 0 : index
    %c0_41 = arith.constant 0 : index
    %60 = vector.load %arg16[%c2_39, %c0_40, %c0_41] : memref<4x8x8xbf16, #tpu.memory_space<vmem>>, vector<1x8x8xbf16>
    %61 = vector.shape_cast %60 : vector<1x8x8xbf16> to vector<8x8xbf16>
    %62 = vector.shape_cast %59 : vector<8x8xbf16> to vector<1x8x8xbf16>
    tpu.vector_store %arg16[%c2_39, %c0_40, %c0_41], %62 {strides = array<i32>} : memref<4x8x8xbf16, #tpu.memory_space<vmem>>, vector<1x8x8xbf16>,
    %63 = vector.extract_strided_slice %12 {offsets = [0, 24], sizes = [8, 8], strides = [1, 1]} : vector<8x32xf32> to vector<8x8xf32>
    %64 = arith.truncf %63 : vector<8x8xf32> to vector<8x8xbf16>
    %c3 = arith.constant 3 : index
    %c0_42 = arith.constant 0 : index
    %c0_43 = arith.constant 0 : index
    %65 = vector.load %arg14[%c3, %c0_42, %c0_43] : memref<4x8x8xbf16, #tpu.memory_space<vmem>>, vector<1x8x8xbf16>
    %66 = vector.shape_cast %65 : vector<1x8x8xbf16> to vector<8x8xbf16>
    %67 = vector.shape_cast %64 : vector<8x8xbf16> to vector<1x8x8xbf16>
    tpu.vector_store %arg14[%c3, %c0_42, %c0_43], %67 {strides = array<i32>} : memref<4x8x8xbf16, #tpu.memory_space<vmem>>, vector<1x8x8xbf16>,
    %68 = vector.extract_strided_slice %17 {offsets = [0, 24], sizes = [8, 8], strides = [1, 1]} : vector<8x64xf32> to vector<8x8xf32>
    %69 = arith.truncf %68 : vector<8x8xf32> to vector<8x8xbf16>
    %c3_44 = arith.constant 3 : index
    %c0_45 = arith.constant 0 : index
    %c0_46 = arith.constant 0 : index
    %70 = vector.load %arg15[%c3_44, %c0_45, %c0_46] : memref<4x8x8xbf16, #tpu.memory_space<vmem>>, vector<1x8x8xbf16>
    %71 = vector.shape_cast %70 : vector<1x8x8xbf16> to vector<8x8xbf16>
    %72 = vector.shape_cast %69 : vector<8x8xbf16> to vector<1x8x8xbf16>
    tpu.vector_store %arg15[%c3_44, %c0_45, %c0_46], %72 {strides = array<i32>} : memref<4x8x8xbf16, #tpu.memory_space<vmem>>, vector<1x8x8xbf16>,
    %73 = vector.extract_strided_slice %17 {offsets = [0, 56], sizes = [8, 8], strides = [1, 1]} : vector<8x64xf32> to vector<8x8xf32>
    %74 = arith.truncf %73 : vector<8x8xf32> to vector<8x8xbf16>
    %c3_47 = arith.constant 3 : index
    %c0_48 = arith.constant 0 : index
    %c0_49 = arith.constant 0 : index
    %75 = vector.load %arg16[%c3_47, %c0_48, %c0_49] : memref<4x8x8xbf16, #tpu.memory_space<vmem>>, vector<1x8x8xbf16>
    %76 = vector.shape_cast %75 : vector<1x8x8xbf16> to vector<8x8xbf16>
    %77 = vector.shape_cast %74 : vector<8x8xbf16> to vector<1x8x8xbf16>
    tpu.vector_store %arg16[%c3_47, %c0_48, %c0_49], %77 {strides = array<i32>} : memref<4x8x8xbf16, #tpu.memory_space<vmem>>, vector<1x8x8xbf16>,
    %c0_50 = arith.constant 0 : index
    %c0_51 = arith.constant 0 : index
    %c0_52 = arith.constant 0 : index
    %78 = vector.load %arg14[%c0_50, %c0_51, %c0_52] : memref<4x8x8xbf16, #tpu.memory_space<vmem>>, vector<4x8x8xbf16>
    %c0_53 = arith.constant 0 : index
    %c0_54 = arith.constant 0 : index
    %c0_55 = arith.constant 0 : index
    %79 = vector.load %arg15[%c0_53, %c0_54, %c0_55] : memref<4x8x8xbf16, #tpu.memory_space<vmem>>, vector<4x8x8xbf16>
    "tpu.trace_start"() <{level = 10 : i32, message = "hqd,hkd->hqk"}> : () -> ()
    %cst_56 = arith.constant dense<0.000000e+00> : vector<4x8x8xf32>
    %80 = tpu.matmul %78, %79, %cst_56 {dimension_numbers = #tpu.dot_dimension_numbers<[2], [2], [1], [1], [0, 0, 0, 1, 1, 1], [0], [0]>} : vector<4x8x8xbf16>, vector<4x8x8xbf16>, vector<4x8x8xf32> -> vector<4x8x8xf32>
    "tpu.trace_stop"() : () -> ()
    %81 = vector.shape_cast %7 : vector<1x8xi1> to vector<1x1x8xi1>
    %cst_57 = arith.constant 0.353553385 : f32
    %82 = vector.broadcast %cst_57 : f32 to vector<4x8x8xf32>
    %83 = arith.mulf %80, %82 : vector<4x8x8xf32>
    %cst_58 = arith.constant -1.000000e+09 : f32
    %84 = vector.shape_cast %81 : vector<1x1x8xi1> to vector<1x1x8xi1>
    %85 = vector.broadcast %84 : vector<1x1x8xi1> to vector<4x8x8xi1>
    %86 = vector.broadcast %cst_58 : f32 to vector<4x8x8xf32>
    %87 = arith.select %85, %83, %86 : vector<4x8x8xi1>, vector<4x8x8xf32>
    %cst_59 = arith.constant dense<0xFF800000> : vector<4x8xf32>
    %88 = vector.multi_reduction <maximumf>, %87, %cst_59 [2] : vector<4x8x8xf32> to vector<4x8xf32>
    %89 = vector.shape_cast %88 : vector<4x8xf32> to vector<4x8x1xf32>
    %90 = vector.broadcast %89 : vector<4x8x1xf32> to vector<4x8x8xf32>
    %91 = arith.subf %87, %90 : vector<4x8x8xf32>
    %92 = math.exp %91 : vector<4x8x8xf32>
    %cst_60 = arith.constant dense<0.000000e+00> : vector<4x8xf32>
    %93 = vector.multi_reduction <add>, %92, %cst_60 [2] : vector<4x8x8xf32> to vector<4x8xf32>
    %94 = vector.shape_cast %93 : vector<4x8xf32> to vector<4x8x1xf32>
    %95 = tpu.reciprocal %94 {approx = true} : vector<4x8x1xf32> -> vector<4x8x1xf32>
    %96 = vector.broadcast %95 : vector<4x8x1xf32> to vector<4x8x8xf32>
    %97 = arith.mulf %92, %96 : vector<4x8x8xf32>
    %98 = arith.truncf %97 : vector<4x8x8xf32> to vector<4x8x8xbf16>
    %c0_61 = arith.constant 0 : index
    %c0_62 = arith.constant 0 : index
    %c0_63 = arith.constant 0 : index
    %99 = vector.load %arg16[%c0_61, %c0_62, %c0_63] : memref<4x8x8xbf16, #tpu.memory_space<vmem>>, vector<4x8x8xbf16>
    "tpu.trace_start"() <{level = 10 : i32, message = "hqk,hkd->hqd"}> : () -> ()
    %cst_64 = arith.constant dense<0.000000e+00> : vector<4x8x8xf32>
    %100 = tpu.matmul %98, %99, %cst_64 {dimension_numbers = #tpu.dot_dimension_numbers<[2], [1], [1], [2], [0, 0, 0, 1, 1, 2], [0], [0]>} : vector<4x8x8xbf16>, vector<4x8x8xbf16>, vector<4x8x8xf32> -> vector<4x8x8xf32>
    "tpu.trace_stop"() : () -> ()
    %101 = vector.extract_strided_slice %100 {offsets = [0, 0, 0], sizes = [1, 8, 8], strides = [1, 1, 1]} : vector<4x8x8xf32> to vector<1x8x8xf32>
    %102 = vector.shape_cast %101 : vector<1x8x8xf32> to vector<8x8xf32>
    %103 = arith.truncf %102 : vector<8x8xf32> to vector<8x8xbf16>
    %c0_65 = arith.constant 0 : index
    %c0_66 = arith.constant 0 : index
    %104 = vector.load %arg17[%c0_65, %c0_66] : memref<8x32xbf16, #tpu.memory_space<vmem>>, vector<8x8xbf16>
    tpu.vector_store %arg17[%c0_65, %c0_66], %103 {strides = array<i32>} : memref<8x32xbf16, #tpu.memory_space<vmem>>, vector<8x8xbf16>,
    %105 = vector.extract_strided_slice %100 {offsets = [1, 0, 0], sizes = [1, 8, 8], strides = [1, 1, 1]} : vector<4x8x8xf32> to vector<1x8x8xf32>
    %106 = vector.shape_cast %105 : vector<1x8x8xf32> to vector<8x8xf32>
    %107 = arith.truncf %106 : vector<8x8xf32> to vector<8x8xbf16>
    %c0_67 = arith.constant 0 : index
    %c8 = arith.constant 8 : index
    %108 = vector.load %arg17[%c0_67, %c8] : memref<8x32xbf16, #tpu.memory_space<vmem>>, vector<8x8xbf16>
    tpu.vector_store %arg17[%c0_67, %c8], %107 {strides = array<i32>} : memref<8x32xbf16, #tpu.memory_space<vmem>>, vector<8x8xbf16>,
    %109 = vector.extract_strided_slice %100 {offsets = [2, 0, 0], sizes = [1, 8, 8], strides = [1, 1, 1]} : vector<4x8x8xf32> to vector<1x8x8xf32>
    %110 = vector.shape_cast %109 : vector<1x8x8xf32> to vector<8x8xf32>
    %111 = arith.truncf %110 : vector<8x8xf32> to vector<8x8xbf16>
    %c0_68 = arith.constant 0 : index
    %c16 = arith.constant 16 : index
    %112 = vector.load %arg17[%c0_68, %c16] : memref<8x32xbf16, #tpu.memory_space<vmem>>, vector<8x8xbf16>
    tpu.vector_store %arg17[%c0_68, %c16], %111 {strides = array<i32>} : memref<8x32xbf16, #tpu.memory_space<vmem>>, vector<8x8xbf16>,
    %113 = vector.extract_strided_slice %100 {offsets = [3, 0, 0], sizes = [1, 8, 8], strides = [1, 1, 1]} : vector<4x8x8xf32> to vector<1x8x8xf32>
    %114 = vector.shape_cast %113 : vector<1x8x8xf32> to vector<8x8xf32>
    %115 = arith.truncf %114 : vector<8x8xf32> to vector<8x8xbf16>
    %c0_69 = arith.constant 0 : index
    %c24 = arith.constant 24 : index
    %116 = vector.load %arg17[%c0_69, %c24] : memref<8x32xbf16, #tpu.memory_space<vmem>>, vector<8x8xbf16>
    tpu.vector_store %arg17[%c0_69, %c24], %115 {strides = array<i32>} : memref<8x32xbf16, #tpu.memory_space<vmem>>, vector<8x8xbf16>,
    %c0_70 = arith.constant 0 : index
    %c0_71 = arith.constant 0 : index
    %117 = vector.load %arg17[%c0_70, %c0_71] : memref<8x32xbf16, #tpu.memory_space<vmem>>, vector<8x32xbf16>
    %c0_72 = arith.constant 0 : index
    %c0_73 = arith.constant 0 : index
    %118 = vector.load %arg9[%c0_72, %c0_73] : memref<32x32xbf16, #tpu.memory_space<vmem>>, vector<32x32xbf16>
    %cst_74 = arith.constant dense<0.000000e+00> : vector<8x32xf32>
    %119 = tpu.matmul %117, %118, %cst_74 {dimension_numbers = #tpu.dot_dimension_numbers<[1], [0], [0], [1], [0, 0, 1, 1], [], []>} : vector<8x32xbf16>, vector<32x32xbf16>, vector<8x32xf32> -> vector<8x32xf32>
    %c0_75 = arith.constant 0 : index
    %c0_76 = arith.constant 0 : index
    %120 = vector.load %arg10[%c0_75, %c0_76] : memref<1x32xf32, #tpu.memory_space<vmem>>, vector<1x32xf32>
    %121 = vector.broadcast %120 : vector<1x32xf32> to vector<8x32xf32>
    %122 = arith.addf %119, %121 : vector<8x32xf32>
    %123 = arith.extf %1 : vector<8x32xbf16> to vector<8x32xf32>
    %124 = arith.addf %122, %123 : vector<8x32xf32>
    %cst_77 = arith.constant dense<0.000000e+00> : vector<8xf32>
    %125 = vector.multi_reduction <add>, %124, %cst_77 [1] : vector<8x32xf32> to vector<8xf32>
    %126 = vector.shape_cast %125 : vector<8xf32> to vector<8x1xf32>
    %cst_78 = arith.constant 3.200000e+01 : f32
    %127 = vector.broadcast %cst_78 : f32 to vector<8x1xf32>
    %128 = arith.divf %126, %127 : vector<8x1xf32>
    %129 = arith.mulf %124, %124 : vector<8x32xf32>
    %cst_79 = arith.constant dense<0.000000e+00> : vector<8xf32>
    %130 = vector.multi_reduction <add>, %129, %cst_79 [1] : vector<8x32xf32> to vector<8xf32>
    %131 = vector.shape_cast %130 : vector<8xf32> to vector<8x1xf32>
    %cst_80 = arith.constant 3.200000e+01 : f32
    %132 = vector.broadcast %cst_80 : f32 to vector<8x1xf32>
    %133 = arith.divf %131, %132 : vector<8x1xf32>
    %134 = arith.mulf %128, %128 : vector<8x1xf32>
    %135 = arith.subf %133, %134 : vector<8x1xf32>
    %136 = vector.broadcast %128 : vector<8x1xf32> to vector<8x32xf32>
    %137 = arith.subf %124, %136 : vector<8x32xf32>
    %cst_81 = arith.constant 9.99999974E-6 : f32
    %138 = vector.broadcast %cst_81 : f32 to vector<8x1xf32>
    %139 = arith.addf %135, %138 : vector<8x1xf32>
    %140 = math.rsqrt %139 : vector<8x1xf32>
    %141 = vector.broadcast %140 : vector<8x1xf32> to vector<8x32xf32>
    %142 = arith.mulf %137, %141 : vector<8x32xf32>
    %c0_82 = arith.constant 0 : index
    %c0_83 = arith.constant 0 : index
    %143 = vector.load %arg11[%c0_82, %c0_83] : memref<1x32xf32, #tpu.memory_space<vmem>>, vector<1x32xf32>
    %144 = vector.broadcast %143 : vector<1x32xf32> to vector<8x32xf32>
    %145 = arith.mulf %142, %144 : vector<8x32xf32>
    %c0_84 = arith.constant 0 : index
    %c0_85 = arith.constant 0 : index
    %146 = vector.load %arg12[%c0_84, %c0_85] : memref<1x32xf32, #tpu.memory_space<vmem>>, vector<1x32xf32>
    %147 = vector.broadcast %146 : vector<1x32xf32> to vector<8x32xf32>
    %148 = arith.addf %145, %147 : vector<8x32xf32>
    %149 = arith.truncf %148 : vector<8x32xf32> to vector<8x32xbf16>
    %c0_86 = arith.constant 0 : index
    %c0_87 = arith.constant 0 : index
    %c0_88 = arith.constant 0 : index
    %150 = vector.load %arg13[%c0_86, %c0_87, %c0_88] : memref<1x8x32xbf16, #tpu.memory_space<vmem>>, vector<1x8x32xbf16>
    %151 = vector.shape_cast %150 : vector<1x8x32xbf16> to vector<8x32xbf16>
    %152 = vector.shape_cast %149 : vector<8x32xbf16> to vector<1x8x32xbf16>
    tpu.vector_store %arg13[%c0_86, %c0_87, %c0_88], %152 {strides = array<i32>} : memref<1x8x32xbf16, #tpu.memory_space<vmem>>, vector<1x8x32xbf16>,
    return
  }
  func.func @transform_0(%arg0: i32, %arg1: i32) -> (i32, i32, i32) {
    %c0_i32 = arith.constant 0 : i32
    %c0_i32_0 = arith.constant 0 : i32
    return %arg0, %arg1, %c0_i32 : i32, i32, i32
  }
  func.func @transform_1(%arg0: i32, %arg1: i32) -> (i32, i32, i32) {
    %c0_i32 = arith.constant 0 : i32
    %c0_i32_0 = arith.constant 0 : i32
    %c0_i32_1 = arith.constant 0 : i32
    return %arg0, %c0_i32, %c0_i32_0 : i32, i32, i32
  }
  func.func @transform_2(%arg0: i32, %arg1: i32) -> (i32, i32, i32) {
    %c0_i32 = arith.constant 0 : i32
    %c0_i32_0 = arith.constant 0 : i32
    %c0_i32_1 = arith.constant 0 : i32
    return %arg0, %c0_i32, %c0_i32_0 : i32, i32, i32
  }
  func.func @transform_3(%arg0: i32, %arg1: i32) -> (i32, i32) {
    %c0_i32 = arith.constant 0 : i32
    %c0_i32_0 = arith.constant 0 : i32
    %c0_i32_1 = arith.constant 0 : i32
    return %c0_i32, %c0_i32_0 : i32, i32
  }
  func.func @transform_4(%arg0: i32, %arg1: i32) -> (i32, i32) {
    %c0_i32 = arith.constant 0 : i32
    %c0_i32_0 = arith.constant 0 : i32
    %c0_i32_1 = arith.constant 0 : i32
    return %c0_i32, %c0_i32_0 : i32, i32
  }
  func.func @transform_5(%arg0: i32, %arg1: i32) -> (i32, i32) {
    %c0_i32 = arith.constant 0 : i32
    %c0_i32_0 = arith.constant 0 : i32
    %c0_i32_1 = arith.constant 0 : i32
    return %c0_i32, %c0_i32_0 : i32, i32
  }
  func.func @transform_6(%arg0: i32, %arg1: i32) -> (i32, i32) {
    %c0_i32 = arith.constant 0 : i32
    %c0_i32_0 = arith.constant 0 : i32
    %c0_i32_1 = arith.constant 0 : i32
    return %c0_i32, %c0_i32_0 : i32, i32
  }
  func.func @transform_7(%arg0: i32, %arg1: i32) -> (i32, i32) {
    %c0_i32 = arith.constant 0 : i32
    %c0_i32_0 = arith.constant 0 : i32
    %c0_i32_1 = arith.constant 0 : i32
    return %c0_i32, %c0_i32_0 : i32, i32
  }
  func.func @transform_8(%arg0: i32, %arg1: i32) -> (i32, i32) {
    %c0_i32 = arith.constant 0 : i32
    %c0_i32_0 = arith.constant 0 : i32
    %c0_i32_1 = arith.constant 0 : i32
    return %c0_i32, %c0_i32_0 : i32, i32
  }
  func.func @transform_9(%arg0: i32, %arg1: i32) -> (i32, i32) {
    %c0_i32 = arith.constant 0 : i32
    %c0_i32_0 = arith.constant 0 : i32
    %c0_i32_1 = arith.constant 0 : i32
    return %c0_i32, %c0_i32_0 : i32, i32
  }
  func.func @transform_10(%arg0: i32, %arg1: i32) -> (i32, i32) {
    %c0_i32 = arith.constant 0 : i32
    %c0_i32_0 = arith.constant 0 : i32
    %c0_i32_1 = arith.constant 0 : i32
    return %c0_i32, %c0_i32_0 : i32, i32
  }
  func.func @transform_11(%arg0: i32, %arg1: i32) -> (i32, i32, i32) {
    %c0_i32 = arith.constant 0 : i32
    %c0_i32_0 = arith.constant 0 : i32
    return %arg0, %arg1, %c0_i32 : i32, i32, i32
  }
}

module attributes {stable_mosaic.version = 11 : i64} {
  func.func @_attn_ln_kernel(%arg0: i32, %arg1: i32, %arg2: memref<1x8x32xbf16, #tpu.memory_space<vmem>>, %arg3: memref<1x8x32xbf16, #tpu.memory_space<vmem>>, %arg4: memref<1x1x8xi8, #tpu.memory_space<vmem>>, %arg5: memref<32x32xbf16, #tpu.memory_space<vmem>>, %arg6: memref<1x32xf32, #tpu.memory_space<vmem>>, %arg7: memref<32x64xbf16, #tpu.memory_space<vmem>>, %arg8: memref<1x64xf32, #tpu.memory_space<vmem>>, %arg9: memref<32x32xbf16, #tpu.memory_space<vmem>>, %arg10: memref<1x32xf32, #tpu.memory_space<vmem>>, %arg11: memref<1x32xf32, #tpu.memory_space<vmem>>, %arg12: memref<1x32xf32, #tpu.memory_space<vmem>>, %arg13: memref<1x8x32xbf16, #tpu.memory_space<vmem>>, %arg14: memref<2x8x16xbf16, #tpu.memory_space<vmem>>, %arg15: memref<2x8x16xbf16, #tpu.memory_space<vmem>>, %arg16: memref<2x8x16xbf16, #tpu.memory_space<vmem>>, %arg17: memref<8x32xbf16, #tpu.memory_space<vmem>>) attributes {dimension_semantics = [#tpu.dimension_semantics<parallel>, #tpu.dimension_semantics<parallel>], iteration_bounds = array<i64: 2, 1>, scalar_prefetch = 0 : i64, scratch_operands = 4 : i64, tpu.core_type = #tpu.core_type<tc>, window_params = [{transform_indices = @transform_0, window_bounds = array<i64: 1, 8, 32>}, {transform_indices = @transform_1, window_bounds = array<i64: 1, 8, 32>}, {transform_indices = @transform_2, window_bounds = array<i64: 1, 1, 8>}, {pipeline_mode = #tpu.pipeline_mode<synchronous>, transform_indices = @transform_3, window_bounds = array<i64: 32, 32>}, {pipeline_mode = #tpu.pipeline_mode<synchronous>, transform_indices = @transform_4, window_bounds = array<i64: 1, 32>}, {pipeline_mode = #tpu.pipeline_mode<synchronous>, transform_indices = @transform_5, window_bounds = array<i64: 32, 64>}, {pipeline_mode = #tpu.pipeline_mode<synchronous>, transform_indices = @transform_6, window_bounds = array<i64: 1, 64>}, {pipeline_mode = #tpu.pipeline_mode<synchronous>, transform_indices = @transform_7, window_bounds = array<i64: 32, 32>}, {pipeline_mode = #tpu.pipeline_mode<synchronous>, transform_indices = @transform_8, window_bounds = array<i64: 1, 32>}, {pipeline_mode = #tpu.pipeline_mode<synchronous>, transform_indices = @transform_9, window_bounds = array<i64: 1, 32>}, {pipeline_mode = #tpu.pipeline_mode<synchronous>, transform_indices = @transform_10, window_bounds = array<i64: 1, 32>}, {transform_indices = @transform_11, window_bounds = array<i64: 1, 8, 32>}]} {
    %c0 = arith.constant 0 : index
    %c0_0 = arith.constant 0 : index
    %c0_1 = arith.constant 0 : index
    %0 = vector.load %arg2[%c0, %c0_0, %c0_1] : memref<1x8x32xbf16, #tpu.memory_space<vmem>>, vector<1x8x32xbf16>
    %1 = vector.shape_cast %0 : vector<1x8x32xbf16> to vector<8x32xbf16>
    %c0_2 = arith.constant 0 : index
    %c0_3 = arith.constant 0 : index
    %c0_4 = arith.constant 0 : index
    %2 = vector.load %arg3[%c0_2, %c0_3, %c0_4] : memref<1x8x32xbf16, #tpu.memory_space<vmem>>, vector<1x8x32xbf16>
    %3 = vector.shape_cast %2 : vector<1x8x32xbf16> to vector<8x32xbf16>
    %c0_5 = arith.constant 0 : index
    %c0_6 = arith.constant 0 : index
    %c0_7 = arith.constant 0 : index
    %4 = vector.load %arg4[%c0_5, %c0_6, %c0_7] : memref<1x1x8xi8, #tpu.memory_space<vmem>>, vector<1x1x8xi8>
    %5 = vector.shape_cast %4 : vector<1x1x8xi8> to vector<1x8xi8>
    %c0_i8 = arith.constant 0 : i8
    %6 = vector.broadcast %c0_i8 : i8 to vector<1x8xi8>
    %7 = arith.cmpi ne, %5, %6 : vector<1x8xi8>
    %c0_8 = arith.constant 0 : index
    %c0_9 = arith.constant 0 : index
    %8 = vector.load %arg5[%c0_8, %c0_9] : memref<32x32xbf16, #tpu.memory_space<vmem>>, vector<32x32xbf16>
    %cst = arith.constant dense<0.000000e+00> : vector<8x32xf32>
    %9 = tpu.matmul %1, %8, %cst {dimension_numbers = #tpu.dot_dimension_numbers<[1], [0], [0], [1], [0, 0, 1, 1], [], []>} : vector<8x32xbf16>, vector<32x32xbf16>, vector<8x32xf32> -> vector<8x32xf32>
    %c0_10 = arith.constant 0 : index
    %c0_11 = arith.constant 0 : index
    %10 = vector.load %arg6[%c0_10, %c0_11] : memref<1x32xf32, #tpu.memory_space<vmem>>, vector<1x32xf32>
    %11 = vector.broadcast %10 : vector<1x32xf32> to vector<8x32xf32>
    %12 = arith.addf %9, %11 : vector<8x32xf32>
    %c0_12 = arith.constant 0 : index
    %c0_13 = arith.constant 0 : index
    %13 = vector.load %arg7[%c0_12, %c0_13] : memref<32x64xbf16, #tpu.memory_space<vmem>>, vector<32x64xbf16>
    %cst_14 = arith.constant dense<0.000000e+00> : vector<8x64xf32>
    %14 = tpu.matmul %3, %13, %cst_14 {dimension_numbers = #tpu.dot_dimension_numbers<[1], [0], [0], [1], [0, 0, 1, 1], [], []>} : vector<8x32xbf16>, vector<32x64xbf16>, vector<8x64xf32> -> vector<8x64xf32>
    %c0_15 = arith.constant 0 : index
    %c0_16 = arith.constant 0 : index
    %15 = vector.load %arg8[%c0_15, %c0_16] : memref<1x64xf32, #tpu.memory_space<vmem>>, vector<1x64xf32>
    %16 = vector.broadcast %15 : vector<1x64xf32> to vector<8x64xf32>
    %17 = arith.addf %14, %16 : vector<8x64xf32>
    %18 = vector.extract_strided_slice %12 {offsets = [0, 0], sizes = [8, 16], strides = [1, 1]} : vector<8x32xf32> to vector<8x16xf32>
    %19 = arith.truncf %18 : vector<8x16xf32> to vector<8x16xbf16>
    %c0_17 = arith.constant 0 : index
    %c0_18 = arith.constant 0 : index
    %c0_19 = arith.constant 0 : index
    %20 = vector.load %arg14[%c0_17, %c0_18, %c0_19] : memref<2x8x16xbf16, #tpu.memory_space<vmem>>, vector<1x8x16xbf16>
    %21 = vector.shape_cast %20 : vector<1x8x16xbf16> to vector<8x16xbf16>
    %22 = vector.shape_cast %19 : vector<8x16xbf16> to vector<1x8x16xbf16>
    tpu.vector_store %arg14[%c0_17, %c0_18, %c0_19], %22 {strides = array<i32>} : memref<2x8x16xbf16, #tpu.memory_space<vmem>>, vector<1x8x16xbf16>,
    %23 = vector.extract_strided_slice %17 {offsets = [0, 0], sizes = [8, 16], strides = [1, 1]} : vector<8x64xf32> to vector<8x16xf32>
    %24 = arith.truncf %23 : vector<8x16xf32> to vector<8x16xbf16>
    %c0_20 = arith.constant 0 : index
    %c0_21 = arith.constant 0 : index
    %c0_22 = arith.constant 0 : index
    %25 = vector.load %arg15[%c0_20, %c0_21, %c0_22] : memref<2x8x16xbf16, #tpu.memory_space<vmem>>, vector<1x8x16xbf16>
    %26 = vector.shape_cast %25 : vector<1x8x16xbf16> to vector<8x16xbf16>
    %27 = vector.shape_cast %24 : vector<8x16xbf16> to vector<1x8x16xbf16>
    tpu.vector_store %arg15[%c0_20, %c0_21, %c0_22], %27 {strides = array<i32>} : memref<2x8x16xbf16, #tpu.memory_space<vmem>>, vector<1x8x16xbf16>,
    %28 = vector.extract_strided_slice %17 {offsets = [0, 32], sizes = [8, 16], strides = [1, 1]} : vector<8x64xf32> to vector<8x16xf32>
    %29 = arith.truncf %28 : vector<8x16xf32> to vector<8x16xbf16>
    %c0_23 = arith.constant 0 : index
    %c0_24 = arith.constant 0 : index
    %c0_25 = arith.constant 0 : index
    %30 = vector.load %arg16[%c0_23, %c0_24, %c0_25] : memref<2x8x16xbf16, #tpu.memory_space<vmem>>, vector<1x8x16xbf16>
    %31 = vector.shape_cast %30 : vector<1x8x16xbf16> to vector<8x16xbf16>
    %32 = vector.shape_cast %29 : vector<8x16xbf16> to vector<1x8x16xbf16>
    tpu.vector_store %arg16[%c0_23, %c0_24, %c0_25], %32 {strides = array<i32>} : memref<2x8x16xbf16, #tpu.memory_space<vmem>>, vector<1x8x16xbf16>,
    %33 = vector.extract_strided_slice %12 {offsets = [0, 16], sizes = [8, 16], strides = [1, 1]} : vector<8x32xf32> to vector<8x16xf32>
    %34 = arith.truncf %33 : vector<8x16xf32> to vector<8x16xbf16>
    %c1 = arith.constant 1 : index
    %c0_26 = arith.constant 0 : index
    %c0_27 = arith.constant 0 : index
    %35 = vector.load %arg14[%c1, %c0_26, %c0_27] : memref<2x8x16xbf16, #tpu.memory_space<vmem>>, vector<1x8x16xbf16>
    %36 = vector.shape_cast %35 : vector<1x8x16xbf16> to vector<8x16xbf16>
    %37 = vector.shape_cast %34 : vector<8x16xbf16> to vector<1x8x16xbf16>
    tpu.vector_store %arg14[%c1, %c0_26, %c0_27], %37 {strides = array<i32>} : memref<2x8x16xbf16, #tpu.memory_space<vmem>>, vector<1x8x16xbf16>,
    %38 = vector.extract_strided_slice %17 {offsets = [0, 16], sizes = [8, 16], strides = [1, 1]} : vector<8x64xf32> to vector<8x16xf32>
    %39 = arith.truncf %38 : vector<8x16xf32> to vector<8x16xbf16>
    %c1_28 = arith.constant 1 : index
    %c0_29 = arith.constant 0 : index
    %c0_30 = arith.constant 0 : index
    %40 = vector.load %arg15[%c1_28, %c0_29, %c0_30] : memref<2x8x16xbf16, #tpu.memory_space<vmem>>, vector<1x8x16xbf16>
    %41 = vector.shape_cast %40 : vector<1x8x16xbf16> to vector<8x16xbf16>
    %42 = vector.shape_cast %39 : vector<8x16xbf16> to vector<1x8x16xbf16>
    tpu.vector_store %arg15[%c1_28, %c0_29, %c0_30], %42 {strides = array<i32>} : memref<2x8x16xbf16, #tpu.memory_space<vmem>>, vector<1x8x16xbf16>,
    %43 = vector.extract_strided_slice %17 {offsets = [0, 48], sizes = [8, 16], strides = [1, 1]} : vector<8x64xf32> to vector<8x16xf32>
    %44 = arith.truncf %43 : vector<8x16xf32> to vector<8x16xbf16>
    %c1_31 = arith.constant 1 : index
    %c0_32 = arith.constant 0 : index
    %c0_33 = arith.constant 0 : index
    %45 = vector.load %arg16[%c1_31, %c0_32, %c0_33] : memref<2x8x16xbf16, #tpu.memory_space<vmem>>, vector<1x8x16xbf16>
    %46 = vector.shape_cast %45 : vector<1x8x16xbf16> to vector<8x16xbf16>
    %47 = vector.shape_cast %44 : vector<8x16xbf16> to vector<1x8x16xbf16>
    tpu.vector_store %arg16[%c1_31, %c0_32, %c0_33], %47 {strides = array<i32>} : memref<2x8x16xbf16, #tpu.memory_space<vmem>>, vector<1x8x16xbf16>,
    %c0_34 = arith.constant 0 : index
    %c0_35 = arith.constant 0 : index
    %c0_36 = arith.constant 0 : index
    %48 = vector.load %arg14[%c0_34, %c0_35, %c0_36] : memref<2x8x16xbf16, #tpu.memory_space<vmem>>, vector<2x8x16xbf16>
    %c0_37 = arith.constant 0 : index
    %c0_38 = arith.constant 0 : index
    %c0_39 = arith.constant 0 : index
    %49 = vector.load %arg15[%c0_37, %c0_38, %c0_39] : memref<2x8x16xbf16, #tpu.memory_space<vmem>>, vector<2x8x16xbf16>
    "tpu.trace_start"() <{level = 10 : i32, message = "hqd,hkd->hqk"}> : () -> ()
    %cst_40 = arith.constant dense<0.000000e+00> : vector<2x8x8xf32>
    %50 = tpu.matmul %48, %49, %cst_40 {dimension_numbers = #tpu.dot_dimension_numbers<[2], [2], [1], [1], [0, 0, 0, 1, 1, 1], [0], [0]>} : vector<2x8x16xbf16>, vector<2x8x16xbf16>, vector<2x8x8xf32> -> vector<2x8x8xf32>
    "tpu.trace_stop"() : () -> ()
    %51 = vector.shape_cast %7 : vector<1x8xi1> to vector<1x1x8xi1>
    %cst_41 = arith.constant 2.500000e-01 : f32
    %52 = vector.broadcast %cst_41 : f32 to vector<2x8x8xf32>
    %53 = arith.mulf %50, %52 : vector<2x8x8xf32>
    %cst_42 = arith.constant -1.000000e+09 : f32
    %54 = vector.shape_cast %51 : vector<1x1x8xi1> to vector<1x1x8xi1>
    %55 = vector.broadcast %54 : vector<1x1x8xi1> to vector<2x8x8xi1>
    %56 = vector.broadcast %cst_42 : f32 to vector<2x8x8xf32>
    %57 = arith.select %55, %53, %56 : vector<2x8x8xi1>, vector<2x8x8xf32>
    %cst_43 = arith.constant dense<0xFF800000> : vector<2x8xf32>
    %58 = vector.multi_reduction <maximumf>, %57, %cst_43 [2] : vector<2x8x8xf32> to vector<2x8xf32>
    %59 = vector.shape_cast %58 : vector<2x8xf32> to vector<2x8x1xf32>
    %60 = vector.broadcast %59 : vector<2x8x1xf32> to vector<2x8x8xf32>
    %61 = arith.subf %57, %60 : vector<2x8x8xf32>
    %62 = math.exp %61 : vector<2x8x8xf32>
    %cst_44 = arith.constant dense<0.000000e+00> : vector<2x8xf32>
    %63 = vector.multi_reduction <add>, %62, %cst_44 [2] : vector<2x8x8xf32> to vector<2x8xf32>
    %64 = vector.shape_cast %63 : vector<2x8xf32> to vector<2x8x1xf32>
    %65 = tpu.reciprocal %64 {approx = true} : vector<2x8x1xf32> -> vector<2x8x1xf32>
    %66 = vector.broadcast %65 : vector<2x8x1xf32> to vector<2x8x8xf32>
    %67 = arith.mulf %62, %66 : vector<2x8x8xf32>
    %68 = arith.truncf %67 : vector<2x8x8xf32> to vector<2x8x8xbf16>
    %c0_45 = arith.constant 0 : index
    %c0_46 = arith.constant 0 : index
    %c0_47 = arith.constant 0 : index
    %69 = vector.load %arg16[%c0_45, %c0_46, %c0_47] : memref<2x8x16xbf16, #tpu.memory_space<vmem>>, vector<2x8x16xbf16>
    "tpu.trace_start"() <{level = 10 : i32, message = "hqk,hkd->hqd"}> : () -> ()
    %cst_48 = arith.constant dense<0.000000e+00> : vector<2x8x16xf32>
    %70 = tpu.matmul %68, %69, %cst_48 {dimension_numbers = #tpu.dot_dimension_numbers<[2], [1], [1], [2], [0, 0, 0, 1, 1, 2], [0], [0]>} : vector<2x8x8xbf16>, vector<2x8x16xbf16>, vector<2x8x16xf32> -> vector<2x8x16xf32>
    "tpu.trace_stop"() : () -> ()
    %71 = vector.extract_strided_slice %70 {offsets = [0, 0, 0], sizes = [1, 8, 16], strides = [1, 1, 1]} : vector<2x8x16xf32> to vector<1x8x16xf32>
    %72 = vector.shape_cast %71 : vector<1x8x16xf32> to vector<8x16xf32>
    %73 = arith.truncf %72 : vector<8x16xf32> to vector<8x16xbf16>
    %c0_49 = arith.constant 0 : index
    %c0_50 = arith.constant 0 : index
    %74 = vector.load %arg17[%c0_49, %c0_50] : memref<8x32xbf16, #tpu.memory_space<vmem>>, vector<8x16xbf16>
    tpu.vector_store %arg17[%c0_49, %c0_50], %73 {strides = array<i32>} : memref<8x32xbf16, #tpu.memory_space<vmem>>, vector<8x16xbf16>,
    %75 = vector.extract_strided_slice %70 {offsets = [1, 0, 0], sizes = [1, 8, 16], strides = [1, 1, 1]} : vector<2x8x16xf32> to vector<1x8x16xf32>
    %76 = vector.shape_cast %75 : vector<1x8x16xf32> to vector<8x16xf32>
    %77 = arith.truncf %76 : vector<8x16xf32> to vector<8x16xbf16>
    %c0_51 = arith.constant 0 : index
    %c16 = arith.constant 16 : index
    %78 = vector.load %arg17[%c0_51, %c16] : memref<8x32xbf16, #tpu.memory_space<vmem>>, vector<8x16xbf16>
    tpu.vector_store %arg17[%c0_51, %c16], %77 {strides = array<i32>} : memref<8x32xbf16, #tpu.memory_space<vmem>>, vector<8x16xbf16>,
    %c0_52 = arith.constant 0 : index
    %c0_53 = arith.constant 0 : index
    %79 = vector.load %arg17[%c0_52, %c0_53] : memref<8x32xbf16, #tpu.memory_space<vmem>>, vector<8x32xbf16>
    %c0_54 = arith.constant 0 : index
    %c0_55 = arith.constant 0 : index
    %80 = vector.load %arg9[%c0_54, %c0_55] : memref<32x32xbf16, #tpu.memory_space<vmem>>, vector<32x32xbf16>
    %cst_56 = arith.constant dense<0.000000e+00> : vector<8x32xf32>
    %81 = tpu.matmul %79, %80, %cst_56 {dimension_numbers = #tpu.dot_dimension_numbers<[1], [0], [0], [1], [0, 0, 1, 1], [], []>} : vector<8x32xbf16>, vector<32x32xbf16>, vector<8x32xf32> -> vector<8x32xf32>
    %c0_57 = arith.constant 0 : index
    %c0_58 = arith.constant 0 : index
    %82 = vector.load %arg10[%c0_57, %c0_58] : memref<1x32xf32, #tpu.memory_space<vmem>>, vector<1x32xf32>
    %83 = vector.broadcast %82 : vector<1x32xf32> to vector<8x32xf32>
    %84 = arith.addf %81, %83 : vector<8x32xf32>
    %85 = arith.extf %1 : vector<8x32xbf16> to vector<8x32xf32>
    %86 = arith.addf %84, %85 : vector<8x32xf32>
    %cst_59 = arith.constant dense<0.000000e+00> : vector<8xf32>
    %87 = vector.multi_reduction <add>, %86, %cst_59 [1] : vector<8x32xf32> to vector<8xf32>
    %88 = vector.shape_cast %87 : vector<8xf32> to vector<8x1xf32>
    %cst_60 = arith.constant 3.200000e+01 : f32
    %89 = vector.broadcast %cst_60 : f32 to vector<8x1xf32>
    %90 = arith.divf %88, %89 : vector<8x1xf32>
    %91 = arith.mulf %86, %86 : vector<8x32xf32>
    %cst_61 = arith.constant dense<0.000000e+00> : vector<8xf32>
    %92 = vector.multi_reduction <add>, %91, %cst_61 [1] : vector<8x32xf32> to vector<8xf32>
    %93 = vector.shape_cast %92 : vector<8xf32> to vector<8x1xf32>
    %cst_62 = arith.constant 3.200000e+01 : f32
    %94 = vector.broadcast %cst_62 : f32 to vector<8x1xf32>
    %95 = arith.divf %93, %94 : vector<8x1xf32>
    %96 = arith.mulf %90, %90 : vector<8x1xf32>
    %97 = arith.subf %95, %96 : vector<8x1xf32>
    %98 = vector.broadcast %90 : vector<8x1xf32> to vector<8x32xf32>
    %99 = arith.subf %86, %98 : vector<8x32xf32>
    %cst_63 = arith.constant 9.99999974E-6 : f32
    %100 = vector.broadcast %cst_63 : f32 to vector<8x1xf32>
    %101 = arith.addf %97, %100 : vector<8x1xf32>
    %102 = math.rsqrt %101 : vector<8x1xf32>
    %103 = vector.broadcast %102 : vector<8x1xf32> to vector<8x32xf32>
    %104 = arith.mulf %99, %103 : vector<8x32xf32>
    %c0_64 = arith.constant 0 : index
    %c0_65 = arith.constant 0 : index
    %105 = vector.load %arg11[%c0_64, %c0_65] : memref<1x32xf32, #tpu.memory_space<vmem>>, vector<1x32xf32>
    %106 = vector.broadcast %105 : vector<1x32xf32> to vector<8x32xf32>
    %107 = arith.mulf %104, %106 : vector<8x32xf32>
    %c0_66 = arith.constant 0 : index
    %c0_67 = arith.constant 0 : index
    %108 = vector.load %arg12[%c0_66, %c0_67] : memref<1x32xf32, #tpu.memory_space<vmem>>, vector<1x32xf32>
    %109 = vector.broadcast %108 : vector<1x32xf32> to vector<8x32xf32>
    %110 = arith.addf %107, %109 : vector<8x32xf32>
    %111 = arith.truncf %110 : vector<8x32xf32> to vector<8x32xbf16>
    %c0_68 = arith.constant 0 : index
    %c0_69 = arith.constant 0 : index
    %c0_70 = arith.constant 0 : index
    %112 = vector.load %arg13[%c0_68, %c0_69, %c0_70] : memref<1x8x32xbf16, #tpu.memory_space<vmem>>, vector<1x8x32xbf16>
    %113 = vector.shape_cast %112 : vector<1x8x32xbf16> to vector<8x32xbf16>
    %114 = vector.shape_cast %111 : vector<8x32xbf16> to vector<1x8x32xbf16>
    tpu.vector_store %arg13[%c0_68, %c0_69, %c0_70], %114 {strides = array<i32>} : memref<1x8x32xbf16, #tpu.memory_space<vmem>>, vector<1x8x32xbf16>,
    return
  }
  func.func @transform_0(%arg0: i32, %arg1: i32) -> (i32, i32, i32) {
    %c0_i32 = arith.constant 0 : i32
    %c0_i32_0 = arith.constant 0 : i32
    return %arg0, %arg1, %c0_i32 : i32, i32, i32
  }
  func.func @transform_1(%arg0: i32, %arg1: i32) -> (i32, i32, i32) {
    %c0_i32 = arith.constant 0 : i32
    %c0_i32_0 = arith.constant 0 : i32
    %c0_i32_1 = arith.constant 0 : i32
    return %arg0, %c0_i32, %c0_i32_0 : i32, i32, i32
  }
  func.func @transform_2(%arg0: i32, %arg1: i32) -> (i32, i32, i32) {
    %c0_i32 = arith.constant 0 : i32
    %c0_i32_0 = arith.constant 0 : i32
    %c0_i32_1 = arith.constant 0 : i32
    return %arg0, %c0_i32, %c0_i32_0 : i32, i32, i32
  }
  func.func @transform_3(%arg0: i32, %arg1: i32) -> (i32, i32) {
    %c0_i32 = arith.constant 0 : i32
    %c0_i32_0 = arith.constant 0 : i32
    %c0_i32_1 = arith.constant 0 : i32
    return %c0_i32, %c0_i32_0 : i32, i32
  }
  func.func @transform_4(%arg0: i32, %arg1: i32) -> (i32, i32) {
    %c0_i32 = arith.constant 0 : i32
    %c0_i32_0 = arith.constant 0 : i32
    %c0_i32_1 = arith.constant 0 : i32
    return %c0_i32, %c0_i32_0 : i32, i32
  }
  func.func @transform_5(%arg0: i32, %arg1: i32) -> (i32, i32) {
    %c0_i32 = arith.constant 0 : i32
    %c0_i32_0 = arith.constant 0 : i32
    %c0_i32_1 = arith.constant 0 : i32
    return %c0_i32, %c0_i32_0 : i32, i32
  }
  func.func @transform_6(%arg0: i32, %arg1: i32) -> (i32, i32) {
    %c0_i32 = arith.constant 0 : i32
    %c0_i32_0 = arith.constant 0 : i32
    %c0_i32_1 = arith.constant 0 : i32
    return %c0_i32, %c0_i32_0 : i32, i32
  }
  func.func @transform_7(%arg0: i32, %arg1: i32) -> (i32, i32) {
    %c0_i32 = arith.constant 0 : i32
    %c0_i32_0 = arith.constant 0 : i32
    %c0_i32_1 = arith.constant 0 : i32
    return %c0_i32, %c0_i32_0 : i32, i32
  }
  func.func @transform_8(%arg0: i32, %arg1: i32) -> (i32, i32) {
    %c0_i32 = arith.constant 0 : i32
    %c0_i32_0 = arith.constant 0 : i32
    %c0_i32_1 = arith.constant 0 : i32
    return %c0_i32, %c0_i32_0 : i32, i32
  }
  func.func @transform_9(%arg0: i32, %arg1: i32) -> (i32, i32) {
    %c0_i32 = arith.constant 0 : i32
    %c0_i32_0 = arith.constant 0 : i32
    %c0_i32_1 = arith.constant 0 : i32
    return %c0_i32, %c0_i32_0 : i32, i32
  }
  func.func @transform_10(%arg0: i32, %arg1: i32) -> (i32, i32) {
    %c0_i32 = arith.constant 0 : i32
    %c0_i32_0 = arith.constant 0 : i32
    %c0_i32_1 = arith.constant 0 : i32
    return %c0_i32, %c0_i32_0 : i32, i32
  }
  func.func @transform_11(%arg0: i32, %arg1: i32) -> (i32, i32, i32) {
    %c0_i32 = arith.constant 0 : i32
    %c0_i32_0 = arith.constant 0 : i32
    return %arg0, %arg1, %c0_i32 : i32, i32, i32
  }
}

module attributes {stable_mosaic.version = 11 : i64} {
  func.func @_linear_kernel(%arg0: i32, %arg1: i32, %arg2: i32, %arg3: memref<16x32xbf16, #tpu.memory_space<vmem>>, %arg4: memref<32x60xbf16, #tpu.memory_space<vmem>>, %arg5: memref<1x60xf32, #tpu.memory_space<vmem>>, %arg6: memref<16x60xf32, #tpu.memory_space<vmem>>, %arg7: memref<16x60xf32, #tpu.memory_space<vmem>>) attributes {dimension_semantics = [#tpu.dimension_semantics<parallel>, #tpu.dimension_semantics<parallel>, #tpu.dimension_semantics<arbitrary>], iteration_bounds = array<i64: 1, 1, 1>, scalar_prefetch = 0 : i64, scratch_operands = 1 : i64, tpu.core_type = #tpu.core_type<tc>, window_params = [{transform_indices = @transform_0, window_bounds = array<i64: 16, 32>}, {transform_indices = @transform_1, window_bounds = array<i64: 32, 60>}, {transform_indices = @transform_2, window_bounds = array<i64: 1, 60>}, {transform_indices = @transform_3, window_bounds = array<i64: 16, 60>}]} {
    %c0_i32 = arith.constant 0 : i32
    %0 = arith.cmpi eq, %arg2, %c0_i32 : i32
    %1 = arith.extui %0 : i1 to i32
    %c0_i32_0 = arith.constant 0 : i32
    %2 = arith.cmpi ne, %1, %c0_i32_0 : i32
    scf.if %2 {
      %cst_10 = arith.constant 0.000000e+00 : f32
      %12 = vector.broadcast %cst_10 : f32 to vector<16x60xf32>
      %c0_11 = arith.constant 0 : index
      %c0_12 = arith.constant 0 : index
      %13 = vector.load %arg7[%c0_11, %c0_12] : memref<16x60xf32, #tpu.memory_space<vmem>>, vector<16x60xf32>
      tpu.vector_store %arg7[%c0_11, %c0_12], %12 {strides = array<i32>} : memref<16x60xf32, #tpu.memory_space<vmem>>, vector<16x60xf32>,
    } else {
    }
    %c0 = arith.constant 0 : index
    %c0_1 = arith.constant 0 : index
    %3 = vector.load %arg7[%c0, %c0_1] : memref<16x60xf32, #tpu.memory_space<vmem>>, vector<16x60xf32>
    %c0_2 = arith.constant 0 : index
    %c0_3 = arith.constant 0 : index
    %4 = vector.load %arg3[%c0_2, %c0_3] : memref<16x32xbf16, #tpu.memory_space<vmem>>, vector<16x32xbf16>
    %c0_4 = arith.constant 0 : index
    %c0_5 = arith.constant 0 : index
    %5 = vector.load %arg4[%c0_4, %c0_5] : memref<32x60xbf16, #tpu.memory_space<vmem>>, vector<32x60xbf16>
    %cst = arith.constant dense<0.000000e+00> : vector<16x60xf32>
    %6 = tpu.matmul %4, %5, %cst {dimension_numbers = #tpu.dot_dimension_numbers<[1], [0], [0], [1], [0, 0, 1, 1], [], []>} : vector<16x32xbf16>, vector<32x60xbf16>, vector<16x60xf32> -> vector<16x60xf32>
    %7 = arith.addf %3, %6 : vector<16x60xf32>
    %c0_6 = arith.constant 0 : index
    %c0_7 = arith.constant 0 : index
    %8 = vector.load %arg7[%c0_6, %c0_7] : memref<16x60xf32, #tpu.memory_space<vmem>>, vector<16x60xf32>
    tpu.vector_store %arg7[%c0_6, %c0_7], %7 {strides = array<i32>} : memref<16x60xf32, #tpu.memory_space<vmem>>, vector<16x60xf32>,
    %c0_i32_8 = arith.constant 0 : i32
    %9 = arith.cmpi eq, %arg2, %c0_i32_8 : i32
    %10 = arith.extui %9 : i1 to i32
    %c0_i32_9 = arith.constant 0 : i32
    %11 = arith.cmpi ne, %10, %c0_i32_9 : i32
    scf.if %11 {
      %c0_10 = arith.constant 0 : index
      %c0_11 = arith.constant 0 : index
      %12 = vector.load %arg7[%c0_10, %c0_11] : memref<16x60xf32, #tpu.memory_space<vmem>>, vector<16x60xf32>
      %c0_12 = arith.constant 0 : index
      %c0_13 = arith.constant 0 : index
      %13 = vector.load %arg5[%c0_12, %c0_13] : memref<1x60xf32, #tpu.memory_space<vmem>>, vector<1x60xf32>
      %14 = vector.broadcast %13 : vector<1x60xf32> to vector<16x60xf32>
      %15 = arith.addf %12, %14 : vector<16x60xf32>
      %c0_14 = arith.constant 0 : index
      %c0_15 = arith.constant 0 : index
      %16 = vector.load %arg6[%c0_14, %c0_15] : memref<16x60xf32, #tpu.memory_space<vmem>>, vector<16x60xf32>
      tpu.vector_store %arg6[%c0_14, %c0_15], %15 {strides = array<i32>} : memref<16x60xf32, #tpu.memory_space<vmem>>, vector<16x60xf32>,
    } else {
    }
    return
  }
  func.func @transform_0(%arg0: i32, %arg1: i32, %arg2: i32) -> (i32, i32) {
    %c0_i32 = arith.constant 0 : i32
    return %arg0, %arg2 : i32, i32
  }
  func.func @transform_1(%arg0: i32, %arg1: i32, %arg2: i32) -> (i32, i32) {
    %c0_i32 = arith.constant 0 : i32
    return %arg2, %arg1 : i32, i32
  }
  func.func @transform_2(%arg0: i32, %arg1: i32, %arg2: i32) -> (i32, i32) {
    %c0_i32 = arith.constant 0 : i32
    %c0_i32_0 = arith.constant 0 : i32
    return %c0_i32, %arg1 : i32, i32
  }
  func.func @transform_3(%arg0: i32, %arg1: i32, %arg2: i32) -> (i32, i32) {
    %c0_i32 = arith.constant 0 : i32
    return %arg0, %arg1 : i32, i32
  }
}

</mosaic_0001>

<llo_original>
// kernel: _lambda_.20
$region0: #{_lambda_.20}
  #allocation0 [shape = 'u32[]', space=smem, size = 0x4, offset = 0x4, fixed_abs, tag = 'smem constant byte address 0x4 - core index']
  #allocation1 [shape = 'u32[144,128]{1,0:T(1,128)}', space=vmem, size = 0x12000, scoped, tag = 'internal scratch']
  #allocation2 [shape = 'f32[16,32]{1,0:T(8,128)}', space=vmem, size = 0x2000, scoped, tag = 'scratch operand']
  %s0 = inlined_call_operand.hbm [shape: bf16[16,64], index: 0, kind: input, shape index: {}]
  %s1 = inlined_call_operand.hbm [shape: bf16[64,32], index: 1, kind: input, shape index: {}]
  %s2 = inlined_call_operand.hbm [shape: f32[1,32], index: 2, kind: input, shape index: {}, may-alias: {2,5}]
  %s3 = inlined_call_operand.hbm [shape: bf16[16,32], index: 3, kind: input, shape index: {}]
  %s4 = inlined_call_operand.hbm [shape: f32[1,32], index: 4, kind: input, shape index: {}]
  %s5 = inlined_call_operand.hbm [shape: f32[1,32], index: 5, kind: input, shape index: {}, may-alias: {2,5}]
  %s6 = inlined_call_operand.hbm [shape: bf16[16,32], index: 6, kind: output, shape index: {}]
  %s7 = sld [smem:[#allocation0]]
  $region66: #{_lambda_.20} parent=0
    _
  %s9 = ssub.s32 1, %s7
  %s10 = scalar_select 0, %s9, %s7
  $region1: #{_lambda_.20} parent=0
    #allocation3 [shape = 'u8[4096]{0}', space=vmem, size = 0x1000, scoped, tag = 'input window, operand 0, single buffered']
    #allocation4 [shape = 's32[1]{0}', space=sflag, size = 0x4, scoped, tag = 'scoped memory for _lambda_.20']
    #allocation5 [shape = 's32[1]{0}', space=sflag, size = 0x4, scoped, tag = 'scoped memory for _lambda_.20']
    #allocation6 [shape = 'u8[16384]{0}', space=vmem, size = 0x4000, scoped, tag = 'input window, operand 1, single buffered']
    #allocation7 [shape = 's32[1]{0}', space=sflag, size = 0x4, scoped, tag = 'scoped memory for _lambda_.20']
    #allocation8 [shape = 'u8[512]{0}', space=vmem, size = 0x400, scoped, tag = 'input window, operand 2, single buffered']
    #allocation9 [shape = 'u8[4096]{0}', space=vmem, size = 0x1000, scoped, tag = 'input window, operand 3, single buffered']
    #allocation10 [shape = 's32[1]{0}', space=sflag, size = 0x4, scoped, tag = 'scoped memory for _lambda_.20']
    #allocation11 [shape = 'u8[512]{0}', space=vmem, size = 0x400, scoped, tag = 'input window, operand 4, single buffered']
    #allocation12 [shape = 'u8[512]{0}', space=vmem, size = 0x400, scoped, tag = 'input window, operand 5, single buffered']
    #allocation13 [shape = 's32[1]{0}', space=sflag, size = 0x4, scoped, tag = 'scoped memory for _lambda_.20']
    #allocation14 [shape = 'u8[4096]{0}', space=vmem, size = 0x1000, scoped, tag = 'output window, operand 0, single buffered']
    %11 = vsyncpa [#allocation4], 0
    %12 = vsyncpa [#allocation7], 0
    %13 = vsyncpa [#allocation10], 0
    %14 = vsyncpa [#allocation13], 0
    %15 = vsyncpa [#allocation5], 0
    // Predicated region
    $region2: #{_lambda_.20} parent=1 // pred_check
      _
    $region3: #{_lambda_.20} parent=1 // pred_check_branch
      %17 = sbr.rel (0) target = $region5
    $region4: #{_lambda_.20} parent=1 // pred_region
      %s19 = ssub.s32 128, 128
      %20 = vsyncadd [#allocation4], %s19
      %s21 = sshll.u32 [#allocation3], 4
      %s22 = int_to_ptr.vmem [resolvable:$true] %s21
      %27 = dma.hbm_to_vmem [thread:$0]  %s0, 128, %s22, [#allocation4], 64, 64, 4
    $region5: #{_lambda_.20} parent=1 // pred_fallthru
      _
    // Predicated region
    $region6: #{_lambda_.20} parent=1 // pred_check
      _
    $region7: #{_lambda_.20} parent=1 // pred_check_branch
      %29 = sbr.rel (0) target = $region9
    $region8: #{_lambda_.20} parent=1 // pred_region
      %s31 = ssub.s32 512, 512
      %32 = vsyncadd [#allocation7], %s31
      %s33 = sshll.u32 [#allocation6], 4
      %s34 = int_to_ptr.vmem [resolvable:$true] %s33
      %39 = dma.hbm_to_vmem [thread:$0]  %s1, 512, %s34, [#allocation7], 64, 64, 4
    $region9: #{_lambda_.20} parent=1 // pred_fallthru
      _
    // Predicated region
    $region10: #{_lambda_.20} parent=1 // pred_check
      _
    $region11: #{_lambda_.20} parent=1 // pred_check_branch
      %41 = sbr.rel (0) target = $region13
    $region12: #{_lambda_.20} parent=1 // pred_region
      %s43 = ssub.s32 16, 16
      %44 = vsyncadd [#allocation7], %s43
      %s46 = sshll.u32 [#allocation8], 4
      %s47 = int_to_ptr.vmem [resolvable:$true] %s46
      %49 = dma.hbm_to_vmem [thread:$0]  %s2, 16, %s47, [#allocation7]
    $region13: #{_lambda_.20} parent=1 // pred_fallthru
      _
    // Predicated region
    $region14: #{_lambda_.20} parent=1 // pred_check
      _
    $region15: #{_lambda_.20} parent=1 // pred_check_branch
      %51 = sbr.rel (0) target = $region17
    $region16: #{_lambda_.20} parent=1 // pred_region
      %s53 = ssub.s32 128, 128
      %54 = vsyncadd [#allocation10], %s53
      %s55 = sshll.u32 [#allocation9], 4
      %s56 = int_to_ptr.vmem [resolvable:$true] %s55
      %61 = dma.hbm_to_vmem [thread:$0]  %s3, 128, %s56, [#allocation10], 64, 64, 4
    $region17: #{_lambda_.20} parent=1 // pred_fallthru
      _
    // Predicated region
    $region18: #{_lambda_.20} parent=1 // pred_check
      _
    $region19: #{_lambda_.20} parent=1 // pred_check_branch
      %63 = sbr.rel (0) target = $region21
    $region20: #{_lambda_.20} parent=1 // pred_region
      %s65 = ssub.s32 16, 16
      %66 = vsyncadd [#allocation10], %s65
      %s68 = sshll.u32 [#allocation11], 4
      %s69 = int_to_ptr.vmem [resolvable:$true] %s68
      %71 = dma.hbm_to_vmem [thread:$0]  %s4, 16, %s69, [#allocation10]
    $region21: #{_lambda_.20} parent=1 // pred_fallthru
      _
    // Predicated region
    $region22: #{_lambda_.20} parent=1 // pred_check
      _
    $region23: #{_lambda_.20} parent=1 // pred_check_branch
      %73 = sbr.rel (0) target = $region25
    $region24: #{_lambda_.20} parent=1 // pred_region
      %s75 = ssub.s32 16, 16
      %76 = vsyncadd [#allocation13], %s75
      %s78 = sshll.u32 [#allocation12], 4
      %s79 = int_to_ptr.vmem [resolvable:$true] %s78
      %81 = dma.hbm_to_vmem [thread:$0]  %s5, 16, %s79, [#allocation13]
    $region25: #{_lambda_.20} parent=1 // pred_fallthru
      _
    // Predicated region
    $region26: #{_lambda_.20} parent=1 // pred_check
      _
    $region27: #{_lambda_.20} parent=1 // pred_check_branch
      %83 = sbr.rel (0) target = $region29
    $region28: #{_lambda_.20} parent=1 // pred_region
      %84 = dma.done [#allocation4], 128
    $region29: #{_lambda_.20} parent=1 // pred_fallthru
      _
    // Predicated region
    $region30: #{_lambda_.20} parent=1 // pred_check
      _
    $region31: #{_lambda_.20} parent=1 // pred_check_branch
      %86 = sbr.rel (0) target = $region33
    $region32: #{_lambda_.20} parent=1 // pred_region
      %87 = dma.done [#allocation7], 512
    $region33: #{_lambda_.20} parent=1 // pred_fallthru
      _
    // Predicated region
    $region34: #{_lambda_.20} parent=1 // pred_check
      _
    $region35: #{_lambda_.20} parent=1 // pred_check_branch
      %89 = sbr.rel (0) target = $region37
    $region36: #{_lambda_.20} parent=1 // pred_region
      %90 = dma.done [#allocation7], 16
    $region37: #{_lambda_.20} parent=1 // pred_fallthru
      _
    // Predicated region
    $region38: #{_lambda_.20} parent=1 // pred_check
      _
    $region39: #{_lambda_.20} parent=1 // pred_check_branch
      %92 = sbr.rel (0) target = $region41
    $region40: #{_lambda_.20} parent=1 // pred_region
      %93 = dma.done [#allocation10], 128
    $region41: #{_lambda_.20} parent=1 // pred_fallthru
      _
    // Predicated region
    $region42: #{_lambda_.20} parent=1 // pred_check
      _
    $region43: #{_lambda_.20} parent=1 // pred_check_branch
      %95 = sbr.rel (0) target = $region45
    $region44: #{_lambda_.20} parent=1 // pred_region
      %96 = dma.done [#allocation10], 16
    $region45: #{_lambda_.20} parent=1 // pred_fallthru
      _
    // Predicated region
    $region46: #{_lambda_.20} parent=1 // pred_check
      _
    $region47: #{_lambda_.20} parent=1 // pred_check_branch
      %98 = sbr.rel (0) target = $region49
    $region48: #{_lambda_.20} parent=1 // pred_region
      %99 = dma.done [#allocation13], 16
    $region49: #{_lambda_.20} parent=1 // pred_fallthru
      _
    %p101 = scmp.eq.s32.totalorder 0, 0
    // Predicated region
    $region50: #{_lambda_.20} parent=1 // pred_check
      %p102 = pneg %p101
    $region51: #{_lambda_.20} parent=1 // pred_check_branch
      %104 = sbr.rel (%p102) target = $region53
    $region52: #{_lambda_.20} parent=1 // pred_region
      %vm105 = vcmask 261120
      %106 = vst.msk [vmem:[#allocation2] sm:$0xff] %vm105, 0.0
      %107 = vst.msk [vmem:[#allocation2 + $0x8] sm:$0xff] %vm105, 0.0
    $region53: #{_lambda_.20} parent=1 // pred_fallthru
      _
    %v108 = vld [vmem:[#allocation2] sm:$0xff]
    %v109 = vld [vmem:[#allocation2 + $0x8] sm:$0xff]
    %v110 = vld [vmem:[#allocation3] sm:$0xf]
    %v111 = vld [vmem:[#allocation3 + $0x4] sm:$0xf]
    %v112 = vld [vmem:[#allocation6] sm:$0xf]
    %v113 = vld [vmem:[#allocation6 + $0x4] sm:$0xf]
    %v114 = vld [vmem:[#allocation6 + $0x8] sm:$0xf]
    %v115 = vld [vmem:[#allocation6 + $0xc] sm:$0xf]
    %v116 = vld [vmem:[#allocation6 + $0x10] sm:$0xf]
    %v117 = vld [vmem:[#allocation6 + $0x14] sm:$0xf]
    %v118 = vld [vmem:[#allocation6 + $0x18] sm:$0xf]
    %v119 = vld [vmem:[#allocation6 + $0x1c] sm:$0xf]
    %v122 = vunpack.c.l.b16 %v110
    %v123 = vunpack.c.l.b16 %v111
    %v124 = vpack.c.b16 %v123, %v122
    %v133 = vunpack.c.l.b16 %v112
    %v134 = vunpack.c.l.b16 %v113
    %v135 = vunpack.c.l.b16 %v114
    %v136 = vunpack.c.l.b16 %v115
    %v137 = vunpack.c.l.b16 %v116
    %v138 = vunpack.c.l.b16 %v117
    %v139 = vunpack.c.l.b16 %v118
    %v140 = vunpack.c.l.b16 %v119
    %v141 = vpack.c.b16 %v134, %v133
    %v142 = vpack.c.b16 %v136, %v135
    %v143 = vpack.c.b16 %v138, %v137
    %v144 = vpack.c.b16 %v140, %v139
    %vm149 = vcmask 523264
    %v151 = vsel %vm149, %v124, 0
    %153 = vmatprep.subr.bf16.mxu0 0
    %154 = vmatpush1.bf16.msra.mxu0 %v141
    %155 = vmatprep.subr.bf16.mxu0 0
    %156 = vmatpush1.bf16.msra.mxu0 %v142
    %157 = vmatprep.subr.bf16.mxu0 0
    %158 = vmatpush1.bf16.msra.mxu0 %v143
    %159 = vmatprep.subr.bf16.mxu0 0
    %160 = vmatpush1.bf16.msra.mxu0 %v144
    %161 = vmatprep.subr.bf16.mxu0 0
    %162 = vmatpush1.bf16.msra.mxu0 0
    %163 = vmatprep.subr.bf16.mxu0 0
    %164 = vmatpush1.bf16.msra.mxu0 0
    %165 = vmatprep.subr.bf16.mxu0 0
    %166 = vmatpush1.bf16.msra.mxu0 0
    %167 = vmatprep.subr.bf16.mxu0 0
    %168 = vmatpush1.bf16.msra.mxu0 0
    %169 = vmatprep.subr.bf16.mxu0 0
    %170 = vmatpush1.bf16.msra.mxu0 0
    %171 = vmatprep.subr.bf16.mxu0 0
    %172 = vmatpush1.bf16.msra.mxu0 0
    %173 = vmatprep.subr.bf16.mxu0 0
    %174 = vmatpush1.bf16.msra.mxu0 0
    %175 = vmatprep.subr.bf16.mxu0 0
    %176 = vmatpush1.bf16.msra.mxu0 0
    %177 = vmatprep.subr.bf16.mxu0 0
    %178 = vmatpush1.bf16.msra.mxu0 0
    %179 = vmatprep.subr.bf16.mxu0 0
    %180 = vmatpush1.bf16.msra.mxu0 0
    %181 = vmatprep.subr.bf16.mxu0 0
    %182 = vmatpush1.bf16.msra.mxu0 0
    %183 = vmatprep.subr.bf16.mxu0 0
    %184 = vmatpush1.bf16.msra.mxu0 0
    %185 = vmatprep.mubr.bf16.mxu0 0
    %186 = vmatmul.mubr.bf16.gmra.mrb[0].mxu0 %v151
    %v187 = vpop.f32.mrb[0].mxu0
    %v188 = vadd.f32 0.0, %v187
    %v189 = vpop.f32.mrb[0].mxu0
    %v190 = vpop.f32.mrb[0].mxu0
    %v191 = vadd.f32 0.0, %v190
    %v192 = vpop.f32.mrb[0].mxu0
    %193 = vdwg.mxu0
    %v194 = vadd.f32 %v108, %v188
    %v195 = vadd.f32 %v109, %v191
    %vm196 = vcmask 261120
    %197 = vst.msk [vmem:[#allocation2] sm:$0xff] %vm196, %v194
    %198 = vst.msk [vmem:[#allocation2 + $0x8] sm:$0xff] %vm196, %v195
    // Predicated region
    $region54: #{_lambda_.20} parent=1 // pred_check
      %p199 = pneg %p101
    $region55: #{_lambda_.20} parent=1 // pred_check_branch
      %201 = sbr.rel (%p199) target = $region57
    $region56: #{_lambda_.20} parent=1 // pred_region
      %v202 = vld [vmem:[#allocation2] sm:$0xff]
      %v203 = vld [vmem:[#allocation2 + $0x8] sm:$0xff]
      %v204 = vld [vmem:[#allocation8] sm:$0x1]
      %v206 = vlaneseq
      %v207 = vshrl.u32 %v206, 7
      %v208 = vsub.s32 0, %v207
      %v209 = vrot.slane %v204, %v208
      %v211 = vadd.f32 %v202, %v209
      %v212 = vadd.f32 %v203, %v209
      %v213 = vld [vmem:[#allocation9] sm:$0xf]
      %v214 = vld [vmem:[#allocation9 + $0x4] sm:$0xf]
      %v215 = vunpack.c.l.bf16 %v213
      %v216 = vunpack.c.l.bf16 %v214
      %v217 = vadd.f32 %v211, %v215
      %v218 = vadd.f32 %v212, %v216
      %v219 = vsel %vm196, %v217, 0.0
      %220 = vadd.xlane.f32.xlu0 %v219
      %v221 = vpop.xlane.xlu0 %220
      %v222 = vsel %vm196, %v218, 0.0
      %223 = vadd.xlane.f32.xlu0 %v222
      %v224 = vpop.xlane.xlu0 %223
      %v225 = vrcp.pop 32.0
      %v226 = vmul.f32 %v221, %v225
      %v227 = vmul.f32 %v224, %v225
      %v228 = vmul.f32 %v217, %v217
      %v229 = vmul.f32 %v218, %v218
      %v230 = vsel %vm196, %v228, 0.0
      %231 = vadd.xlane.f32.xlu0 %v230
      %v232 = vpop.xlane.xlu0 %231
      %v233 = vsel %vm196, %v229, 0.0
      %234 = vadd.xlane.f32.xlu0 %v233
      %v235 = vpop.xlane.xlu0 %234
      %v236 = vmul.f32 %v232, %v225
      %v237 = vmul.f32 %v235, %v225
      %v238 = vmul.f32 %v226, %v226
      %v239 = vmul.f32 %v227, %v227
      %v240 = vsub.f32 %v236, %v238
      %v241 = vsub.f32 %v237, %v239
      %v242 = vsub.f32 %v217, %v226
      %v243 = vsub.f32 %v218, %v227
      %v244 = vadd.f32 %v240, 1e-05
      %v245 = vadd.f32 %v241, 1e-05
      %v246 = vrsqrt.pop %v244
      %v247 = vrsqrt.pop %v245
      %v248 = vmul.f32 %v242, %v246
      %v249 = vmul.f32 %v243, %v247
      %v250 = vld [vmem:[#allocation11] sm:$0x1]
      %v252 = vlaneseq
      %v253 = vshrl.u32 %v252, 7
      %v254 = vsub.s32 0, %v253
      %v255 = vrot.slane %v250, %v254
      %v257 = vmul.f32 %v248, %v255
      %v258 = vmul.f32 %v249, %v255
      %v259 = vld [vmem:[#allocation12] sm:$0x1]
      %v261 = vlaneseq
      %v262 = vshrl.u32 %v261, 7
      %v263 = vsub.s32 0, %v262
      %v264 = vrot.slane %v259, %v263
      %v266 = vadd.f32 %v257, %v264
      %v267 = vadd.f32 %v258, %v264
      %v268 = vpack.c.bf16 %v267, %v266
      %v270 = vunpack.c.l.b16 %v268
      %v271 = vunpack.c.h.b16 %v268
      %v272 = vpack.c.b16 %v270, %v270
      %v273 = vpack.c.b16 %v271, %v271
      %vm276 = vcmask 257024
      %277 = vst.msk [vmem:[#allocation14] sm:$0xf] %vm276, %v272
      %278 = vst.msk [vmem:[#allocation14 + $0x4] sm:$0xf] %vm276, %v273
    $region57: #{_lambda_.20} parent=1 // pred_fallthru
      _
    // Predicated region
    $region58: #{_lambda_.20} parent=1 // pred_check
      _
    $region59: #{_lambda_.20} parent=1 // pred_check_branch
      %280 = sbr.rel (0) target = $region61
    $region60: #{_lambda_.20} parent=1 // pred_region
      %s282 = ssub.s32 128, 128
      %283 = vsyncadd [#allocation5], %s282
      %s284 = sshll.u32 [#allocation14], 4
      %s285 = int_to_ptr.vmem [resolvable:$true] %s284
      %290 = dma.vmem_to_hbm [thread:$0]  %s285, 128, %s6, [#allocation5], 64, 64, 4
    $region61: #{_lambda_.20} parent=1 // pred_fallthru
      _
    // Predicated region
    $region62: #{_lambda_.20} parent=1 // pred_check
      _
    $region63: #{_lambda_.20} parent=1 // pred_check_branch
      %292 = sbr.rel (0) target = $region65
    $region64: #{_lambda_.20} parent=1 // pred_region
      %293 = dma.done [#allocation5], 128
    $region65: #{_lambda_.20} parent=1 // pred_fallthru
      _
    %294 = vsyncpa [#allocation4], 1
    %295 = vsyncpa [#allocation7], 1
    %296 = vsyncpa [#allocation10], 1
    %297 = vsyncpa [#allocation13], 1
    %298 = vsyncpa [#allocation5], 1

// kernel: _lambda_.19
$region0: #{_lambda_.19}
  #allocation0 [shape = 'u32[]', space=smem, size = 0x4, offset = 0x4, fixed_abs, tag = 'smem constant byte address 0x4 - core index']
  #allocation1 [shape = 'u32[144,128]{1,0:T(1,128)}', space=vmem, size = 0x12000, scoped, tag = 'internal scratch']
  #allocation2 [shape = 'f32[16,64]{1,0:T(8,128)}', space=vmem, size = 0x2000, scoped, tag = 'scratch operand']
  %s0 = inlined_call_operand.hbm [shape: bf16[16,32], index: 0, kind: input, shape index: {}]
  %s1 = inlined_call_operand.hbm [shape: bf16[32,64], index: 1, kind: input, shape index: {}]
  %s2 = inlined_call_operand.hbm [shape: f32[1,64], index: 2, kind: input, shape index: {}]
  %s3 = inlined_call_operand.hbm [shape: bf16[16,64], index: 3, kind: output, shape index: {}]
  %s4 = sld [smem:[#allocation0]]
  $region42: #{_lambda_.19} parent=0
    _
  %s6 = ssub.s32 1, %s4
  %s7 = scalar_select 0, %s6, %s4
  $region1: #{_lambda_.19} parent=0
    #allocation3 [shape = 'u8[4096]{0}', space=vmem, size = 0x1000, scoped, tag = 'input window, operand 0, single buffered']
    #allocation4 [shape = 's32[1]{0}', space=sflag, size = 0x4, scoped, tag = 'scoped memory for _lambda_.19']
    #allocation5 [shape = 's32[1]{0}', space=sflag, size = 0x4, scoped, tag = 'scoped memory for _lambda_.19']
    #allocation6 [shape = 'u8[8192]{0}', space=vmem, size = 0x2000, scoped, tag = 'input window, operand 1, single buffered']
    #allocation7 [shape = 's32[1]{0}', space=sflag, size = 0x4, scoped, tag = 'scoped memory for _lambda_.19']
    #allocation8 [shape = 'u8[512]{0}', space=vmem, size = 0x400, scoped, tag = 'input window, operand 2, single buffered']
    #allocation9 [shape = 'u8[4096]{0}', space=vmem, size = 0x1000, scoped, tag = 'output window, operand 0, single buffered']
    %8 = vsyncpa [#allocation4], 0
    %9 = vsyncpa [#allocation7], 0
    %10 = vsyncpa [#allocation5], 0
    // Predicated region
    $region2: #{_lambda_.19} parent=1 // pred_check
      _
    $region3: #{_lambda_.19} parent=1 // pred_check_branch
      %12 = sbr.rel (0) target = $region5
    $region4: #{_lambda_.19} parent=1 // pred_region
      %s14 = ssub.s32 128, 128
      %15 = vsyncadd [#allocation4], %s14
      %s16 = sshll.u32 [#allocation3], 4
      %s17 = int_to_ptr.vmem [resolvable:$true] %s16
      %22 = dma.hbm_to_vmem [thread:$0]  %s0, 128, %s17, [#allocation4], 64, 64, 4
    $region5: #{_lambda_.19} parent=1 // pred_fallthru
      _
    // Predicated region
    $region6: #{_lambda_.19} parent=1 // pred_check
      _
    $region7: #{_lambda_.19} parent=1 // pred_check_branch
      %24 = sbr.rel (0) target = $region9
    $region8: #{_lambda_.19} parent=1 // pred_region
      %s26 = ssub.s32 256, 256
      %27 = vsyncadd [#allocation7], %s26
      %s28 = sshll.u32 [#allocation6], 4
      %s29 = int_to_ptr.vmem [resolvable:$true] %s28
      %34 = dma.hbm_to_vmem [thread:$0]  %s1, 256, %s29, [#allocation7], 64, 64, 4
    $region9: #{_lambda_.19} parent=1 // pred_fallthru
      _
    // Predicated region
    $region10: #{_lambda_.19} parent=1 // pred_check
      _
    $region11: #{_lambda_.19} parent=1 // pred_check_branch
      %36 = sbr.rel (0) target = $region13
    $region12: #{_lambda_.19} parent=1 // pred_region
      %s38 = ssub.s32 16, 16
      %39 = vsyncadd [#allocation7], %s38
      %s41 = sshll.u32 [#allocation8], 4
      %s42 = int_to_ptr.vmem [resolvable:$true] %s41
      %44 = dma.hbm_to_vmem [thread:$0]  %s2, 16, %s42, [#allocation7]
    $region13: #{_lambda_.19} parent=1 // pred_fallthru
      _
    // Predicated region
    $region14: #{_lambda_.19} parent=1 // pred_check
      _
    $region15: #{_lambda_.19} parent=1 // pred_check_branch
      %46 = sbr.rel (0) target = $region17
    $region16: #{_lambda_.19} parent=1 // pred_region
      %47 = dma.done [#allocation4], 128
    $region17: #{_lambda_.19} parent=1 // pred_fallthru
      _
    // Predicated region
    $region18: #{_lambda_.19} parent=1 // pred_check
      _
    $region19: #{_lambda_.19} parent=1 // pred_check_branch
      %49 = sbr.rel (0) target = $region21
    $region20: #{_lambda_.19} parent=1 // pred_region
      %50 = dma.done [#allocation7], 256
    $region21: #{_lambda_.19} parent=1 // pred_fallthru
      _
    // Predicated region
    $region22: #{_lambda_.19} parent=1 // pred_check
      _
    $region23: #{_lambda_.19} parent=1 // pred_check_branch
      %52 = sbr.rel (0) target = $region25
    $region24: #{_lambda_.19} parent=1 // pred_region
      %53 = dma.done [#allocation7], 16
    $region25: #{_lambda_.19} parent=1 // pred_fallthru
      _
    %p55 = scmp.eq.s32.totalorder 0, 0
    // Predicated region
    $region26: #{_lambda_.19} parent=1 // pred_check
      %p56 = pneg %p55
    $region27: #{_lambda_.19} parent=1 // pred_check_branch
      %58 = sbr.rel (%p56) target = $region29
    $region28: #{_lambda_.19} parent=1 // pred_region
      %vm59 = vcmask 523264
      %60 = vst.msk [vmem:[#allocation2] sm:$0xff] %vm59, 0.0
      %61 = vst.msk [vmem:[#allocation2 + $0x8] sm:$0xff] %vm59, 0.0
    $region29: #{_lambda_.19} parent=1 // pred_fallthru
      _
    %v62 = vld [vmem:[#allocation2] sm:$0xff]
    %v63 = vld [vmem:[#allocation2 + $0x8] sm:$0xff]
    %v64 = vld [vmem:[#allocation3] sm:$0xf]
    %v65 = vld [vmem:[#allocation3 + $0x4] sm:$0xf]
    %v66 = vld [vmem:[#allocation6] sm:$0xf]
    %v67 = vld [vmem:[#allocation6 + $0x4] sm:$0xf]
    %v68 = vld [vmem:[#allocation6 + $0x8] sm:$0xf]
    %v69 = vld [vmem:[#allocation6 + $0xc] sm:$0xf]
    %v72 = vunpack.c.l.b16 %v64
    %v73 = vunpack.c.l.b16 %v65
    %v74 = vpack.c.b16 %v73, %v72
    %v79 = vunpack.c.l.b16 %v66
    %v80 = vunpack.c.l.b16 %v67
    %v81 = vunpack.c.l.b16 %v68
    %v82 = vunpack.c.l.b16 %v69
    %v83 = vpack.c.b16 %v80, %v79
    %v84 = vpack.c.b16 %v82, %v81
    %vm87 = vcmask 261120
    %v89 = vsel %vm87, %v74, 0
    %91 = vmatprep.subr.bf16.mxu0 0
    %92 = vmatpush1.bf16.msra.mxu0 %v83
    %93 = vmatprep.subr.bf16.mxu0 0
    %94 = vmatpush1.bf16.msra.mxu0 %v84
    %95 = vmatprep.subr.bf16.mxu0 0
    %96 = vmatpush1.bf16.msra.mxu0 0
    %97 = vmatprep.subr.bf16.mxu0 0
    %98 = vmatpush1.bf16.msra.mxu0 0
    %99 = vmatprep.subr.bf16.mxu0 0
    %100 = vmatpush1.bf16.msra.mxu0 0
    %101 = vmatprep.subr.bf16.mxu0 0
    %102 = vmatpush1.bf16.msra.mxu0 0
    %103 = vmatprep.subr.bf16.mxu0 0
    %104 = vmatpush1.bf16.msra.mxu0 0
    %105 = vmatprep.subr.bf16.mxu0 0
    %106 = vmatpush1.bf16.msra.mxu0 0
    %107 = vmatprep.subr.bf16.mxu0 0
    %108 = vmatpush1.bf16.msra.mxu0 0
    %109 = vmatprep.subr.bf16.mxu0 0
    %110 = vmatpush1.bf16.msra.mxu0 0
    %111 = vmatprep.subr.bf16.mxu0 0
    %112 = vmatpush1.bf16.msra.mxu0 0
    %113 = vmatprep.subr.bf16.mxu0 0
    %114 = vmatpush1.bf16.msra.mxu0 0
    %115 = vmatprep.subr.bf16.mxu0 0
    %116 = vmatpush1.bf16.msra.mxu0 0
    %117 = vmatprep.subr.bf16.mxu0 0
    %118 = vmatpush1.bf16.msra.mxu0 0
    %119 = vmatprep.subr.bf16.mxu0 0
    %120 = vmatpush1.bf16.msra.mxu0 0
    %121 = vmatprep.subr.bf16.mxu0 0
    %122 = vmatpush1.bf16.msra.mxu0 0
    %123 = vmatprep.mubr.bf16.mxu0 0
    %124 = vmatmul.mubr.bf16.gmra.mrb[0].mxu0 %v89
    %v125 = vpop.f32.mrb[0].mxu0
    %v126 = vadd.f32 0.0, %v125
    %v127 = vpop.f32.mrb[0].mxu0
    %v128 = vpop.f32.mrb[0].mxu0
    %v129 = vadd.f32 0.0, %v128
    %v130 = vpop.f32.mrb[0].mxu0
    %131 = vdwg.mxu0
    %v132 = vadd.f32 %v62, %v126
    %v133 = vadd.f32 %v63, %v129
    %vm134 = vcmask 523264
    %135 = vst.msk [vmem:[#allocation2] sm:$0xff] %vm134, %v132
    %136 = vst.msk [vmem:[#allocation2 + $0x8] sm:$0xff] %vm134, %v133
    // Predicated region
    $region30: #{_lambda_.19} parent=1 // pred_check
      %p137 = pneg %p55
    $region31: #{_lambda_.19} parent=1 // pred_check_branch
      %139 = sbr.rel (%p137) target = $region33
    $region32: #{_lambda_.19} parent=1 // pred_region
      %v140 = vld [vmem:[#allocation2] sm:$0xff]
      %v141 = vld [vmem:[#allocation2 + $0x8] sm:$0xff]
      %v142 = vld [vmem:[#allocation8] sm:$0x1]
      %v144 = vlaneseq
      %v145 = vshrl.u32 %v144, 7
      %v146 = vsub.s32 0, %v145
      %v147 = vrot.slane %v142, %v146
      %v149 = vadd.f32 %v140, %v147
      %v150 = vadd.f32 %v141, %v147
      %v151 = vmax.f32 %v149, 0.0
      %v152 = vmax.f32 %v150, 0.0
      %v153 = vpack.c.bf16 %v152, %v151
      %v155 = vunpack.c.l.b16 %v153
      %v156 = vunpack.c.h.b16 %v153
      %v157 = vpack.c.b16 %v155, %v155
      %v158 = vpack.c.b16 %v156, %v156
      %vm161 = vcmask 519168
      %162 = vst.msk [vmem:[#allocation9] sm:$0xf] %vm161, %v157
      %163 = vst.msk [vmem:[#allocation9 + $0x4] sm:$0xf] %vm161, %v158
    $region33: #{_lambda_.19} parent=1 // pred_fallthru
      _
    // Predicated region
    $region34: #{_lambda_.19} parent=1 // pred_check
      _
    $region35: #{_lambda_.19} parent=1 // pred_check_branch
      %165 = sbr.rel (0) target = $region37
    $region36: #{_lambda_.19} parent=1 // pred_region
      %s167 = ssub.s32 128, 128
      %168 = vsyncadd [#allocation5], %s167
      %s169 = sshll.u32 [#allocation9], 4
      %s170 = int_to_ptr.vmem [resolvable:$true] %s169
      %175 = dma.vmem_to_hbm [thread:$0]  %s170, 128, %s3, [#allocation5], 64, 64, 4
    $region37: #{_lambda_.19} parent=1 // pred_fallthru
      _
    // Predicated region
    $region38: #{_lambda_.19} parent=1 // pred_check
      _
    $region39: #{_lambda_.19} parent=1 // pred_check_branch
      %177 = sbr.rel (0) target = $region41
    $region40: #{_lambda_.19} parent=1 // pred_region
      %178 = dma.done [#allocation5], 128
    $region41: #{_lambda_.19} parent=1 // pred_fallthru
      _
    %179 = vsyncpa [#allocation4], 1
    %180 = vsyncpa [#allocation7], 1
    %181 = vsyncpa [#allocation5], 1

// kernel: _lambda_.24
$region0: #{_lambda_.24}
  #allocation0 [shape = 'u32[]', space=smem, size = 0x4, offset = 0x4, fixed_abs, tag = 'smem constant byte address 0x4 - core index']
  #allocation1 [shape = 'u32[144,128]{1,0:T(1,128)}', space=vmem, size = 0x12000, scoped, tag = 'internal scratch']
  #allocation2 [shape = 'bf16[2,8,16]{2,1,0:T(8,128)(2,1)}', space=vmem, size = 0x1000, scoped, tag = 'scratch operand']
  #allocation3 [shape = 'bf16[2,8,16]{2,1,0:T(8,128)(2,1)}', space=vmem, size = 0x1000, scoped, tag = 'scratch operand']
  #allocation4 [shape = 'bf16[2,8,16]{2,1,0:T(8,128)(2,1)}', space=vmem, size = 0x1000, scoped, tag = 'scratch operand']
  #allocation5 [shape = 'bf16[8,32]{1,0:T(8,128)(2,1)}', space=vmem, size = 0x800, scoped, tag = 'scratch operand']
  %s0 = inlined_call_operand.hbm [shape: bf16[2,8,32], index: 0, kind: input, shape index: {}, may-alias: {0,1}]
  %s1 = inlined_call_operand.hbm [shape: bf16[2,8,32], index: 1, kind: input, shape index: {}, may-alias: {0,1}]
  %s2 = inlined_call_operand.hbm [shape: s8[2,1,8], index: 2, kind: input, shape index: {}]
  %s3 = inlined_call_operand.hbm [shape: bf16[32,32], index: 3, kind: input, shape index: {}]
  %s4 = inlined_call_operand.hbm [shape: f32[1,32], index: 4, kind: input, shape index: {}, may-alias: {4,8,10}]
  %s5 = inlined_call_operand.hbm [shape: bf16[32,64], index: 5, kind: input, shape index: {}]
  %s6 = inlined_call_operand.hbm [shape: f32[1,64], index: 6, kind: input, shape index: {}]
  %s7 = inlined_call_operand.hbm [shape: bf16[32,32], index: 7, kind: input, shape index: {}]
  %s8 = inlined_call_operand.hbm [shape: f32[1,32], index: 8, kind: input, shape index: {}, may-alias: {4,8,10}]
  %s9 = inlined_call_operand.hbm [shape: f32[1,32], index: 9, kind: input, shape index: {}]
  %s10 = inlined_call_operand.hbm [shape: f32[1,32], index: 10, kind: input, shape index: {}, may-alias: {4,8,10}]
  %s11 = inlined_call_operand.hbm [shape: bf16[2,8,32], index: 11, kind: output, shape index: {}]
  %s12 = sld [smem:[#allocation0]]
  $region121: #{_lambda_.24} parent=0
    _
  %s14 = ssub.s32 1, %s12
  %s15 = scalar_select 0, %s14, %s12
  $region1: #{_lambda_.24} parent=0
    #allocation6 [shape = 'u8[4096]{0}', space=vmem, size = 0x1000, scoped, tag = 'input window, operand 0']
    #allocation7 [shape = 's32[2]{0}', space=sflag, size = 0x8, scoped, tag = 'scoped memory for _lambda_.24']
    #allocation8 [shape = 's32[2]{0}', space=sflag, size = 0x8, scoped, tag = 'scoped memory for _lambda_.24']
    #allocation9 [shape = 'u8[4096]{0}', space=vmem, size = 0x1000, scoped, tag = 'input window, operand 1']
    #allocation10 [shape = 's32[2]{0}', space=sflag, size = 0x8, scoped, tag = 'scoped memory for _lambda_.24']
    #allocation11 [shape = 'u8[1024]{0}', space=vmem, size = 0x400, scoped, tag = 'input window, operand 2']
    #allocation12 [shape = 'u8[8192]{0}', space=vmem, size = 0x2000, scoped, tag = 'input window, operand 3, single buffered']
    #allocation13 [shape = 's32[1]{0}', space=sflag, size = 0x4, scoped, tag = 'scoped memory for _lambda_.24']
    #allocation14 [shape = 'u8[512]{0}', space=vmem, size = 0x400, scoped, tag = 'input window, operand 4, single buffered']
    #allocation15 [shape = 'u8[8192]{0}', space=vmem, size = 0x2000, scoped, tag = 'input window, operand 5, single buffered']
    #allocation16 [shape = 's32[1]{0}', space=sflag, size = 0x4, scoped, tag = 'scoped memory for _lambda_.24']
    #allocation17 [shape = 'u8[512]{0}', space=vmem, size = 0x400, scoped, tag = 'input window, operand 6, single buffered']
    #allocation18 [shape = 'u8[8192]{0}', space=vmem, size = 0x2000, scoped, tag = 'input window, operand 7, single buffered']
    #allocation19 [shape = 's32[1]{0}', space=sflag, size = 0x4, scoped, tag = 'scoped memory for _lambda_.24']
    #allocation20 [shape = 'u8[512]{0}', space=vmem, size = 0x400, scoped, tag = 'input window, operand 8, single buffered']
    #allocation21 [shape = 'u8[512]{0}', space=vmem, size = 0x400, scoped, tag = 'input window, operand 9, single buffered']
    #allocation22 [shape = 's32[1]{0}', space=sflag, size = 0x4, scoped, tag = 'scoped memory for _lambda_.24']
    #allocation23 [shape = 'u8[512]{0}', space=vmem, size = 0x400, scoped, tag = 'input window, operand 10, single buffered']
    #allocation24 [shape = 'u8[4096]{0}', space=vmem, size = 0x1000, scoped, tag = 'output window, operand 0']
    %16 = vsyncpa [#allocation7], 0
    %s17 = scalar_lea.sflag [#allocation7], 1
    %18 = vsyncpa %s17, 0
    %19 = vsyncpa [#allocation10], 0
    %s20 = scalar_lea.sflag [#allocation10], 1
    %21 = vsyncpa %s20, 0
    %22 = vsyncpa [#allocation13], 0
    %23 = vsyncpa [#allocation16], 0
    %24 = vsyncpa [#allocation19], 0
    %25 = vsyncpa [#allocation22], 0
    %26 = vsyncpa [#allocation8], 0
    %s27 = scalar_lea.sflag [#allocation8], 1
    %28 = vsyncpa %s27, 0
    loop: start=0, step=1, limit=4
    $region2: #{_lambda_.24} parent=1 // loop_pre_header
      _
    $region3: #{_lambda_.24} parent=1 // loop_header
      %s30 = sphi 0, %s34
      %p31 = scmp.ge.s32.totalorder %s30, 4
      %s37 = sphi 0, %s49
      %s38 = sphi 0, %s45
      %s39 = sphi 0, %s37
      %s40 = sphi 0, %s38
      %s41 = sphi 0, %s39
      %s42 = sphi 0, %s40
      %s54 = sphi 0, %s56
      %s57 = sphi 0, %s54
      %s58 = sphi 0, %s57
      %s74 = sphi 0, %s58
      %s80 = sphi 0, %s82
      %s83 = sphi 0, %s80
      %s84 = sphi 0, %s83
      %s100 = sphi 0, %s84
      %s106 = sphi 0, %s108
      %s109 = sphi 0, %s106
      %s110 = sphi 0, %s109
      %s126 = sphi 0, %s110
      %s130 = sphi 0, %s130
      %s132 = sphi 0, %s130
      %s133 = sphi 0, %s132
      %s147 = sphi 0, %s133
      %s151 = sphi 0, %s151
      %s153 = sphi 0, %s151
      %s154 = sphi 0, %s153
      %s168 = sphi 0, %s154
      %s172 = sphi 0, %s172
      %s174 = sphi 0, %s172
      %s175 = sphi 0, %s174
      %s189 = sphi 0, %s175
      %s193 = sphi 0, %s193
      %s195 = sphi 0, %s193
      %s196 = sphi 0, %s195
      %s210 = sphi 0, %s196
      %s214 = sphi 0, %s214
      %s216 = sphi 0, %s214
      %s217 = sphi 0, %s216
      %s231 = sphi 0, %s217
      %s235 = sphi 0, %s235
      %s237 = sphi 0, %s235
      %s238 = sphi 0, %s237
      %s252 = sphi 0, %s238
      %s256 = sphi 0, %s256
      %s258 = sphi 0, %s256
      %s259 = sphi 0, %s258
      %s273 = sphi 0, %s259
      %s277 = sphi 0, %s277
      %s279 = sphi 0, %s277
      %s280 = sphi 0, %s279
      %s294 = sphi 0, %s280
      %s302 = sphi 0, %s304
      %s305 = sphi 0, %s302
      %s306 = sphi 0, %s305
      %s322 = sphi 0, %s306
    $region4: #{_lambda_.24} parent=1 // loop_header_branch
      %33 = sbr.rel (%p31) target = $region8
    $region5: #{_lambda_.24} parent=1 // loop_body
      %s35 = ssub.s32 %s30, 1
      %s36 = ssub.s32 %s30, 2
      %s43 = sadd.s32 1, %s38
      %p44 = scmp.ge.s32.totalorder %s43, 1
      %s45 = scalar_select %p44, 0, %s43
      %s46 = sadd.s32 1, %s37
      %s47 = scalar_select %p44, %s46, %s37
      %p48 = scmp.ge.s32.totalorder %s47, 2
      %s49 = scalar_select %p48, 0, %s47
      %s50 = ssub.s32 %s37, %s49
      %s51 = ssub.s32 %s38, %s45
      %s52 = sor.u32 %s50, %s51
      %p53 = scmp.eq.s32.totalorder %s52, 0
      %s55 = sadd.s32 %s54, 1
      %s56 = scalar_select %p53, %s54, %s55
      %p59 = pneg %p53
      %p60 = scmp.eq.s32.totalorder %s30, 1
      %p61 = por %p59, %p60
      %p62 = scmp.ne.s32.totalorder %s54, %s57
      %p63 = scmp.eq.s32.totalorder %s30, 0
      %p64 = por %p62, %p63
      %p65 = scmp.ne.s32.totalorder %s54, %s57
      %p66 = scmp.eq.s32.totalorder %s35, 1
      %p67 = por %p65, %p66
      %p68 = scmp.ne.s32.totalorder %s57, %s58
      %p69 = scmp.eq.s32.totalorder %s35, 0
      %p70 = por %p68, %p69
      %p71 = scmp.ne.s32.totalorder %s57, %s58
      %p72 = scmp.eq.s32.totalorder %s36, 1
      %p73 = por %p71, %p72
      %p75 = scmp.ne.s32.totalorder %s58, %s74
      %p76 = scmp.eq.s32.totalorder %s36, 0
      %p77 = por %p75, %p76
      %s78 = ssub.s32 %s37, %s49
      %p79 = scmp.eq.s32.totalorder %s78, 0
      %s81 = sadd.s32 %s80, 1
      %s82 = scalar_select %p79, %s80, %s81
      %p85 = pneg %p79
      %p86 = scmp.eq.s32.totalorder %s30, 1
      %p87 = por %p85, %p86
      %p88 = scmp.ne.s32.totalorder %s80, %s83
      %p89 = scmp.eq.s32.totalorder %s30, 0
      %p90 = por %p88, %p89
      %p91 = scmp.ne.s32.totalorder %s80, %s83
      %p92 = scmp.eq.s32.totalorder %s35, 1
      %p93 = por %p91, %p92
      %p94 = scmp.ne.s32.totalorder %s83, %s84
      %p95 = scmp.eq.s32.totalorder %s35, 0
      %p96 = por %p94, %p95
      %p97 = scmp.ne.s32.totalorder %s83, %s84
      %p98 = scmp.eq.s32.totalorder %s36, 1
      %p99 = por %p97, %p98
      %p101 = scmp.ne.s32.totalorder %s84, %s100
      %p102 = scmp.eq.s32.totalorder %s36, 0
      %p103 = por %p101, %p102
      %s104 = ssub.s32 %s37, %s49
      %p105 = scmp.eq.s32.totalorder %s104, 0
      %s107 = sadd.s32 %s106, 1
      %s108 = scalar_select %p105, %s106, %s107
      %p111 = pneg %p105
      %p112 = scmp.eq.s32.totalorder %s30, 1
      %p113 = por %p111, %p112
      %p114 = scmp.ne.s32.totalorder %s106, %s109
      %p115 = scmp.eq.s32.totalorder %s30, 0
      %p116 = por %p114, %p115
      %p117 = scmp.ne.s32.totalorder %s106, %s109
      %p118 = scmp.eq.s32.totalorder %s35, 1
      %p119 = por %p117, %p118
      %p120 = scmp.ne.s32.totalorder %s109, %s110
      %p121 = scmp.eq.s32.totalorder %s35, 0
      %p122 = por %p120, %p121
      %p123 = scmp.ne.s32.totalorder %s109, %s110
      %p124 = scmp.eq.s32.totalorder %s36, 1
      %p125 = por %p123, %p124
      %p127 = scmp.ne.s32.totalorder %s110, %s126
      %p128 = scmp.eq.s32.totalorder %s36, 0
      %p129 = por %p127, %p128
      %s131 = sadd.s32 %s130, 1
      %p134 = scmp.eq.s32.totalorder %s30, 1
      %p135 = scmp.ne.s32.totalorder %s130, %s132
      %p136 = scmp.eq.s32.totalorder %s30, 0
      %p137 = por %p135, %p136
      %p138 = scmp.ne.s32.totalorder %s130, %s132
      %p139 = scmp.eq.s32.totalorder %s35, 1
      %p140 = por %p138, %p139
      %p141 = scmp.ne.s32.totalorder %s132, %s133
      %p142 = scmp.eq.s32.totalorder %s35, 0
      %p143 = por %p141, %p142
      %p144 = scmp.ne.s32.totalorder %s132, %s133
      %p145 = scmp.eq.s32.totalorder %s36, 1
      %p146 = por %p144, %p145
      %p148 = scmp.ne.s32.totalorder %s133, %s147
      %p149 = scmp.eq.s32.totalorder %s36, 0
      %p150 = por %p148, %p149
      %s152 = sadd.s32 %s151, 1
      %p155 = scmp.eq.s32.totalorder %s30, 1
      %p156 = scmp.ne.s32.totalorder %s151, %s153
      %p157 = scmp.eq.s32.totalorder %s30, 0
      %p158 = por %p156, %p157
      %p159 = scmp.ne.s32.totalorder %s151, %s153
      %p160 = scmp.eq.s32.totalorder %s35, 1
      %p161 = por %p159, %p160
      %p162 = scmp.ne.s32.totalorder %s153, %s154
      %p163 = scmp.eq.s32.totalorder %s35, 0
      %p164 = por %p162, %p163
      %p165 = scmp.ne.s32.totalorder %s153, %s154
      %p166 = scmp.eq.s32.totalorder %s36, 1
      %p167 = por %p165, %p166
      %p169 = scmp.ne.s32.totalorder %s154, %s168
      %p170 = scmp.eq.s32.totalorder %s36, 0
      %p171 = por %p169, %p170
      %s173 = sadd.s32 %s172, 1
      %p176 = scmp.eq.s32.totalorder %s30, 1
      %p177 = scmp.ne.s32.totalorder %s172, %s174
      %p178 = scmp.eq.s32.totalorder %s30, 0
      %p179 = por %p177, %p178
      %p180 = scmp.ne.s32.totalorder %s172, %s174
      %p181 = scmp.eq.s32.totalorder %s35, 1
      %p182 = por %p180, %p181
      %p183 = scmp.ne.s32.totalorder %s174, %s175
      %p184 = scmp.eq.s32.totalorder %s35, 0
      %p185 = por %p183, %p184
      %p186 = scmp.ne.s32.totalorder %s174, %s175
      %p187 = scmp.eq.s32.totalorder %s36, 1
      %p188 = por %p186, %p187
      %p190 = scmp.ne.s32.totalorder %s175, %s189
      %p191 = scmp.eq.s32.totalorder %s36, 0
      %p192 = por %p190, %p191
      %s194 = sadd.s32 %s193, 1
      %p197 = scmp.eq.s32.totalorder %s30, 1
      %p198 = scmp.ne.s32.totalorder %s193, %s195
      %p199 = scmp.eq.s32.totalorder %s30, 0
      %p200 = por %p198, %p199
      %p201 = scmp.ne.s32.totalorder %s193, %s195
      %p202 = scmp.eq.s32.totalorder %s35, 1
      %p203 = por %p201, %p202
      %p204 = scmp.ne.s32.totalorder %s195, %s196
      %p205 = scmp.eq.s32.totalorder %s35, 0
      %p206 = por %p204, %p205
      %p207 = scmp.ne.s32.totalorder %s195, %s196
      %p208 = scmp.eq.s32.totalorder %s36, 1
      %p209 = por %p207, %p208
      %p211 = scmp.ne.s32.totalorder %s196, %s210
      %p212 = scmp.eq.s32.totalorder %s36, 0
      %p213 = por %p211, %p212
      %s215 = sadd.s32 %s214, 1
      %p218 = scmp.eq.s32.totalorder %s30, 1
      %p219 = scmp.ne.s32.totalorder %s214, %s216
      %p220 = scmp.eq.s32.totalorder %s30, 0
      %p221 = por %p219, %p220
      %p222 = scmp.ne.s32.totalorder %s214, %s216
      %p223 = scmp.eq.s32.totalorder %s35, 1
      %p224 = por %p222, %p223
      %p225 = scmp.ne.s32.totalorder %s216, %s217
      %p226 = scmp.eq.s32.totalorder %s35, 0
      %p227 = por %p225, %p226
      %p228 = scmp.ne.s32.totalorder %s216, %s217
      %p229 = scmp.eq.s32.totalorder %s36, 1
      %p230 = por %p228, %p229
      %p232 = scmp.ne.s32.totalorder %s217, %s231
      %p233 = scmp.eq.s32.totalorder %s36, 0
      %p234 = por %p232, %p233
      %s236 = sadd.s32 %s235, 1
      %p239 = scmp.eq.s32.totalorder %s30, 1
      %p240 = scmp.ne.s32.totalorder %s235, %s237
      %p241 = scmp.eq.s32.totalorder %s30, 0
      %p242 = por %p240, %p241
      %p243 = scmp.ne.s32.totalorder %s235, %s237
      %p244 = scmp.eq.s32.totalorder %s35, 1
      %p245 = por %p243, %p244
      %p246 = scmp.ne.s32.totalorder %s237, %s238
      %p247 = scmp.eq.s32.totalorder %s35, 0
      %p248 = por %p246, %p247
      %p249 = scmp.ne.s32.totalorder %s237, %s238
      %p250 = scmp.eq.s32.totalorder %s36, 1
      %p251 = por %p249, %p250
      %p253 = scmp.ne.s32.totalorder %s238, %s252
      %p254 = scmp.eq.s32.totalorder %s36, 0
      %p255 = por %p253, %p254
      %s257 = sadd.s32 %s256, 1
      %p260 = scmp.eq.s32.totalorder %s30, 1
      %p261 = scmp.ne.s32.totalorder %s256, %s258
      %p262 = scmp.eq.s32.totalorder %s30, 0
      %p263 = por %p261, %p262
      %p264 = scmp.ne.s32.totalorder %s256, %s258
      %p265 = scmp.eq.s32.totalorder %s35, 1
      %p266 = por %p264, %p265
      %p267 = scmp.ne.s32.totalorder %s258, %s259
      %p268 = scmp.eq.s32.totalorder %s35, 0
      %p269 = por %p267, %p268
      %p270 = scmp.ne.s32.totalorder %s258, %s259
      %p271 = scmp.eq.s32.totalorder %s36, 1
      %p272 = por %p270, %p271
      %p274 = scmp.ne.s32.totalorder %s259, %s273
      %p275 = scmp.eq.s32.totalorder %s36, 0
      %p276 = por %p274, %p275
      %s278 = sadd.s32 %s277, 1
      %p281 = scmp.eq.s32.totalorder %s30, 1
      %p282 = scmp.ne.s32.totalorder %s277, %s279
      %p283 = scmp.eq.s32.totalorder %s30, 0
      %p284 = por %p282, %p283
      %p285 = scmp.ne.s32.totalorder %s277, %s279
      %p286 = scmp.eq.s32.totalorder %s35, 1
      %p287 = por %p285, %p286
      %p288 = scmp.ne.s32.totalorder %s279, %s280
      %p289 = scmp.eq.s32.totalorder %s35, 0
      %p290 = por %p288, %p289
      %p291 = scmp.ne.s32.totalorder %s279, %s280
      %p292 = scmp.eq.s32.totalorder %s36, 1
      %p293 = por %p291, %p292
      %p295 = scmp.ne.s32.totalorder %s280, %s294
      %p296 = scmp.eq.s32.totalorder %s36, 0
      %p297 = por %p295, %p296
      %s298 = ssub.s32 %s37, %s49
      %s299 = ssub.s32 %s38, %s45
      %s300 = sor.u32 %s298, %s299
      %p301 = scmp.eq.s32.totalorder %s300, 0
      %s303 = sadd.s32 %s302, 1
      %s304 = scalar_select %p301, %s302, %s303
      %p307 = pneg %p301
      %p308 = scmp.eq.s32.totalorder %s30, 1
      %p309 = por %p307, %p308
      %p310 = scmp.ne.s32.totalorder %s302, %s305
      %p311 = scmp.eq.s32.totalorder %s30, 0
      %p312 = por %p310, %p311
      %p313 = scmp.ne.s32.totalorder %s302, %s305
      %p314 = scmp.eq.s32.totalorder %s35, 1
      %p315 = por %p313, %p314
      %p316 = scmp.ne.s32.totalorder %s305, %s306
      %p317 = scmp.eq.s32.totalorder %s35, 0
      %p318 = por %p316, %p317
      %p319 = scmp.ne.s32.totalorder %s305, %s306
      %p320 = scmp.eq.s32.totalorder %s36, 1
      %p321 = por %p319, %p320
      %p323 = scmp.ne.s32.totalorder %s306, %s322
      %p324 = scmp.eq.s32.totalorder %s36, 0
      %p325 = por %p323, %p324
      %p326 = scmp.le.s32.totalorder 1, %s30
      %p327 = scmp.lt.s32.totalorder %s30, 3
      %p328 = pnand %p326, %p327
      %p329 = pneg %p328
      // Predicated region
      $region9: #{_lambda_.24} parent=5 // pred_check
        _
      $region10: #{_lambda_.24} parent=5 // pred_check_branch
        %331 = sbr.rel (%p328) target = $region12
      $region11: #{_lambda_.24} parent=5 // pred_region
        %s332 = ssub.s32 %s30, 1
        // Predicated region
        $region13: #{_lambda_.24} parent=11 // pred_check
          %p333 = pneg %p143
        $region14: #{_lambda_.24} parent=11 // pred_check_branch
          %335 = sbr.rel (%p333) target = $region16
        $region15: #{_lambda_.24} parent=11 // pred_region
          %s337 = ssub.s32 256, 256
          %338 = vsyncadd [#allocation13], %s337
          %s339 = sshll.u32 [#allocation12], 4
          %s340 = int_to_ptr.vmem [resolvable:$true] %s339
          %345 = dma.hbm_to_vmem [thread:$0]  %s3, 256, %s340, [#allocation13], 64, 64, 4
        $region16: #{_lambda_.24} parent=11 // pred_fallthru
          _
        // Predicated region
        $region17: #{_lambda_.24} parent=11 // pred_check
          %p346 = pneg %p164
        $region18: #{_lambda_.24} parent=11 // pred_check_branch
          %348 = sbr.rel (%p346) target = $region20
        $region19: #{_lambda_.24} parent=11 // pred_region
          %s350 = ssub.s32 16, 16
          %351 = vsyncadd [#allocation13], %s350
          %s353 = sshll.u32 [#allocation14], 4
          %s354 = int_to_ptr.vmem [resolvable:$true] %s353
          %356 = dma.hbm_to_vmem [thread:$0]  %s4, 16, %s354, [#allocation13]
        $region20: #{_lambda_.24} parent=11 // pred_fallthru
          _
        // Predicated region
        $region21: #{_lambda_.24} parent=11 // pred_check
          %p357 = pneg %p185
        $region22: #{_lambda_.24} parent=11 // pred_check_branch
          %359 = sbr.rel (%p357) target = $region24
        $region23: #{_lambda_.24} parent=11 // pred_region
          %s361 = ssub.s32 256, 256
          %362 = vsyncadd [#allocation16], %s361
          %s363 = sshll.u32 [#allocation15], 4
          %s364 = int_to_ptr.vmem [resolvable:$true] %s363
          %369 = dma.hbm_to_vmem [thread:$0]  %s5, 256, %s364, [#allocation16], 64, 64, 4
        $region24: #{_lambda_.24} parent=11 // pred_fallthru
          _
        // Predicated region
        $region25: #{_lambda_.24} parent=11 // pred_check
          %p370 = pneg %p206
        $region26: #{_lambda_.24} parent=11 // pred_check_branch
          %372 = sbr.rel (%p370) target = $region28
        $region27: #{_lambda_.24} parent=11 // pred_region
          %s374 = ssub.s32 16, 16
          %375 = vsyncadd [#allocation16], %s374
          %s377 = sshll.u32 [#allocation17], 4
          %s378 = int_to_ptr.vmem [resolvable:$true] %s377
          %380 = dma.hbm_to_vmem [thread:$0]  %s6, 16, %s378, [#allocation16]
        $region28: #{_lambda_.24} parent=11 // pred_fallthru
          _
        // Predicated region
        $region29: #{_lambda_.24} parent=11 // pred_check
          %p381 = pneg %p227
        $region30: #{_lambda_.24} parent=11 // pred_check_branch
          %383 = sbr.rel (%p381) target = $region32
        $region31: #{_lambda_.24} parent=11 // pred_region
          %s385 = ssub.s32 256, 256
          %386 = vsyncadd [#allocation19], %s385
          %s387 = sshll.u32 [#allocation18], 4
          %s388 = int_to_ptr.vmem [resolvable:$true] %s387
          %393 = dma.hbm_to_vmem [thread:$0]  %s7, 256, %s388, [#allocation19], 64, 64, 4
        $region32: #{_lambda_.24} parent=11 // pred_fallthru
          _
        // Predicated region
        $region33: #{_lambda_.24} parent=11 // pred_check
          %p394 = pneg %p248
        $region34: #{_lambda_.24} parent=11 // pred_check_branch
          %396 = sbr.rel (%p394) target = $region36
        $region35: #{_lambda_.24} parent=11 // pred_region
          %s398 = ssub.s32 16, 16
          %399 = vsyncadd [#allocation19], %s398
          %s401 = sshll.u32 [#allocation20], 4
          %s402 = int_to_ptr.vmem [resolvable:$true] %s401
          %404 = dma.hbm_to_vmem [thread:$0]  %s8, 16, %s402, [#allocation19]
        $region36: #{_lambda_.24} parent=11 // pred_fallthru
          _
        // Predicated region
        $region37: #{_lambda_.24} parent=11 // pred_check
          %p405 = pneg %p269
        $region38: #{_lambda_.24} parent=11 // pred_check_branch
          %407 = sbr.rel (%p405) target = $region40
        $region39: #{_lambda_.24} parent=11 // pred_region
          %s409 = ssub.s32 16, 16
          %410 = vsyncadd [#allocation22], %s409
          %s412 = sshll.u32 [#allocation21], 4
          %s413 = int_to_ptr.vmem [resolvable:$true] %s412
          %415 = dma.hbm_to_vmem [thread:$0]  %s9, 16, %s413, [#allocation22]
        $region40: #{_lambda_.24} parent=11 // pred_fallthru
          _
        // Predicated region
        $region41: #{_lambda_.24} parent=11 // pred_check
          %p416 = pneg %p290
        $region42: #{_lambda_.24} parent=11 // pred_check_branch
          %418 = sbr.rel (%p416) target = $region44
        $region43: #{_lambda_.24} parent=11 // pred_region
          %s420 = ssub.s32 16, 16
          %421 = vsyncadd [#allocation22], %s420
          %s423 = sshll.u32 [#allocation23], 4
          %s424 = int_to_ptr.vmem [resolvable:$true] %s423
          %426 = dma.hbm_to_vmem [thread:$0]  %s10, 16, %s424, [#allocation22]
        $region44: #{_lambda_.24} parent=11 // pred_fallthru
          _
      $region12: #{_lambda_.24} parent=5 // pred_fallthru
        _
      %p427 = scmp.lt.s32.totalorder %s30, 2
      // Predicated region
      $region45: #{_lambda_.24} parent=5 // pred_check
        %p428 = pneg %p427
      $region46: #{_lambda_.24} parent=5 // pred_check_branch
        %430 = sbr.rel (%p428) target = $region48
      $region47: #{_lambda_.24} parent=5 // pred_region
        // Predicated region
        $region49: #{_lambda_.24} parent=47 // pred_check
          %p431 = pneg %p64
        $region50: #{_lambda_.24} parent=47 // pred_check_branch
          %433 = sbr.rel (%p431) target = $region52
        $region51: #{_lambda_.24} parent=47 // pred_region
          %s434 = sand.u32 %s54, 1
          %s435 = scalar_lea.sflag [#allocation7], %s434
          %s436 = sand.u32 %s54, 1
          %s437 = smul.addr %s436, 4
          %s438 = scalar_lea.vmem [#allocation6], %s437
          %s440 = ssub.s32 64, 64
          %441 = vsyncadd %s435, %s440
          %s442 = sadd.s32 %s38, %s37
          %s443 = smul.addr %s442, 64
          %s444 = scalar_lea.hbm %s0, %s443
          %s446 = sshll.u32 %s438, 4
          %s447 = int_to_ptr.vmem [resolvable:$true] %s446
          %449 = dma.hbm_to_vmem [thread:$0]  %s444, 64, %s447, %s435
        $region52: #{_lambda_.24} parent=47 // pred_fallthru
          _
        // Predicated region
        $region53: #{_lambda_.24} parent=47 // pred_check
          %p450 = pneg %p90
        $region54: #{_lambda_.24} parent=47 // pred_check_branch
          %452 = sbr.rel (%p450) target = $region56
        $region55: #{_lambda_.24} parent=47 // pred_region
          %s453 = sand.u32 %s30, 1
          %s454 = scalar_lea.sflag [#allocation10], %s453
          %s455 = sand.u32 %s80, 1
          %s456 = smul.addr %s455, 4
          %s457 = scalar_lea.vmem [#allocation9], %s456
          %s459 = ssub.s32 64, 64
          %460 = vsyncadd %s454, %s459
          %s461 = smul.addr %s37, 64
          %s462 = scalar_lea.hbm %s1, %s461
          %s464 = sshll.u32 %s457, 4
          %s465 = int_to_ptr.vmem [resolvable:$true] %s464
          %467 = dma.hbm_to_vmem [thread:$0]  %s462, 64, %s465, %s454
        $region56: #{_lambda_.24} parent=47 // pred_fallthru
          _
        // Predicated region
        $region57: #{_lambda_.24} parent=47 // pred_check
          %p468 = pneg %p116
        $region58: #{_lambda_.24} parent=47 // pred_check_branch
          %470 = sbr.rel (%p468) target = $region60
        $region59: #{_lambda_.24} parent=47 // pred_region
          %s471 = sand.u32 %s30, 1
          %s472 = scalar_lea.sflag [#allocation10], %s471
          %s473 = sand.u32 %s106, 1
          %s474 = scalar_lea.vmem [#allocation11], %s473
          %s476 = ssub.s32 16, 16
          %477 = vsyncadd %s472, %s476
          %s478 = smul.addr %s37, 16
          %s479 = scalar_lea.hbm %s2, %s478
          %s481 = sshll.u32 %s474, 4
          %s482 = int_to_ptr.vmem [resolvable:$true] %s481
          %484 = dma.hbm_to_vmem [thread:$0]  %s479, 16, %s482, %s472
        $region60: #{_lambda_.24} parent=47 // pred_fallthru
          _
      $region48: #{_lambda_.24} parent=5 // pred_fallthru
        _
      %p485 = scmp.le.s32.totalorder 1, %s30
      %p486 = scmp.lt.s32.totalorder %s30, 3
      %p487 = pnand %p485, %p486
      %p488 = pneg %p487
      // Predicated region
      $region61: #{_lambda_.24} parent=5 // pred_check
        _
      $region62: #{_lambda_.24} parent=5 // pred_check_branch
        %490 = sbr.rel (%p487) target = $region64
      $region63: #{_lambda_.24} parent=5 // pred_region
        %s491 = ssub.s32 %s30, 1
        %s492 = sand.u32 %s57, 1
        %s493 = scalar_lea.sflag [#allocation7], %s492
        %s494 = sand.u32 %s57, 1
        %s495 = smul.addr %s494, 4
        %s496 = scalar_lea.vmem [#allocation6], %s495
        // Predicated region
        $region65: #{_lambda_.24} parent=63 // pred_check
          %p497 = pneg %p70
        $region66: #{_lambda_.24} parent=63 // pred_check_branch
          %499 = sbr.rel (%p497) target = $region68
        $region67: #{_lambda_.24} parent=63 // pred_region
          %500 = dma.done %s493, 64
        $region68: #{_lambda_.24} parent=63 // pred_fallthru
          _
        %s501 = sand.u32 %s35, 1
        %s502 = scalar_lea.sflag [#allocation10], %s501
        %s503 = sand.u32 %s83, 1
        %s504 = smul.addr %s503, 4
        %s505 = scalar_lea.vmem [#allocation9], %s504
        // Predicated region
        $region69: #{_lambda_.24} parent=63 // pred_check
          %p506 = pneg %p96
        $region70: #{_lambda_.24} parent=63 // pred_check_branch
          %508 = sbr.rel (%p506) target = $region72
        $region71: #{_lambda_.24} parent=63 // pred_region
          %509 = dma.done %s502, 64
        $region72: #{_lambda_.24} parent=63 // pred_fallthru
          _
        %s510 = sand.u32 %s35, 1
        %s511 = scalar_lea.sflag [#allocation10], %s510
        %s512 = sand.u32 %s109, 1
        %s513 = scalar_lea.vmem [#allocation11], %s512
        // Predicated region
        $region73: #{_lambda_.24} parent=63 // pred_check
          %p514 = pneg %p122
        $region74: #{_lambda_.24} parent=63 // pred_check_branch
          %516 = sbr.rel (%p514) target = $region76
        $region75: #{_lambda_.24} parent=63 // pred_region
          %517 = dma.done %s511, 16
        $region76: #{_lambda_.24} parent=63 // pred_fallthru
          _
        // Predicated region
        $region77: #{_lambda_.24} parent=63 // pred_check
          %p518 = pneg %p143
        $region78: #{_lambda_.24} parent=63 // pred_check_branch
          %520 = sbr.rel (%p518) target = $region80
        $region79: #{_lambda_.24} parent=63 // pred_region
          %521 = dma.done [#allocation13], 256
        $region80: #{_lambda_.24} parent=63 // pred_fallthru
          _
        // Predicated region
        $region81: #{_lambda_.24} parent=63 // pred_check
          %p522 = pneg %p164
        $region82: #{_lambda_.24} parent=63 // pred_check_branch
          %524 = sbr.rel (%p522) target = $region84
        $region83: #{_lambda_.24} parent=63 // pred_region
          %525 = dma.done [#allocation13], 16
        $region84: #{_lambda_.24} parent=63 // pred_fallthru
          _
        // Predicated region
        $region85: #{_lambda_.24} parent=63 // pred_check
          %p526 = pneg %p185
        $region86: #{_lambda_.24} parent=63 // pred_check_branch
          %528 = sbr.rel (%p526) target = $region88
        $region87: #{_lambda_.24} parent=63 // pred_region
          %529 = dma.done [#allocation16], 256
        $region88: #{_lambda_.24} parent=63 // pred_fallthru
          _
        // Predicated region
        $region89: #{_lambda_.24} parent=63 // pred_check
          %p530 = pneg %p206
        $region90: #{_lambda_.24} parent=63 // pred_check_branch
          %532 = sbr.rel (%p530) target = $region92
        $region91: #{_lambda_.24} parent=63 // pred_region
          %533 = dma.done [#allocation16], 16
        $region92: #{_lambda_.24} parent=63 // pred_fallthru
          _
        // Predicated region
        $region93: #{_lambda_.24} parent=63 // pred_check
          %p534 = pneg %p227
        $region94: #{_lambda_.24} parent=63 // pred_check_branch
          %536 = sbr.rel (%p534) target = $region96
        $region95: #{_lambda_.24} parent=63 // pred_region
          %537 = dma.done [#allocation19], 256
        $region96: #{_lambda_.24} parent=63 // pred_fallthru
          _
        // Predicated region
        $region97: #{_lambda_.24} parent=63 // pred_check
          %p538 = pneg %p248
        $region98: #{_lambda_.24} parent=63 // pred_check_branch
          %540 = sbr.rel (%p538) target = $region100
        $region99: #{_lambda_.24} parent=63 // pred_region
          %541 = dma.done [#allocation19], 16
        $region100: #{_lambda_.24} parent=63 // pred_fallthru
          _
        // Predicated region
        $region101: #{_lambda_.24} parent=63 // pred_check
          %p542 = pneg %p269
        $region102: #{_lambda_.24} parent=63 // pred_check_branch
          %544 = sbr.rel (%p542) target = $region104
        $region103: #{_lambda_.24} parent=63 // pred_region
          %545 = dma.done [#allocation22], 16
        $region104: #{_lambda_.24} parent=63 // pred_fallthru
          _
        // Predicated region
        $region105: #{_lambda_.24} parent=63 // pred_check
          %p546 = pneg %p290
        $region106: #{_lambda_.24} parent=63 // pred_check_branch
          %548 = sbr.rel (%p546) target = $region108
        $region107: #{_lambda_.24} parent=63 // pred_region
          %549 = dma.done [#allocation22], 16
        $region108: #{_lambda_.24} parent=63 // pred_fallthru
          _
        %s550 = sand.u32 %s57, 1
        %s551 = scalar_lea.sflag [#allocation7], %s550
        %s552 = sand.u32 %s57, 1
        %s553 = smul.addr %s552, 4
        %s554 = scalar_lea.vmem [#allocation6], %s553
        %p555 = pneg %p70
        %p556 = pneg %p67
        %s557 = sand.u32 %s35, 1
        %s558 = scalar_lea.sflag [#allocation10], %s557
        %s559 = sand.u32 %s83, 1
        %s560 = smul.addr %s559, 4
        %s561 = scalar_lea.vmem [#allocation9], %s560
        %p562 = pneg %p96
        %p563 = pneg %p93
        %s564 = sand.u32 %s35, 1
        %s565 = scalar_lea.sflag [#allocation10], %s564
        %s566 = sand.u32 %s109, 1
        %s567 = scalar_lea.vmem [#allocation11], %s566
        %p568 = pneg %p122
        %p569 = pneg %p119
        %p570 = pneg %p143
        %p571 = pneg %p140
        %p572 = pneg %p164
        %p573 = pneg %p161
        %p574 = pneg %p185
        %p575 = pneg %p182
        %p576 = pneg %p206
        %p577 = pneg %p203
        %p578 = pneg %p227
        %p579 = pneg %p224
        %p580 = pneg %p248
        %p581 = pneg %p245
        %p582 = pneg %p269
        %p583 = pneg %p266
        %p584 = pneg %p290
        %p585 = pneg %p287
        %p586 = pneg %p318
        %p587 = pneg %p315
        %s588 = sand.u32 %s305, 1
        %s589 = scalar_lea.sflag [#allocation8], %s588
        %s590 = sand.u32 %s305, 1
        %s591 = smul.addr %s590, 4
        %s592 = scalar_lea.vmem [#allocation24], %s591
        %v596 = vld [vmem:[%s496] sm:$0xf]
        %v597 = vld [vmem:[%s505] sm:$0xf]
        %v598 = vld [vmem:[%s513] sm:$0x1]
        %vm599 = vnez %v598
        %v600 = vld [vmem:[#allocation12] sm:$0xf]
        %v601 = vld [vmem:[#allocation12 + $0x4] sm:$0xf]
        %v602 = vld [vmem:[#allocation12 + $0x8] sm:$0xf]
        %v603 = vld [vmem:[#allocation12 + $0xc] sm:$0xf]
        %v604 = vld [vmem:[#allocation14] sm:$0x1]
        %v606 = vlaneseq
        %v607 = vshrl.u32 %v606, 7
        %v608 = vsub.s32 0, %v607
        %v609 = vrot.slane %v604, %v608
        %v615 = vunpack.c.l.b16 %v600
        %v616 = vunpack.c.l.b16 %v601
        %v617 = vunpack.c.l.b16 %v602
        %v618 = vunpack.c.l.b16 %v603
        %v619 = vpack.c.b16 %v616, %v615
        %v620 = vpack.c.b16 %v618, %v617
        %vm623 = vcmask 261120
        %v625 = vsel %vm623, %v596, 0
        %627 = vmatprep.subr.bf16.mxu0 0
        %628 = vmatpush1.bf16.msra.mxu0 %v619
        %629 = vmatprep.subr.bf16.mxu0 0
        %630 = vmatpush1.bf16.msra.mxu0 %v620
        %631 = vmatprep.subr.bf16.mxu0 0
        %632 = vmatpush1.bf16.msra.mxu0 0
        %633 = vmatprep.subr.bf16.mxu0 0
        %634 = vmatpush1.bf16.msra.mxu0 0
        %635 = vmatprep.subr.bf16.mxu0 0
        %636 = vmatpush1.bf16.msra.mxu0 0
        %637 = vmatprep.subr.bf16.mxu0 0
        %638 = vmatpush1.bf16.msra.mxu0 0
        %639 = vmatprep.subr.bf16.mxu0 0
        %640 = vmatpush1.bf16.msra.mxu0 0
        %641 = vmatprep.subr.bf16.mxu0 0
        %642 = vmatpush1.bf16.msra.mxu0 0
        %643 = vmatprep.subr.bf16.mxu0 0
        %644 = vmatpush1.bf16.msra.mxu0 0
        %645 = vmatprep.subr.bf16.mxu0 0
        %646 = vmatpush1.bf16.msra.mxu0 0
        %647 = vmatprep.subr.bf16.mxu0 0
        %648 = vmatpush1.bf16.msra.mxu0 0
        %649 = vmatprep.subr.bf16.mxu0 0
        %650 = vmatpush1.bf16.msra.mxu0 0
        %651 = vmatprep.subr.bf16.mxu0 0
        %652 = vmatpush1.bf16.msra.mxu0 0
        %653 = vmatprep.subr.bf16.mxu0 0
        %654 = vmatpush1.bf16.msra.mxu0 0
        %655 = vmatprep.subr.bf16.mxu0 0
        %656 = vmatpush1.bf16.msra.mxu0 0
        %657 = vmatprep.subr.bf16.mxu0 0
        %658 = vmatpush1.bf16.msra.mxu0 0
        %659 = vmatprep.mubr.bf16.mxu0 0
        %660 = vmatmul.mubr.bf16.gmra.mrb[0].mxu0 %v625
        %v661 = vpop.f32.mrb[0].mxu0
        %v662 = vadd.f32 %v609, %v661
        %v663 = vpop.f32.mrb[0].mxu0
        %v664 = vpop.f32.mrb[0].mxu0
        %v665 = vpop.f32.mrb[0].mxu0
        %666 = vdwg.mxu0
        %v667 = vld [vmem:[#allocation15] sm:$0xf]
        %v668 = vld [vmem:[#allocation15 + $0x4] sm:$0xf]
        %v669 = vld [vmem:[#allocation15 + $0x8] sm:$0xf]
        %v670 = vld [vmem:[#allocation15 + $0xc] sm:$0xf]
        %v671 = vld [vmem:[#allocation17] sm:$0x1]
        %v673 = vlaneseq
        %v674 = vshrl.u32 %v673, 7
        %v675 = vsub.s32 0, %v674
        %v676 = vrot.slane %v671, %v675
        %v682 = vunpack.c.l.b16 %v667
        %v683 = vunpack.c.l.b16 %v668
        %v684 = vunpack.c.l.b16 %v669
        %v685 = vunpack.c.l.b16 %v670
        %v686 = vpack.c.b16 %v683, %v682
        %v687 = vpack.c.b16 %v685, %v684
        %v691 = vsel %vm623, %v597, 0
        %693 = vmatprep.subr.bf16.mxu0 0
        %694 = vmatpush1.bf16.msra.mxu0 %v686
        %695 = vmatprep.subr.bf16.mxu0 0
        %696 = vmatpush1.bf16.msra.mxu0 %v687
        %697 = vmatprep.subr.bf16.mxu0 0
        %698 = vmatpush1.bf16.msra.mxu0 0
        %699 = vmatprep.subr.bf16.mxu0 0
        %700 = vmatpush1.bf16.msra.mxu0 0
        %701 = vmatprep.subr.bf16.mxu0 0
        %702 = vmatpush1.bf16.msra.mxu0 0
        %703 = vmatprep.subr.bf16.mxu0 0
        %704 = vmatpush1.bf16.msra.mxu0 0
        %705 = vmatprep.subr.bf16.mxu0 0
        %706 = vmatpush1.bf16.msra.mxu0 0
        %707 = vmatprep.subr.bf16.mxu0 0
        %708 = vmatpush1.bf16.msra.mxu0 0
        %709 = vmatprep.subr.bf16.mxu0 0
        %710 = vmatpush1.bf16.msra.mxu0 0
        %711 = vmatprep.subr.bf16.mxu0 0
        %712 = vmatpush1.bf16.msra.mxu0 0
        %713 = vmatprep.subr.bf16.mxu0 0
        %714 = vmatpush1.bf16.msra.mxu0 0
        %715 = vmatprep.subr.bf16.mxu0 0
        %716 = vmatpush1.bf16.msra.mxu0 0
        %717 = vmatprep.subr.bf16.mxu0 0
        %718 = vmatpush1.bf16.msra.mxu0 0
        %719 = vmatprep.subr.bf16.mxu0 0
        %720 = vmatpush1.bf16.msra.mxu0 0
        %721 = vmatprep.subr.bf16.mxu0 0
        %722 = vmatpush1.bf16.msra.mxu0 0
        %723 = vmatprep.subr.bf16.mxu0 0
        %724 = vmatpush1.bf16.msra.mxu0 0
        %725 = vmatprep.mubr.bf16.mxu0 0
        %726 = vmatmul.mubr.bf16.gmra.mrb[0].mxu0 %v691
        %v727 = vpop.f32.mrb[0].mxu0
        %v728 = vadd.f32 %v676, %v727
        %v729 = vpop.f32.mrb[0].mxu0
        %v730 = vpop.f32.mrb[0].mxu0
        %v731 = vpop.f32.mrb[0].mxu0
        %732 = vdwg.mxu0
        %v733 = vpack.c.bf16 %v662, %v662
        %vm734 = vcmask 125952
        %735 = vst.msk [vmem:[#allocation2] sm:$0xf] %vm734, %v733
        %v736 = vpack.c.bf16 %v728, %v728
        %737 = vst.msk [vmem:[#allocation3] sm:$0xf] %vm734, %v736
        %v739 = vunpack.c.l.b16 %v736
        %v740 = vpack.c.b16 %v739, %v739
        %741 = vrot.lane.b32.xlu0 %v740, 96
        %v742 = vpop.permute.xlu0 %741
        %744 = vst.msk [vmem:[#allocation4] sm:$0xf] %vm734, %v742
        %v746 = vunpack.c.l.b16 %v733
        %v747 = vpack.c.b16 %v746, %v746
        %748 = vrot.lane.b32.xlu0 %v747, 112
        %v749 = vpop.permute.xlu0 %748
        %s751 = scalar_lea.vmem [#allocation2], 4
        %752 = vst.msk [vmem:[%s751] sm:$0xf] %vm734, %v749
        %753 = vrot.lane.b32.xlu0 %v740, 112
        %v754 = vpop.permute.xlu0 %753
        %s756 = scalar_lea.vmem [#allocation3], 4
        %757 = vst.msk [vmem:[%s756] sm:$0xf] %vm734, %v754
        %758 = vrot.lane.b32.xlu0 %v740, 80
        %v759 = vpop.permute.xlu0 %758
        %s761 = scalar_lea.vmem [#allocation4], 4
        %762 = vst.msk [vmem:[%s761] sm:$0xf] %vm734, %v759
        %v763 = vld [vmem:[#allocation2] sm:$0xf]
        %v764 = vld [vmem:[#allocation2 + $0x4] sm:$0xf]
        %v765 = vld [vmem:[#allocation3] sm:$0xf]
        %v766 = vld [vmem:[#allocation3 + $0x4] sm:$0xf]
        %vm767 = vcmask 130048
        %v769 = vsel %vm767, %v763, 0
        %v772 = vsel %vm767, %v765, 0
        %774 = vmatprep.subr.bf16.mxu0 0
        %775 = vmatpush1.bf16.xpose.msra.mxu0 %v772
        %776 = vmatprep.subr.bf16.mxu0 0
        %777 = vmatpush1.bf16.xpose.msra.mxu0 0
        %778 = vmatprep.subr.bf16.mxu0 0
        %779 = vmatpush1.bf16.xpose.msra.mxu0 0
        %780 = vmatprep.subr.bf16.mxu0 0
        %781 = vmatpush1.bf16.xpose.msra.mxu0 0
        %782 = vmatprep.subr.bf16.mxu0 0
        %783 = vmatpush1.bf16.xpose.msra.mxu0 0
        %784 = vmatprep.subr.bf16.mxu0 0
        %785 = vmatpush1.bf16.xpose.msra.mxu0 0
        %786 = vmatprep.subr.bf16.mxu0 0
        %787 = vmatpush1.bf16.xpose.msra.mxu0 0
        %788 = vmatprep.subr.bf16.mxu0 0
        %789 = vmatpush1.bf16.xpose.msra.mxu0 0
        %790 = vmatprep.subr.bf16.mxu0 0
        %791 = vmatpush1.bf16.xpose.msra.mxu0 0
        %792 = vmatprep.subr.bf16.mxu0 0
        %793 = vmatpush1.bf16.xpose.msra.mxu0 0
        %794 = vmatprep.subr.bf16.mxu0 0
        %795 = vmatpush1.bf16.xpose.msra.mxu0 0
        %796 = vmatprep.subr.bf16.mxu0 0
        %797 = vmatpush1.bf16.xpose.msra.mxu0 0
        %798 = vmatprep.subr.bf16.mxu0 0
        %799 = vmatpush1.bf16.xpose.msra.mxu0 0
        %800 = vmatprep.subr.bf16.mxu0 0
        %801 = vmatpush1.bf16.xpose.msra.mxu0 0
        %802 = vmatprep.subr.bf16.mxu0 0
        %803 = vmatpush1.bf16.xpose.msra.mxu0 0
        %804 = vmatprep.subr.bf16.mxu0 0
        %805 = vmatpush1.bf16.xpose.msra.mxu0 0
        %806 = vmatprep.mubr.bf16.mxu0 0
        %807 = vmatmul.mubr.bf16.gmra.mrb[0].mxu0 %v769
        %v808 = vpop.f32.mrb[0].mxu0
        %v809 = vadd.f32 0.0, %v808
        %v810 = vpop.f32.mrb[0].mxu0
        %v811 = vpop.f32.mrb[0].mxu0
        %v812 = vpop.f32.mrb[0].mxu0
        %813 = vdwg.mxu0
        %v815 = vsel %vm767, %v764, 0
        %v818 = vsel %vm767, %v766, 0
        %820 = vmatprep.subr.bf16.mxu0 0
        %821 = vmatpush1.bf16.xpose.msra.mxu0 %v818
        %822 = vmatprep.subr.bf16.mxu0 0
        %823 = vmatpush1.bf16.xpose.msra.mxu0 0
        %824 = vmatprep.subr.bf16.mxu0 0
        %825 = vmatpush1.bf16.xpose.msra.mxu0 0
        %826 = vmatprep.subr.bf16.mxu0 0
        %827 = vmatpush1.bf16.xpose.msra.mxu0 0
        %828 = vmatprep.subr.bf16.mxu0 0
        %829 = vmatpush1.bf16.xpose.msra.mxu0 0
        %830 = vmatprep.subr.bf16.mxu0 0
        %831 = vmatpush1.bf16.xpose.msra.mxu0 0
        %832 = vmatprep.subr.bf16.mxu0 0
        %833 = vmatpush1.bf16.xpose.msra.mxu0 0
        %834 = vmatprep.subr.bf16.mxu0 0
        %835 = vmatpush1.bf16.xpose.msra.mxu0 0
        %836 = vmatprep.subr.bf16.mxu0 0
        %837 = vmatpush1.bf16.xpose.msra.mxu0 0
        %838 = vmatprep.subr.bf16.mxu0 0
        %839 = vmatpush1.bf16.xpose.msra.mxu0 0
        %840 = vmatprep.subr.bf16.mxu0 0
        %841 = vmatpush1.bf16.xpose.msra.mxu0 0
        %842 = vmatprep.subr.bf16.mxu0 0
        %843 = vmatpush1.bf16.xpose.msra.mxu0 0
        %844 = vmatprep.subr.bf16.mxu0 0
        %845 = vmatpush1.bf16.xpose.msra.mxu0 0
        %846 = vmatprep.subr.bf16.mxu0 0
        %847 = vmatpush1.bf16.xpose.msra.mxu0 0
        %848 = vmatprep.subr.bf16.mxu0 0
        %849 = vmatpush1.bf16.xpose.msra.mxu0 0
        %850 = vmatprep.subr.bf16.mxu0 0
        %851 = vmatpush1.bf16.xpose.msra.mxu0 0
        %852 = vmatprep.mubr.bf16.mxu0 0
        %853 = vmatmul.mubr.bf16.gmra.mrb[0].mxu0 %v815
        %v854 = vpop.f32.mrb[0].mxu0
        %v855 = vadd.f32 0.0, %v854
        %v856 = vpop.f32.mrb[0].mxu0
        %v857 = vpop.f32.mrb[0].mxu0
        %v858 = vpop.f32.mrb[0].mxu0
        %859 = vdwg.mxu0
        %v860 = vmul.f32 %v809, 0.25
        %v861 = vmul.f32 %v855, 0.25
        %v862 = vsel %vm599, 16843009, 0
        %v863 = vunpack.c.0.s8 %v862
        %vm864 = vcmp.ne.s32.totalorder %v863, 0
        %v865 = vsel %vm864, 1, 0
        %v866 = vlaneseq
        %v867 = vshrl.u32 %v866, 7
        %v868 = vsub.s32 0, %v867
        %v869 = vrot.slane %v865, %v868
        %vm870 = vcmp.eq.s32.totalorder %v869, 1
        %v871 = vsel %vm870, %v860, -1e+09
        %v872 = vsel %vm870, %v861, -1e+09
        %vm873 = vcmask 64512
        %v874 = vsel %vm873, %v871, -inf
        %875 = vmax.xlane.f32.xlu0 %v874
        %v876 = vpop.xlane.xlu0 %875
        %v877 = vsel %vm873, %v872, -inf
        %878 = vmax.xlane.f32.xlu0 %v877
        %v879 = vpop.xlane.xlu0 %878
        %v880 = vsub.f32 %v871, %v876
        %v881 = vsub.f32 %v872, %v879
        %v882 = vmul.f32 %v880, 1.442695
        %v883 = vpow.pop %v882
        %v884 = vmul.f32 %v881, 1.442695
        %v885 = vpow.pop %v884
        %v886 = vsel %vm873, %v883, 0.0
        %887 = vadd.xlane.f32.xlu0 %v886
        %v888 = vpop.xlane.xlu0 %887
        %v889 = vsel %vm873, %v885, 0.0
        %890 = vadd.xlane.f32.xlu0 %v889
        %v891 = vpop.xlane.xlu0 %890
        %v892 = vrcp.pop %v888
        %v893 = vrcp.pop %v891
        %v894 = vmul.f32 %v883, %v892
        %v895 = vmul.f32 %v885, %v893
        %v896 = vpack.c.bf16 %v894, %v894
        %v897 = vpack.c.bf16 %v895, %v895
        %v898 = vld [vmem:[#allocation4] sm:$0xf]
        %v899 = vld [vmem:[#allocation4 + $0x4] sm:$0xf]
        %v901 = vsel %vm873, %v896, 0
        %vm903 = vcmask 1043456
        %v905 = vsel %vm903, %v898, 0
        %907 = vmatprep.subr.bf16.mxu0 0
        %908 = vmatpush1.bf16.msra.mxu0 %v905
        %909 = vmatprep.subr.bf16.mxu0 0
        %910 = vmatpush1.bf16.msra.mxu0 0
        %911 = vmatprep.subr.bf16.mxu0 0
        %912 = vmatpush1.bf16.msra.mxu0 0
        %913 = vmatprep.subr.bf16.mxu0 0
        %914 = vmatpush1.bf16.msra.mxu0 0
        %915 = vmatprep.subr.bf16.mxu0 0
        %916 = vmatpush1.bf16.msra.mxu0 0
        %917 = vmatprep.subr.bf16.mxu0 0
        %918 = vmatpush1.bf16.msra.mxu0 0
        %919 = vmatprep.subr.bf16.mxu0 0
        %920 = vmatpush1.bf16.msra.mxu0 0
        %921 = vmatprep.subr.bf16.mxu0 0
        %922 = vmatpush1.bf16.msra.mxu0 0
        %923 = vmatprep.subr.bf16.mxu0 0
        %924 = vmatpush1.bf16.msra.mxu0 0
        %925 = vmatprep.subr.bf16.mxu0 0
        %926 = vmatpush1.bf16.msra.mxu0 0
        %927 = vmatprep.subr.bf16.mxu0 0
        %928 = vmatpush1.bf16.msra.mxu0 0
        %929 = vmatprep.subr.bf16.mxu0 0
        %930 = vmatpush1.bf16.msra.mxu0 0
        %931 = vmatprep.subr.bf16.mxu0 0
        %932 = vmatpush1.bf16.msra.mxu0 0
        %933 = vmatprep.subr.bf16.mxu0 0
        %934 = vmatpush1.bf16.msra.mxu0 0
        %935 = vmatprep.subr.bf16.mxu0 0
        %936 = vmatpush1.bf16.msra.mxu0 0
        %937 = vmatprep.subr.bf16.mxu0 0
        %938 = vmatpush1.bf16.msra.mxu0 0
        %939 = vmatprep.mubr.bf16.mxu0 0
        %940 = vmatmul.mubr.bf16.gmra.mrb[0].mxu0 %v901
        %v941 = vpop.f32.mrb[0].mxu0
        %v942 = vadd.f32 0.0, %v941
        %v943 = vpop.f32.mrb[0].mxu0
        %v944 = vpop.f32.mrb[0].mxu0
        %v945 = vpop.f32.mrb[0].mxu0
        %946 = vdwg.mxu0
        %v948 = vsel %vm873, %v897, 0
        %v951 = vsel %vm903, %v899, 0
        %953 = vmatprep.subr.bf16.mxu0 0
        %954 = vmatpush1.bf16.msra.mxu0 %v951
        %955 = vmatprep.subr.bf16.mxu0 0
        %956 = vmatpush1.bf16.msra.mxu0 0
        %957 = vmatprep.subr.bf16.mxu0 0
        %958 = vmatpush1.bf16.msra.mxu0 0
        %959 = vmatprep.subr.bf16.mxu0 0
        %960 = vmatpush1.bf16.msra.mxu0 0
        %961 = vmatprep.subr.bf16.mxu0 0
        %962 = vmatpush1.bf16.msra.mxu0 0
        %963 = vmatprep.subr.bf16.mxu0 0
        %964 = vmatpush1.bf16.msra.mxu0 0
        %965 = vmatprep.subr.bf16.mxu0 0
        %966 = vmatpush1.bf16.msra.mxu0 0
        %967 = vmatprep.subr.bf16.mxu0 0
        %968 = vmatpush1.bf16.msra.mxu0 0
        %969 = vmatprep.subr.bf16.mxu0 0
        %970 = vmatpush1.bf16.msra.mxu0 0
        %971 = vmatprep.subr.bf16.mxu0 0
        %972 = vmatpush1.bf16.msra.mxu0 0
        %973 = vmatprep.subr.bf16.mxu0 0
        %974 = vmatpush1.bf16.msra.mxu0 0
        %975 = vmatprep.subr.bf16.mxu0 0
        %976 = vmatpush1.bf16.msra.mxu0 0
        %977 = vmatprep.subr.bf16.mxu0 0
        %978 = vmatpush1.bf16.msra.mxu0 0
        %979 = vmatprep.subr.bf16.mxu0 0
        %980 = vmatpush1.bf16.msra.mxu0 0
        %981 = vmatprep.subr.bf16.mxu0 0
        %982 = vmatpush1.bf16.msra.mxu0 0
        %983 = vmatprep.subr.bf16.mxu0 0
        %984 = vmatpush1.bf16.msra.mxu0 0
        %985 = vmatprep.mubr.bf16.mxu0 0
        %986 = vmatmul.mubr.bf16.gmra.mrb[0].mxu0 %v948
        %v987 = vpop.f32.mrb[0].mxu0
        %v988 = vadd.f32 0.0, %v987
        %v989 = vpop.f32.mrb[0].mxu0
        %v990 = vpop.f32.mrb[0].mxu0
        %v991 = vpop.f32.mrb[0].mxu0
        %992 = vdwg.mxu0
        %v993 = vpack.c.bf16 %v942, %v942
        %994 = vst.msk [vmem:[#allocation5] sm:$0xf] %vm734, %v993
        %v995 = vpack.c.bf16 %v988, %v988
        %v997 = vunpack.c.l.b16 %v995
        %v998 = vpack.c.b16 %v997, %v997
        %999 = vrot.lane.b32.xlu0 %v998, 16
        %v1000 = vpop.permute.xlu0 %999
        %vm1002 = vcmask 257152
        %1003 = vst.msk [vmem:[#allocation5] sm:$0xf] %vm1002, %v1000
        %v1004 = vld [vmem:[#allocation5] sm:$0xf]
        %v1005 = vld [vmem:[#allocation18] sm:$0xf]
        %v1006 = vld [vmem:[#allocation18 + $0x4] sm:$0xf]
        %v1007 = vld [vmem:[#allocation18 + $0x8] sm:$0xf]
        %v1008 = vld [vmem:[#allocation18 + $0xc] sm:$0xf]
        %v1009 = vld [vmem:[#allocation20] sm:$0x1]
        %v1011 = vlaneseq
        %v1012 = vshrl.u32 %v1011, 7
        %v1013 = vsub.s32 0, %v1012
        %v1014 = vrot.slane %v1009, %v1013
        %v1020 = vunpack.c.l.b16 %v1005
        %v1021 = vunpack.c.l.b16 %v1006
        %v1022 = vunpack.c.l.b16 %v1007
        %v1023 = vunpack.c.l.b16 %v1008
        %v1024 = vpack.c.b16 %v1021, %v1020
        %v1025 = vpack.c.b16 %v1023, %v1022
        %v1029 = vsel %vm623, %v1004, 0
        %1031 = vmatprep.subr.bf16.mxu0 0
        %1032 = vmatpush1.bf16.msra.mxu0 %v1024
        %1033 = vmatprep.subr.bf16.mxu0 0
        %1034 = vmatpush1.bf16.msra.mxu0 %v1025
        %1035 = vmatprep.subr.bf16.mxu0 0
        %1036 = vmatpush1.bf16.msra.mxu0 0
        %1037 = vmatprep.subr.bf16.mxu0 0
        %1038 = vmatpush1.bf16.msra.mxu0 0
        %1039 = vmatprep.subr.bf16.mxu0 0
        %1040 = vmatpush1.bf16.msra.mxu0 0
        %1041 = vmatprep.subr.bf16.mxu0 0
        %1042 = vmatpush1.bf16.msra.mxu0 0
        %1043 = vmatprep.subr.bf16.mxu0 0
        %1044 = vmatpush1.bf16.msra.mxu0 0
        %1045 = vmatprep.subr.bf16.mxu0 0
        %1046 = vmatpush1.bf16.msra.mxu0 0
        %1047 = vmatprep.subr.bf16.mxu0 0
        %1048 = vmatpush1.bf16.msra.mxu0 0
        %1049 = vmatprep.subr.bf16.mxu0 0
        %1050 = vmatpush1.bf16.msra.mxu0 0
        %1051 = vmatprep.subr.bf16.mxu0 0
        %1052 = vmatpush1.bf16.msra.mxu0 0
        %1053 = vmatprep.subr.bf16.mxu0 0
        %1054 = vmatpush1.bf16.msra.mxu0 0
        %1055 = vmatprep.subr.bf16.mxu0 0
        %1056 = vmatpush1.bf16.msra.mxu0 0
        %1057 = vmatprep.subr.bf16.mxu0 0
        %1058 = vmatpush1.bf16.msra.mxu0 0
        %1059 = vmatprep.subr.bf16.mxu0 0
        %1060 = vmatpush1.bf16.msra.mxu0 0
        %1061 = vmatprep.subr.bf16.mxu0 0
        %1062 = vmatpush1.bf16.msra.mxu0 0
        %1063 = vmatprep.mubr.bf16.mxu0 0
        %1064 = vmatmul.mubr.bf16.gmra.mrb[0].mxu0 %v1029
        %v1065 = vpop.f32.mrb[0].mxu0
        %v1066 = vadd.f32 %v1014, %v1065
        %v1067 = vpop.f32.mrb[0].mxu0
        %v1068 = vpop.f32.mrb[0].mxu0
        %v1069 = vpop.f32.mrb[0].mxu0
        %1070 = vdwg.mxu0
        %v1071 = vunpack.c.l.bf16 %v596
        %v1072 = vadd.f32 %v1066, %v1071
        %v1073 = vsel %vm623, %v1072, 0.0
        %1074 = vadd.xlane.f32.xlu0 %v1073
        %v1075 = vpop.xlane.xlu0 %1074
        %v1076 = vrcp.pop 32.0
        %v1077 = vmul.f32 %v1075, %v1076
        %v1078 = vmul.f32 %v1072, %v1072
        %v1079 = vsel %vm623, %v1078, 0.0
        %1080 = vadd.xlane.f32.xlu0 %v1079
        %v1081 = vpop.xlane.xlu0 %1080
        %v1082 = vmul.f32 %v1081, %v1076
        %v1083 = vmul.f32 %v1077, %v1077
        %v1084 = vsub.f32 %v1082, %v1083
        %v1085 = vsub.f32 %v1072, %v1077
        %v1086 = vadd.f32 %v1084, 1e-05
        %v1087 = vrsqrt.pop %v1086
        %v1088 = vmul.f32 %v1085, %v1087
        %v1089 = vld [vmem:[#allocation21] sm:$0x1]
        %v1091 = vlaneseq
        %v1092 = vshrl.u32 %v1091, 7
        %v1093 = vsub.s32 0, %v1092
        %v1094 = vrot.slane %v1089, %v1093
        %v1096 = vmul.f32 %v1088, %v1094
        %v1097 = vld [vmem:[#allocation23] sm:$0x1]
        %v1099 = vlaneseq
        %v1100 = vshrl.u32 %v1099, 7
        %v1101 = vsub.s32 0, %v1100
        %v1102 = vrot.slane %v1097, %v1101
        %v1104 = vadd.f32 %v1096, %v1102
        %v1105 = vpack.c.bf16 %v1104, %v1104
        %vm1106 = vcmask 257024
        %1107 = vst.msk [vmem:[%s592] sm:$0xf] %vm1106, %v1105
        %s1108 = sand.u32 %s305, 1
        %s1109 = scalar_lea.sflag [#allocation8], %s1108
        %s1110 = sand.u32 %s305, 1
        %s1111 = smul.addr %s1110, 4
        %s1112 = scalar_lea.vmem [#allocation24], %s1111
        // Predicated region
        $region109: #{_lambda_.24} parent=63 // pred_check
          %p1113 = pneg %p315
        $region110: #{_lambda_.24} parent=63 // pred_check_branch
          %1115 = sbr.rel (%p1113) target = $region112
        $region111: #{_lambda_.24} parent=63 // pred_region
          %s1117 = ssub.s32 64, 64
          %1118 = vsyncadd %s1109, %s1117
          %s1119 = sadd.s32 %s40, %s39
          %s1120 = smul.addr %s1119, 64
          %s1121 = scalar_lea.hbm %s11, %s1120
          %s1123 = sshll.u32 %s1112, 4
          %s1124 = int_to_ptr.vmem [resolvable:$true] %s1123
          %1126 = dma.vmem_to_hbm [thread:$0]  %s1124, 64, %s1121, %s1109
        $region112: #{_lambda_.24} parent=63 // pred_fallthru
          _
      $region64: #{_lambda_.24} parent=5 // pred_fallthru
        _
      %p1127 = scmp.le.s32.totalorder 2, %s30
      // Predicated region
      $region113: #{_lambda_.24} parent=5 // pred_check
        %p1128 = pneg %p1127
      $region114: #{_lambda_.24} parent=5 // pred_check_branch
        %1130 = sbr.rel (%p1128) target = $region116
      $region115: #{_lambda_.24} parent=5 // pred_region
        %s1131 = ssub.s32 %s30, 2
        // Predicated region
        $region117: #{_lambda_.24} parent=115 // pred_check
          %p1132 = pneg %p321
        $region118: #{_lambda_.24} parent=115 // pred_check_branch
          %1134 = sbr.rel (%p1132) target = $region120
        $region119: #{_lambda_.24} parent=115 // pred_region
          %s1135 = sand.u32 %s306, 1
          %s1136 = scalar_lea.sflag [#allocation8], %s1135
          %s1137 = sand.u32 %s306, 1
          %s1138 = smul.addr %s1137, 4
          %s1139 = scalar_lea.vmem [#allocation24], %s1138
          %1140 = dma.done %s1136, 64
        $region120: #{_lambda_.24} parent=115 // pred_fallthru
          _
      $region116: #{_lambda_.24} parent=5 // pred_fallthru
        _
    $region6: #{_lambda_.24} parent=1 // loop_footer
      %s34 = sadd.s32 1, %s30
    $region7: #{_lambda_.24} parent=1 // loop_footer_branch
      %29 = sbr.rel target = $region3
    $region8: #{_lambda_.24} parent=1 // loop_exit
      _
    %1141 = vsyncpa [#allocation7], 1
    %s1142 = scalar_lea.sflag [#allocation7], 1
    %1143 = vsyncpa %s1142, 1
    %1144 = vsyncpa [#allocation10], 1
    %s1145 = scalar_lea.sflag [#allocation10], 1
    %1146 = vsyncpa %s1145, 1
    %1147 = vsyncpa [#allocation13], 1
    %1148 = vsyncpa [#allocation16], 1
    %1149 = vsyncpa [#allocation19], 1
    %1150 = vsyncpa [#allocation22], 1
    %1151 = vsyncpa [#allocation8], 1
    %s1152 = scalar_lea.sflag [#allocation8], 1
    %1153 = vsyncpa %s1152, 1

// kernel: _lambda_.18
$region0: #{_lambda_.18}
  #allocation0 [shape = 'u32[]', space=smem, size = 0x4, offset = 0x4, fixed_abs, tag = 'smem constant byte address 0x4 - core index']
  #allocation1 [shape = 'u32[144,128]{1,0:T(1,128)}', space=vmem, size = 0x12000, scoped, tag = 'internal scratch']
  #allocation2 [shape = 'bf16[4,8,8]{2,1,0:T(8,128)(2,1)}', space=vmem, size = 0x2000, scoped, tag = 'scratch operand']
  #allocation3 [shape = 'bf16[4,8,8]{2,1,0:T(8,128)(2,1)}', space=vmem, size = 0x2000, scoped, tag = 'scratch operand']
  #allocation4 [shape = 'bf16[4,8,8]{2,1,0:T(8,128)(2,1)}', space=vmem, size = 0x2000, scoped, tag = 'scratch operand']
  #allocation5 [shape = 'bf16[8,32]{1,0:T(8,128)(2,1)}', space=vmem, size = 0x800, scoped, tag = 'scratch operand']
  %s0 = inlined_call_operand.hbm [shape: bf16[2,8,32], index: 0, kind: input, shape index: {}, may-alias: {0,1}]
  %s1 = inlined_call_operand.hbm [shape: bf16[2,8,32], index: 1, kind: input, shape index: {}, may-alias: {0,1}]
  %s2 = inlined_call_operand.hbm [shape: s8[2,1,8], index: 2, kind: input, shape index: {}]
  %s3 = inlined_call_operand.hbm [shape: bf16[32,32], index: 3, kind: input, shape index: {}]
  %s4 = inlined_call_operand.hbm [shape: f32[1,32], index: 4, kind: input, shape index: {}, may-alias: {4,8,10}]
  %s5 = inlined_call_operand.hbm [shape: bf16[32,64], index: 5, kind: input, shape index: {}]
  %s6 = inlined_call_operand.hbm [shape: f32[1,64], index: 6, kind: input, shape index: {}]
  %s7 = inlined_call_operand.hbm [shape: bf16[32,32], index: 7, kind: input, shape index: {}]
  %s8 = inlined_call_operand.hbm [shape: f32[1,32], index: 8, kind: input, shape index: {}, may-alias: {4,8,10}]
  %s9 = inlined_call_operand.hbm [shape: f32[1,32], index: 9, kind: input, shape index: {}]
  %s10 = inlined_call_operand.hbm [shape: f32[1,32], index: 10, kind: input, shape index: {}, may-alias: {4,8,10}]
  %s11 = inlined_call_operand.hbm [shape: bf16[2,8,32], index: 11, kind: output, shape index: {}]
  %s12 = sld [smem:[#allocation0]]
  $region121: #{_lambda_.18} parent=0
    _
  %s14 = ssub.s32 1, %s12
  %s15 = scalar_select 0, %s14, %s12
  $region1: #{_lambda_.18} parent=0
    #allocation6 [shape = 'u8[4096]{0}', space=vmem, size = 0x1000, scoped, tag = 'input window, operand 0']
    #allocation7 [shape = 's32[2]{0}', space=sflag, size = 0x8, scoped, tag = 'scoped memory for _lambda_.18']
    #allocation8 [shape = 's32[2]{0}', space=sflag, size = 0x8, scoped, tag = 'scoped memory for _lambda_.18']
    #allocation9 [shape = 'u8[4096]{0}', space=vmem, size = 0x1000, scoped, tag = 'input window, operand 1']
    #allocation10 [shape = 's32[2]{0}', space=sflag, size = 0x8, scoped, tag = 'scoped memory for _lambda_.18']
    #allocation11 [shape = 'u8[1024]{0}', space=vmem, size = 0x400, scoped, tag = 'input window, operand 2']
    #allocation12 [shape = 'u8[8192]{0}', space=vmem, size = 0x2000, scoped, tag = 'input window, operand 3, single buffered']
    #allocation13 [shape = 's32[1]{0}', space=sflag, size = 0x4, scoped, tag = 'scoped memory for _lambda_.18']
    #allocation14 [shape = 'u8[512]{0}', space=vmem, size = 0x400, scoped, tag = 'input window, operand 4, single buffered']
    #allocation15 [shape = 'u8[8192]{0}', space=vmem, size = 0x2000, scoped, tag = 'input window, operand 5, single buffered']
    #allocation16 [shape = 's32[1]{0}', space=sflag, size = 0x4, scoped, tag = 'scoped memory for _lambda_.18']
    #allocation17 [shape = 'u8[512]{0}', space=vmem, size = 0x400, scoped, tag = 'input window, operand 6, single buffered']
    #allocation18 [shape = 'u8[8192]{0}', space=vmem, size = 0x2000, scoped, tag = 'input window, operand 7, single buffered']
    #allocation19 [shape = 's32[1]{0}', space=sflag, size = 0x4, scoped, tag = 'scoped memory for _lambda_.18']
    #allocation20 [shape = 'u8[512]{0}', space=vmem, size = 0x400, scoped, tag = 'input window, operand 8, single buffered']
    #allocation21 [shape = 'u8[512]{0}', space=vmem, size = 0x400, scoped, tag = 'input window, operand 9, single buffered']
    #allocation22 [shape = 's32[1]{0}', space=sflag, size = 0x4, scoped, tag = 'scoped memory for _lambda_.18']
    #allocation23 [shape = 'u8[512]{0}', space=vmem, size = 0x400, scoped, tag = 'input window, operand 10, single buffered']
    #allocation24 [shape = 'u8[4096]{0}', space=vmem, size = 0x1000, scoped, tag = 'output window, operand 0']
    %16 = vsyncpa [#allocation7], 0
    %s17 = scalar_lea.sflag [#allocation7], 1
    %18 = vsyncpa %s17, 0
    %19 = vsyncpa [#allocation10], 0
    %s20 = scalar_lea.sflag [#allocation10], 1
    %21 = vsyncpa %s20, 0
    %22 = vsyncpa [#allocation13], 0
    %23 = vsyncpa [#allocation16], 0
    %24 = vsyncpa [#allocation19], 0
    %25 = vsyncpa [#allocation22], 0
    %26 = vsyncpa [#allocation8], 0
    %s27 = scalar_lea.sflag [#allocation8], 1
    %28 = vsyncpa %s27, 0
    loop: start=0, step=1, limit=4
    $region2: #{_lambda_.18} parent=1 // loop_pre_header
      _
    $region3: #{_lambda_.18} parent=1 // loop_header
      %s30 = sphi 0, %s34
      %p31 = scmp.ge.s32.totalorder %s30, 4
      %s37 = sphi 0, %s49
      %s38 = sphi 0, %s45
      %s39 = sphi 0, %s37
      %s40 = sphi 0, %s38
      %s41 = sphi 0, %s39
      %s42 = sphi 0, %s40
      %s54 = sphi 0, %s56
      %s57 = sphi 0, %s54
      %s58 = sphi 0, %s57
      %s74 = sphi 0, %s58
      %s80 = sphi 0, %s82
      %s83 = sphi 0, %s80
      %s84 = sphi 0, %s83
      %s100 = sphi 0, %s84
      %s106 = sphi 0, %s108
      %s109 = sphi 0, %s106
      %s110 = sphi 0, %s109
      %s126 = sphi 0, %s110
      %s130 = sphi 0, %s130
      %s132 = sphi 0, %s130
      %s133 = sphi 0, %s132
      %s147 = sphi 0, %s133
      %s151 = sphi 0, %s151
      %s153 = sphi 0, %s151
      %s154 = sphi 0, %s153
      %s168 = sphi 0, %s154
      %s172 = sphi 0, %s172
      %s174 = sphi 0, %s172
      %s175 = sphi 0, %s174
      %s189 = sphi 0, %s175
      %s193 = sphi 0, %s193
      %s195 = sphi 0, %s193
      %s196 = sphi 0, %s195
      %s210 = sphi 0, %s196
      %s214 = sphi 0, %s214
      %s216 = sphi 0, %s214
      %s217 = sphi 0, %s216
      %s231 = sphi 0, %s217
      %s235 = sphi 0, %s235
      %s237 = sphi 0, %s235
      %s238 = sphi 0, %s237
      %s252 = sphi 0, %s238
      %s256 = sphi 0, %s256
      %s258 = sphi 0, %s256
      %s259 = sphi 0, %s258
      %s273 = sphi 0, %s259
      %s277 = sphi 0, %s277
      %s279 = sphi 0, %s277
      %s280 = sphi 0, %s279
      %s294 = sphi 0, %s280
      %s302 = sphi 0, %s304
      %s305 = sphi 0, %s302
      %s306 = sphi 0, %s305
      %s322 = sphi 0, %s306
    $region4: #{_lambda_.18} parent=1 // loop_header_branch
      %33 = sbr.rel (%p31) target = $region8
    $region5: #{_lambda_.18} parent=1 // loop_body
      %s35 = ssub.s32 %s30, 1
      %s36 = ssub.s32 %s30, 2
      %s43 = sadd.s32 1, %s38
      %p44 = scmp.ge.s32.totalorder %s43, 1
      %s45 = scalar_select %p44, 0, %s43
      %s46 = sadd.s32 1, %s37
      %s47 = scalar_select %p44, %s46, %s37
      %p48 = scmp.ge.s32.totalorder %s47, 2
      %s49 = scalar_select %p48, 0, %s47
      %s50 = ssub.s32 %s37, %s49
      %s51 = ssub.s32 %s38, %s45
      %s52 = sor.u32 %s50, %s51
      %p53 = scmp.eq.s32.totalorder %s52, 0
      %s55 = sadd.s32 %s54, 1
      %s56 = scalar_select %p53, %s54, %s55
      %p59 = pneg %p53
      %p60 = scmp.eq.s32.totalorder %s30, 1
      %p61 = por %p59, %p60
      %p62 = scmp.ne.s32.totalorder %s54, %s57
      %p63 = scmp.eq.s32.totalorder %s30, 0
      %p64 = por %p62, %p63
      %p65 = scmp.ne.s32.totalorder %s54, %s57
      %p66 = scmp.eq.s32.totalorder %s35, 1
      %p67 = por %p65, %p66
      %p68 = scmp.ne.s32.totalorder %s57, %s58
      %p69 = scmp.eq.s32.totalorder %s35, 0
      %p70 = por %p68, %p69
      %p71 = scmp.ne.s32.totalorder %s57, %s58
      %p72 = scmp.eq.s32.totalorder %s36, 1
      %p73 = por %p71, %p72
      %p75 = scmp.ne.s32.totalorder %s58, %s74
      %p76 = scmp.eq.s32.totalorder %s36, 0
      %p77 = por %p75, %p76
      %s78 = ssub.s32 %s37, %s49
      %p79 = scmp.eq.s32.totalorder %s78, 0
      %s81 = sadd.s32 %s80, 1
      %s82 = scalar_select %p79, %s80, %s81
      %p85 = pneg %p79
      %p86 = scmp.eq.s32.totalorder %s30, 1
      %p87 = por %p85, %p86
      %p88 = scmp.ne.s32.totalorder %s80, %s83
      %p89 = scmp.eq.s32.totalorder %s30, 0
      %p90 = por %p88, %p89
      %p91 = scmp.ne.s32.totalorder %s80, %s83
      %p92 = scmp.eq.s32.totalorder %s35, 1
      %p93 = por %p91, %p92
      %p94 = scmp.ne.s32.totalorder %s83, %s84
      %p95 = scmp.eq.s32.totalorder %s35, 0
      %p96 = por %p94, %p95
      %p97 = scmp.ne.s32.totalorder %s83, %s84
      %p98 = scmp.eq.s32.totalorder %s36, 1
      %p99 = por %p97, %p98
      %p101 = scmp.ne.s32.totalorder %s84, %s100
      %p102 = scmp.eq.s32.totalorder %s36, 0
      %p103 = por %p101, %p102
      %s104 = ssub.s32 %s37, %s49
      %p105 = scmp.eq.s32.totalorder %s104, 0
      %s107 = sadd.s32 %s106, 1
      %s108 = scalar_select %p105, %s106, %s107
      %p111 = pneg %p105
      %p112 = scmp.eq.s32.totalorder %s30, 1
      %p113 = por %p111, %p112
      %p114 = scmp.ne.s32.totalorder %s106, %s109
      %p115 = scmp.eq.s32.totalorder %s30, 0
      %p116 = por %p114, %p115
      %p117 = scmp.ne.s32.totalorder %s106, %s109
      %p118 = scmp.eq.s32.totalorder %s35, 1
      %p119 = por %p117, %p118
      %p120 = scmp.ne.s32.totalorder %s109, %s110
      %p121 = scmp.eq.s32.totalorder %s35, 0
      %p122 = por %p120, %p121
      %p123 = scmp.ne.s32.totalorder %s109, %s110
      %p124 = scmp.eq.s32.totalorder %s36, 1
      %p125 = por %p123, %p124
      %p127 = scmp.ne.s32.totalorder %s110, %s126
      %p128 = scmp.eq.s32.totalorder %s36, 0
      %p129 = por %p127, %p128
      %s131 = sadd.s32 %s130, 1
      %p134 = scmp.eq.s32.totalorder %s30, 1
      %p135 = scmp.ne.s32.totalorder %s130, %s132
      %p136 = scmp.eq.s32.totalorder %s30, 0
      %p137 = por %p135, %p136
      %p138 = scmp.ne.s32.totalorder %s130, %s132
      %p139 = scmp.eq.s32.totalorder %s35, 1
      %p140 = por %p138, %p139
      %p141 = scmp.ne.s32.totalorder %s132, %s133
      %p142 = scmp.eq.s32.totalorder %s35, 0
      %p143 = por %p141, %p142
      %p144 = scmp.ne.s32.totalorder %s132, %s133
      %p145 = scmp.eq.s32.totalorder %s36, 1
      %p146 = por %p144, %p145
      %p148 = scmp.ne.s32.totalorder %s133, %s147
      %p149 = scmp.eq.s32.totalorder %s36, 0
      %p150 = por %p148, %p149
      %s152 = sadd.s32 %s151, 1
      %p155 = scmp.eq.s32.totalorder %s30, 1
      %p156 = scmp.ne.s32.totalorder %s151, %s153
      %p157 = scmp.eq.s32.totalorder %s30, 0
      %p158 = por %p156, %p157
      %p159 = scmp.ne.s32.totalorder %s151, %s153
      %p160 = scmp.eq.s32.totalorder %s35, 1
      %p161 = por %p159, %p160
      %p162 = scmp.ne.s32.totalorder %s153, %s154
      %p163 = scmp.eq.s32.totalorder %s35, 0
      %p164 = por %p162, %p163
      %p165 = scmp.ne.s32.totalorder %s153, %s154
      %p166 = scmp.eq.s32.totalorder %s36, 1
      %p167 = por %p165, %p166
      %p169 = scmp.ne.s32.totalorder %s154, %s168
      %p170 = scmp.eq.s32.totalorder %s36, 0
      %p171 = por %p169, %p170
      %s173 = sadd.s32 %s172, 1
      %p176 = scmp.eq.s32.totalorder %s30, 1
      %p177 = scmp.ne.s32.totalorder %s172, %s174
      %p178 = scmp.eq.s32.totalorder %s30, 0
      %p179 = por %p177, %p178
      %p180 = scmp.ne.s32.totalorder %s172, %s174
      %p181 = scmp.eq.s32.totalorder %s35, 1
      %p182 = por %p180, %p181
      %p183 = scmp.ne.s32.totalorder %s174, %s175
      %p184 = scmp.eq.s32.totalorder %s35, 0
      %p185 = por %p183, %p184
      %p186 = scmp.ne.s32.totalorder %s174, %s175
      %p187 = scmp.eq.s32.totalorder %s36, 1
      %p188 = por %p186, %p187
      %p190 = scmp.ne.s32.totalorder %s175, %s189
      %p191 = scmp.eq.s32.totalorder %s36, 0
      %p192 = por %p190, %p191
      %s194 = sadd.s32 %s193, 1
      %p197 = scmp.eq.s32.totalorder %s30, 1
      %p198 = scmp.ne.s32.totalorder %s193, %s195
      %p199 = scmp.eq.s32.totalorder %s30, 0
      %p200 = por %p198, %p199
      %p201 = scmp.ne.s32.totalorder %s193, %s195
      %p202 = scmp.eq.s32.totalorder %s35, 1
      %p203 = por %p201, %p202
      %p204 = scmp.ne.s32.totalorder %s195, %s196
      %p205 = scmp.eq.s32.totalorder %s35, 0
      %p206 = por %p204, %p205
      %p207 = scmp.ne.s32.totalorder %s195, %s196
      %p208 = scmp.eq.s32.totalorder %s36, 1
      %p209 = por %p207, %p208
      %p211 = scmp.ne.s32.totalorder %s196, %s210
      %p212 = scmp.eq.s32.totalorder %s36, 0
      %p213 = por %p211, %p212
      %s215 = sadd.s32 %s214, 1
      %p218 = scmp.eq.s32.totalorder %s30, 1
      %p219 = scmp.ne.s32.totalorder %s214, %s216
      %p220 = scmp.eq.s32.totalorder %s30, 0
      %p221 = por %p219, %p220
      %p222 = scmp.ne.s32.totalorder %s214, %s216
      %p223 = scmp.eq.s32.totalorder %s35, 1
      %p224 = por %p222, %p223
      %p225 = scmp.ne.s32.totalorder %s216, %s217
      %p226 = scmp.eq.s32.totalorder %s35, 0
      %p227 = por %p225, %p226
      %p228 = scmp.ne.s32.totalorder %s216, %s217
      %p229 = scmp.eq.s32.totalorder %s36, 1
      %p230 = por %p228, %p229
      %p232 = scmp.ne.s32.totalorder %s217, %s231
      %p233 = scmp.eq.s32.totalorder %s36, 0
      %p234 = por %p232, %p233
      %s236 = sadd.s32 %s235, 1
      %p239 = scmp.eq.s32.totalorder %s30, 1
      %p240 = scmp.ne.s32.totalorder %s235, %s237
      %p241 = scmp.eq.s32.totalorder %s30, 0
      %p242 = por %p240, %p241
      %p243 = scmp.ne.s32.totalorder %s235, %s237
      %p244 = scmp.eq.s32.totalorder %s35, 1
      %p245 = por %p243, %p244
      %p246 = scmp.ne.s32.totalorder %s237, %s238
      %p247 = scmp.eq.s32.totalorder %s35, 0
      %p248 = por %p246, %p247
      %p249 = scmp.ne.s32.totalorder %s237, %s238
      %p250 = scmp.eq.s32.totalorder %s36, 1
      %p251 = por %p249, %p250
      %p253 = scmp.ne.s32.totalorder %s238, %s252
      %p254 = scmp.eq.s32.totalorder %s36, 0
      %p255 = por %p253, %p254
      %s257 = sadd.s32 %s256, 1
      %p260 = scmp.eq.s32.totalorder %s30, 1
      %p261 = scmp.ne.s32.totalorder %s256, %s258
      %p262 = scmp.eq.s32.totalorder %s30, 0
      %p263 = por %p261, %p262
      %p264 = scmp.ne.s32.totalorder %s256, %s258
      %p265 = scmp.eq.s32.totalorder %s35, 1
      %p266 = por %p264, %p265
      %p267 = scmp.ne.s32.totalorder %s258, %s259
      %p268 = scmp.eq.s32.totalorder %s35, 0
      %p269 = por %p267, %p268
      %p270 = scmp.ne.s32.totalorder %s258, %s259
      %p271 = scmp.eq.s32.totalorder %s36, 1
      %p272 = por %p270, %p271
      %p274 = scmp.ne.s32.totalorder %s259, %s273
      %p275 = scmp.eq.s32.totalorder %s36, 0
      %p276 = por %p274, %p275
      %s278 = sadd.s32 %s277, 1
      %p281 = scmp.eq.s32.totalorder %s30, 1
      %p282 = scmp.ne.s32.totalorder %s277, %s279
      %p283 = scmp.eq.s32.totalorder %s30, 0
      %p284 = por %p282, %p283
      %p285 = scmp.ne.s32.totalorder %s277, %s279
      %p286 = scmp.eq.s32.totalorder %s35, 1
      %p287 = por %p285, %p286
      %p288 = scmp.ne.s32.totalorder %s279, %s280
      %p289 = scmp.eq.s32.totalorder %s35, 0
      %p290 = por %p288, %p289
      %p291 = scmp.ne.s32.totalorder %s279, %s280
      %p292 = scmp.eq.s32.totalorder %s36, 1
      %p293 = por %p291, %p292
      %p295 = scmp.ne.s32.totalorder %s280, %s294
      %p296 = scmp.eq.s32.totalorder %s36, 0
      %p297 = por %p295, %p296
      %s298 = ssub.s32 %s37, %s49
      %s299 = ssub.s32 %s38, %s45
      %s300 = sor.u32 %s298, %s299
      %p301 = scmp.eq.s32.totalorder %s300, 0
      %s303 = sadd.s32 %s302, 1
      %s304 = scalar_select %p301, %s302, %s303
      %p307 = pneg %p301
      %p308 = scmp.eq.s32.totalorder %s30, 1
      %p309 = por %p307, %p308
      %p310 = scmp.ne.s32.totalorder %s302, %s305
      %p311 = scmp.eq.s32.totalorder %s30, 0
      %p312 = por %p310, %p311
      %p313 = scmp.ne.s32.totalorder %s302, %s305
      %p314 = scmp.eq.s32.totalorder %s35, 1
      %p315 = por %p313, %p314
      %p316 = scmp.ne.s32.totalorder %s305, %s306
      %p317 = scmp.eq.s32.totalorder %s35, 0
      %p318 = por %p316, %p317
      %p319 = scmp.ne.s32.totalorder %s305, %s306
      %p320 = scmp.eq.s32.totalorder %s36, 1
      %p321 = por %p319, %p320
      %p323 = scmp.ne.s32.totalorder %s306, %s322
      %p324 = scmp.eq.s32.totalorder %s36, 0
      %p325 = por %p323, %p324
      %p326 = scmp.le.s32.totalorder 1, %s30
      %p327 = scmp.lt.s32.totalorder %s30, 3
      %p328 = pnand %p326, %p327
      %p329 = pneg %p328
      // Predicated region
      $region9: #{_lambda_.18} parent=5 // pred_check
        _
      $region10: #{_lambda_.18} parent=5 // pred_check_branch
        %331 = sbr.rel (%p328) target = $region12
      $region11: #{_lambda_.18} parent=5 // pred_region
        %s332 = ssub.s32 %s30, 1
        // Predicated region
        $region13: #{_lambda_.18} parent=11 // pred_check
          %p333 = pneg %p143
        $region14: #{_lambda_.18} parent=11 // pred_check_branch
          %335 = sbr.rel (%p333) target = $region16
        $region15: #{_lambda_.18} parent=11 // pred_region
          %s337 = ssub.s32 256, 256
          %338 = vsyncadd [#allocation13], %s337
          %s339 = sshll.u32 [#allocation12], 4
          %s340 = int_to_ptr.vmem [resolvable:$true] %s339
          %345 = dma.hbm_to_vmem [thread:$0]  %s3, 256, %s340, [#allocation13], 64, 64, 4
        $region16: #{_lambda_.18} parent=11 // pred_fallthru
          _
        // Predicated region
        $region17: #{_lambda_.18} parent=11 // pred_check
          %p346 = pneg %p164
        $region18: #{_lambda_.18} parent=11 // pred_check_branch
          %348 = sbr.rel (%p346) target = $region20
        $region19: #{_lambda_.18} parent=11 // pred_region
          %s350 = ssub.s32 16, 16
          %351 = vsyncadd [#allocation13], %s350
          %s353 = sshll.u32 [#allocation14], 4
          %s354 = int_to_ptr.vmem [resolvable:$true] %s353
          %356 = dma.hbm_to_vmem [thread:$0]  %s4, 16, %s354, [#allocation13]
        $region20: #{_lambda_.18} parent=11 // pred_fallthru
          _
        // Predicated region
        $region21: #{_lambda_.18} parent=11 // pred_check
          %p357 = pneg %p185
        $region22: #{_lambda_.18} parent=11 // pred_check_branch
          %359 = sbr.rel (%p357) target = $region24
        $region23: #{_lambda_.18} parent=11 // pred_region
          %s361 = ssub.s32 256, 256
          %362 = vsyncadd [#allocation16], %s361
          %s363 = sshll.u32 [#allocation15], 4
          %s364 = int_to_ptr.vmem [resolvable:$true] %s363
          %369 = dma.hbm_to_vmem [thread:$0]  %s5, 256, %s364, [#allocation16], 64, 64, 4
        $region24: #{_lambda_.18} parent=11 // pred_fallthru
          _
        // Predicated region
        $region25: #{_lambda_.18} parent=11 // pred_check
          %p370 = pneg %p206
        $region26: #{_lambda_.18} parent=11 // pred_check_branch
          %372 = sbr.rel (%p370) target = $region28
        $region27: #{_lambda_.18} parent=11 // pred_region
          %s374 = ssub.s32 16, 16
          %375 = vsyncadd [#allocation16], %s374
          %s377 = sshll.u32 [#allocation17], 4
          %s378 = int_to_ptr.vmem [resolvable:$true] %s377
          %380 = dma.hbm_to_vmem [thread:$0]  %s6, 16, %s378, [#allocation16]
        $region28: #{_lambda_.18} parent=11 // pred_fallthru
          _
        // Predicated region
        $region29: #{_lambda_.18} parent=11 // pred_check
          %p381 = pneg %p227
        $region30: #{_lambda_.18} parent=11 // pred_check_branch
          %383 = sbr.rel (%p381) target = $region32
        $region31: #{_lambda_.18} parent=11 // pred_region
          %s385 = ssub.s32 256, 256
          %386 = vsyncadd [#allocation19], %s385
          %s387 = sshll.u32 [#allocation18], 4
          %s388 = int_to_ptr.vmem [resolvable:$true] %s387
          %393 = dma.hbm_to_vmem [thread:$0]  %s7, 256, %s388, [#allocation19], 64, 64, 4
        $region32: #{_lambda_.18} parent=11 // pred_fallthru
          _
        // Predicated region
        $region33: #{_lambda_.18} parent=11 // pred_check
          %p394 = pneg %p248
        $region34: #{_lambda_.18} parent=11 // pred_check_branch
          %396 = sbr.rel (%p394) target = $region36
        $region35: #{_lambda_.18} parent=11 // pred_region
          %s398 = ssub.s32 16, 16
          %399 = vsyncadd [#allocation19], %s398
          %s401 = sshll.u32 [#allocation20], 4
          %s402 = int_to_ptr.vmem [resolvable:$true] %s401
          %404 = dma.hbm_to_vmem [thread:$0]  %s8, 16, %s402, [#allocation19]
        $region36: #{_lambda_.18} parent=11 // pred_fallthru
          _
        // Predicated region
        $region37: #{_lambda_.18} parent=11 // pred_check
          %p405 = pneg %p269
        $region38: #{_lambda_.18} parent=11 // pred_check_branch
          %407 = sbr.rel (%p405) target = $region40
        $region39: #{_lambda_.18} parent=11 // pred_region
          %s409 = ssub.s32 16, 16
          %410 = vsyncadd [#allocation22], %s409
          %s412 = sshll.u32 [#allocation21], 4
          %s413 = int_to_ptr.vmem [resolvable:$true] %s412
          %415 = dma.hbm_to_vmem [thread:$0]  %s9, 16, %s413, [#allocation22]
        $region40: #{_lambda_.18} parent=11 // pred_fallthru
          _
        // Predicated region
        $region41: #{_lambda_.18} parent=11 // pred_check
          %p416 = pneg %p290
        $region42: #{_lambda_.18} parent=11 // pred_check_branch
          %418 = sbr.rel (%p416) target = $region44
        $region43: #{_lambda_.18} parent=11 // pred_region
          %s420 = ssub.s32 16, 16
          %421 = vsyncadd [#allocation22], %s420
          %s423 = sshll.u32 [#allocation23], 4
          %s424 = int_to_ptr.vmem [resolvable:$true] %s423
          %426 = dma.hbm_to_vmem [thread:$0]  %s10, 16, %s424, [#allocation22]
        $region44: #{_lambda_.18} parent=11 // pred_fallthru
          _
      $region12: #{_lambda_.18} parent=5 // pred_fallthru
        _
      %p427 = scmp.lt.s32.totalorder %s30, 2
      // Predicated region
      $region45: #{_lambda_.18} parent=5 // pred_check
        %p428 = pneg %p427
      $region46: #{_lambda_.18} parent=5 // pred_check_branch
        %430 = sbr.rel (%p428) target = $region48
      $region47: #{_lambda_.18} parent=5 // pred_region
        // Predicated region
        $region49: #{_lambda_.18} parent=47 // pred_check
          %p431 = pneg %p64
        $region50: #{_lambda_.18} parent=47 // pred_check_branch
          %433 = sbr.rel (%p431) target = $region52
        $region51: #{_lambda_.18} parent=47 // pred_region
          %s434 = sand.u32 %s54, 1
          %s435 = scalar_lea.sflag [#allocation7], %s434
          %s436 = sand.u32 %s54, 1
          %s437 = smul.addr %s436, 4
          %s438 = scalar_lea.vmem [#allocation6], %s437
          %s440 = ssub.s32 64, 64
          %441 = vsyncadd %s435, %s440
          %s442 = sadd.s32 %s38, %s37
          %s443 = smul.addr %s442, 64
          %s444 = scalar_lea.hbm %s0, %s443
          %s446 = sshll.u32 %s438, 4
          %s447 = int_to_ptr.vmem [resolvable:$true] %s446
          %449 = dma.hbm_to_vmem [thread:$0]  %s444, 64, %s447, %s435
        $region52: #{_lambda_.18} parent=47 // pred_fallthru
          _
        // Predicated region
        $region53: #{_lambda_.18} parent=47 // pred_check
          %p450 = pneg %p90
        $region54: #{_lambda_.18} parent=47 // pred_check_branch
          %452 = sbr.rel (%p450) target = $region56
        $region55: #{_lambda_.18} parent=47 // pred_region
          %s453 = sand.u32 %s30, 1
          %s454 = scalar_lea.sflag [#allocation10], %s453
          %s455 = sand.u32 %s80, 1
          %s456 = smul.addr %s455, 4
          %s457 = scalar_lea.vmem [#allocation9], %s456
          %s459 = ssub.s32 64, 64
          %460 = vsyncadd %s454, %s459
          %s461 = smul.addr %s37, 64
          %s462 = scalar_lea.hbm %s1, %s461
          %s464 = sshll.u32 %s457, 4
          %s465 = int_to_ptr.vmem [resolvable:$true] %s464
          %467 = dma.hbm_to_vmem [thread:$0]  %s462, 64, %s465, %s454
        $region56: #{_lambda_.18} parent=47 // pred_fallthru
          _
        // Predicated region
        $region57: #{_lambda_.18} parent=47 // pred_check
          %p468 = pneg %p116
        $region58: #{_lambda_.18} parent=47 // pred_check_branch
          %470 = sbr.rel (%p468) target = $region60
        $region59: #{_lambda_.18} parent=47 // pred_region
          %s471 = sand.u32 %s30, 1
          %s472 = scalar_lea.sflag [#allocation10], %s471
          %s473 = sand.u32 %s106, 1
          %s474 = scalar_lea.vmem [#allocation11], %s473
          %s476 = ssub.s32 16, 16
          %477 = vsyncadd %s472, %s476
          %s478 = smul.addr %s37, 16
          %s479 = scalar_lea.hbm %s2, %s478
          %s481 = sshll.u32 %s474, 4
          %s482 = int_to_ptr.vmem [resolvable:$true] %s481
          %484 = dma.hbm_to_vmem [thread:$0]  %s479, 16, %s482, %s472
        $region60: #{_lambda_.18} parent=47 // pred_fallthru
          _
      $region48: #{_lambda_.18} parent=5 // pred_fallthru
        _
      %p485 = scmp.le.s32.totalorder 1, %s30
      %p486 = scmp.lt.s32.totalorder %s30, 3
      %p487 = pnand %p485, %p486
      %p488 = pneg %p487
      // Predicated region
      $region61: #{_lambda_.18} parent=5 // pred_check
        _
      $region62: #{_lambda_.18} parent=5 // pred_check_branch
        %490 = sbr.rel (%p487) target = $region64
      $region63: #{_lambda_.18} parent=5 // pred_region
        %s491 = ssub.s32 %s30, 1
        %s492 = sand.u32 %s57, 1
        %s493 = scalar_lea.sflag [#allocation7], %s492
        %s494 = sand.u32 %s57, 1
        %s495 = smul.addr %s494, 4
        %s496 = scalar_lea.vmem [#allocation6], %s495
        // Predicated region
        $region65: #{_lambda_.18} parent=63 // pred_check
          %p497 = pneg %p70
        $region66: #{_lambda_.18} parent=63 // pred_check_branch
          %499 = sbr.rel (%p497) target = $region68
        $region67: #{_lambda_.18} parent=63 // pred_region
          %500 = dma.done %s493, 64
        $region68: #{_lambda_.18} parent=63 // pred_fallthru
          _
        %s501 = sand.u32 %s35, 1
        %s502 = scalar_lea.sflag [#allocation10], %s501
        %s503 = sand.u32 %s83, 1
        %s504 = smul.addr %s503, 4
        %s505 = scalar_lea.vmem [#allocation9], %s504
        // Predicated region
        $region69: #{_lambda_.18} parent=63 // pred_check
          %p506 = pneg %p96
        $region70: #{_lambda_.18} parent=63 // pred_check_branch
          %508 = sbr.rel (%p506) target = $region72
        $region71: #{_lambda_.18} parent=63 // pred_region
          %509 = dma.done %s502, 64
        $region72: #{_lambda_.18} parent=63 // pred_fallthru
          _
        %s510 = sand.u32 %s35, 1
        %s511 = scalar_lea.sflag [#allocation10], %s510
        %s512 = sand.u32 %s109, 1
        %s513 = scalar_lea.vmem [#allocation11], %s512
        // Predicated region
        $region73: #{_lambda_.18} parent=63 // pred_check
          %p514 = pneg %p122
        $region74: #{_lambda_.18} parent=63 // pred_check_branch
          %516 = sbr.rel (%p514) target = $region76
        $region75: #{_lambda_.18} parent=63 // pred_region
          %517 = dma.done %s511, 16
        $region76: #{_lambda_.18} parent=63 // pred_fallthru
          _
        // Predicated region
        $region77: #{_lambda_.18} parent=63 // pred_check
          %p518 = pneg %p143
        $region78: #{_lambda_.18} parent=63 // pred_check_branch
          %520 = sbr.rel (%p518) target = $region80
        $region79: #{_lambda_.18} parent=63 // pred_region
          %521 = dma.done [#allocation13], 256
        $region80: #{_lambda_.18} parent=63 // pred_fallthru
          _
        // Predicated region
        $region81: #{_lambda_.18} parent=63 // pred_check
          %p522 = pneg %p164
        $region82: #{_lambda_.18} parent=63 // pred_check_branch
          %524 = sbr.rel (%p522) target = $region84
        $region83: #{_lambda_.18} parent=63 // pred_region
          %525 = dma.done [#allocation13], 16
        $region84: #{_lambda_.18} parent=63 // pred_fallthru
          _
        // Predicated region
        $region85: #{_lambda_.18} parent=63 // pred_check
          %p526 = pneg %p185
        $region86: #{_lambda_.18} parent=63 // pred_check_branch
          %528 = sbr.rel (%p526) target = $region88
        $region87: #{_lambda_.18} parent=63 // pred_region
          %529 = dma.done [#allocation16], 256
        $region88: #{_lambda_.18} parent=63 // pred_fallthru
          _
        // Predicated region
        $region89: #{_lambda_.18} parent=63 // pred_check
          %p530 = pneg %p206
        $region90: #{_lambda_.18} parent=63 // pred_check_branch
          %532 = sbr.rel (%p530) target = $region92
        $region91: #{_lambda_.18} parent=63 // pred_region
          %533 = dma.done [#allocation16], 16
        $region92: #{_lambda_.18} parent=63 // pred_fallthru
          _
        // Predicated region
        $region93: #{_lambda_.18} parent=63 // pred_check
          %p534 = pneg %p227
        $region94: #{_lambda_.18} parent=63 // pred_check_branch
          %536 = sbr.rel (%p534) target = $region96
        $region95: #{_lambda_.18} parent=63 // pred_region
          %537 = dma.done [#allocation19], 256
        $region96: #{_lambda_.18} parent=63 // pred_fallthru
          _
        // Predicated region
        $region97: #{_lambda_.18} parent=63 // pred_check
          %p538 = pneg %p248
        $region98: #{_lambda_.18} parent=63 // pred_check_branch
          %540 = sbr.rel (%p538) target = $region100
        $region99: #{_lambda_.18} parent=63 // pred_region
          %541 = dma.done [#allocation19], 16
        $region100: #{_lambda_.18} parent=63 // pred_fallthru
          _
        // Predicated region
        $region101: #{_lambda_.18} parent=63 // pred_check
          %p542 = pneg %p269
        $region102: #{_lambda_.18} parent=63 // pred_check_branch
          %544 = sbr.rel (%p542) target = $region104
        $region103: #{_lambda_.18} parent=63 // pred_region
          %545 = dma.done [#allocation22], 16
        $region104: #{_lambda_.18} parent=63 // pred_fallthru
          _
        // Predicated region
        $region105: #{_lambda_.18} parent=63 // pred_check
          %p546 = pneg %p290
        $region106: #{_lambda_.18} parent=63 // pred_check_branch
          %548 = sbr.rel (%p546) target = $region108
        $region107: #{_lambda_.18} parent=63 // pred_region
          %549 = dma.done [#allocation22], 16
        $region108: #{_lambda_.18} parent=63 // pred_fallthru
          _
        %s550 = sand.u32 %s57, 1
        %s551 = scalar_lea.sflag [#allocation7], %s550
        %s552 = sand.u32 %s57, 1
        %s553 = smul.addr %s552, 4
        %s554 = scalar_lea.vmem [#allocation6], %s553
        %p555 = pneg %p70
        %p556 = pneg %p67
        %s557 = sand.u32 %s35, 1
        %s558 = scalar_lea.sflag [#allocation10], %s557
        %s559 = sand.u32 %s83, 1
        %s560 = smul.addr %s559, 4
        %s561 = scalar_lea.vmem [#allocation9], %s560
        %p562 = pneg %p96
        %p563 = pneg %p93
        %s564 = sand.u32 %s35, 1
        %s565 = scalar_lea.sflag [#allocation10], %s564
        %s566 = sand.u32 %s109, 1
        %s567 = scalar_lea.vmem [#allocation11], %s566
        %p568 = pneg %p122
        %p569 = pneg %p119
        %p570 = pneg %p143
        %p571 = pneg %p140
        %p572 = pneg %p164
        %p573 = pneg %p161
        %p574 = pneg %p185
        %p575 = pneg %p182
        %p576 = pneg %p206
        %p577 = pneg %p203
        %p578 = pneg %p227
        %p579 = pneg %p224
        %p580 = pneg %p248
        %p581 = pneg %p245
        %p582 = pneg %p269
        %p583 = pneg %p266
        %p584 = pneg %p290
        %p585 = pneg %p287
        %p586 = pneg %p318
        %p587 = pneg %p315
        %s588 = sand.u32 %s305, 1
        %s589 = scalar_lea.sflag [#allocation8], %s588
        %s590 = sand.u32 %s305, 1
        %s591 = smul.addr %s590, 4
        %s592 = scalar_lea.vmem [#allocation24], %s591
        %v596 = vld [vmem:[%s496] sm:$0xf]
        %v597 = vld [vmem:[%s505] sm:$0xf]
        %v598 = vld [vmem:[%s513] sm:$0x1]
        %vm599 = vnez %v598
        %v600 = vld [vmem:[#allocation12] sm:$0xf]
        %v601 = vld [vmem:[#allocation12 + $0x4] sm:$0xf]
        %v602 = vld [vmem:[#allocation12 + $0x8] sm:$0xf]
        %v603 = vld [vmem:[#allocation12 + $0xc] sm:$0xf]
        %v604 = vld [vmem:[#allocation14] sm:$0x1]
        %v606 = vlaneseq
        %v607 = vshrl.u32 %v606, 7
        %v608 = vsub.s32 0, %v607
        %v609 = vrot.slane %v604, %v608
        %v615 = vunpack.c.l.b16 %v600
        %v616 = vunpack.c.l.b16 %v601
        %v617 = vunpack.c.l.b16 %v602
        %v618 = vunpack.c.l.b16 %v603
        %v619 = vpack.c.b16 %v616, %v615
        %v620 = vpack.c.b16 %v618, %v617
        %vm623 = vcmask 261120
        %v625 = vsel %vm623, %v596, 0
        %627 = vmatprep.subr.bf16.mxu0 0
        %628 = vmatpush1.bf16.msra.mxu0 %v619
        %629 = vmatprep.subr.bf16.mxu0 0
        %630 = vmatpush1.bf16.msra.mxu0 %v620
        %631 = vmatprep.subr.bf16.mxu0 0
        %632 = vmatpush1.bf16.msra.mxu0 0
        %633 = vmatprep.subr.bf16.mxu0 0
        %634 = vmatpush1.bf16.msra.mxu0 0
        %635 = vmatprep.subr.bf16.mxu0 0
        %636 = vmatpush1.bf16.msra.mxu0 0
        %637 = vmatprep.subr.bf16.mxu0 0
        %638 = vmatpush1.bf16.msra.mxu0 0
        %639 = vmatprep.subr.bf16.mxu0 0
        %640 = vmatpush1.bf16.msra.mxu0 0
        %641 = vmatprep.subr.bf16.mxu0 0
        %642 = vmatpush1.bf16.msra.mxu0 0
        %643 = vmatprep.subr.bf16.mxu0 0
        %644 = vmatpush1.bf16.msra.mxu0 0
        %645 = vmatprep.subr.bf16.mxu0 0
        %646 = vmatpush1.bf16.msra.mxu0 0
        %647 = vmatprep.subr.bf16.mxu0 0
        %648 = vmatpush1.bf16.msra.mxu0 0
        %649 = vmatprep.subr.bf16.mxu0 0
        %650 = vmatpush1.bf16.msra.mxu0 0
        %651 = vmatprep.subr.bf16.mxu0 0
        %652 = vmatpush1.bf16.msra.mxu0 0
        %653 = vmatprep.subr.bf16.mxu0 0
        %654 = vmatpush1.bf16.msra.mxu0 0
        %655 = vmatprep.subr.bf16.mxu0 0
        %656 = vmatpush1.bf16.msra.mxu0 0
        %657 = vmatprep.subr.bf16.mxu0 0
        %658 = vmatpush1.bf16.msra.mxu0 0
        %659 = vmatprep.mubr.bf16.mxu0 0
        %660 = vmatmul.mubr.bf16.gmra.mrb[0].mxu0 %v625
        %v661 = vpop.f32.mrb[0].mxu0
        %v662 = vadd.f32 %v609, %v661
        %v663 = vpop.f32.mrb[0].mxu0
        %v664 = vpop.f32.mrb[0].mxu0
        %v665 = vpop.f32.mrb[0].mxu0
        %666 = vdwg.mxu0
        %v667 = vld [vmem:[#allocation15] sm:$0xf]
        %v668 = vld [vmem:[#allocation15 + $0x4] sm:$0xf]
        %v669 = vld [vmem:[#allocation15 + $0x8] sm:$0xf]
        %v670 = vld [vmem:[#allocation15 + $0xc] sm:$0xf]
        %v671 = vld [vmem:[#allocation17] sm:$0x1]
        %v673 = vlaneseq
        %v674 = vshrl.u32 %v673, 7
        %v675 = vsub.s32 0, %v674
        %v676 = vrot.slane %v671, %v675
        %v682 = vunpack.c.l.b16 %v667
        %v683 = vunpack.c.l.b16 %v668
        %v684 = vunpack.c.l.b16 %v669
        %v685 = vunpack.c.l.b16 %v670
        %v686 = vpack.c.b16 %v683, %v682
        %v687 = vpack.c.b16 %v685, %v684
        %v691 = vsel %vm623, %v597, 0
        %693 = vmatprep.subr.bf16.mxu0 0
        %694 = vmatpush1.bf16.msra.mxu0 %v686
        %695 = vmatprep.subr.bf16.mxu0 0
        %696 = vmatpush1.bf16.msra.mxu0 %v687
        %697 = vmatprep.subr.bf16.mxu0 0
        %698 = vmatpush1.bf16.msra.mxu0 0
        %699 = vmatprep.subr.bf16.mxu0 0
        %700 = vmatpush1.bf16.msra.mxu0 0
        %701 = vmatprep.subr.bf16.mxu0 0
        %702 = vmatpush1.bf16.msra.mxu0 0
        %703 = vmatprep.subr.bf16.mxu0 0
        %704 = vmatpush1.bf16.msra.mxu0 0
        %705 = vmatprep.subr.bf16.mxu0 0
        %706 = vmatpush1.bf16.msra.mxu0 0
        %707 = vmatprep.subr.bf16.mxu0 0
        %708 = vmatpush1.bf16.msra.mxu0 0
        %709 = vmatprep.subr.bf16.mxu0 0
        %710 = vmatpush1.bf16.msra.mxu0 0
        %711 = vmatprep.subr.bf16.mxu0 0
        %712 = vmatpush1.bf16.msra.mxu0 0
        %713 = vmatprep.subr.bf16.mxu0 0
        %714 = vmatpush1.bf16.msra.mxu0 0
        %715 = vmatprep.subr.bf16.mxu0 0
        %716 = vmatpush1.bf16.msra.mxu0 0
        %717 = vmatprep.subr.bf16.mxu0 0
        %718 = vmatpush1.bf16.msra.mxu0 0
        %719 = vmatprep.subr.bf16.mxu0 0
        %720 = vmatpush1.bf16.msra.mxu0 0
        %721 = vmatprep.subr.bf16.mxu0 0
        %722 = vmatpush1.bf16.msra.mxu0 0
        %723 = vmatprep.subr.bf16.mxu0 0
        %724 = vmatpush1.bf16.msra.mxu0 0
        %725 = vmatprep.mubr.bf16.mxu0 0
        %726 = vmatmul.mubr.bf16.gmra.mrb[0].mxu0 %v691
        %v727 = vpop.f32.mrb[0].mxu0
        %v728 = vadd.f32 %v676, %v727
        %v729 = vpop.f32.mrb[0].mxu0
        %v730 = vpop.f32.mrb[0].mxu0
        %v731 = vpop.f32.mrb[0].mxu0
        %732 = vdwg.mxu0
        %v733 = vpack.c.bf16 %v662, %v662
        %vm734 = vcmask 60416
        %735 = vst.msk [vmem:[#allocation2] sm:$0xf] %vm734, %v733
        %v736 = vpack.c.bf16 %v728, %v728
        %737 = vst.msk [vmem:[#allocation3] sm:$0xf] %vm734, %v736
        %v739 = vunpack.c.l.b16 %v736
        %v740 = vpack.c.b16 %v739, %v739
        %741 = vrot.lane.b32.xlu0 %v740, 96
        %v742 = vpop.permute.xlu0 %741
        %744 = vst.msk [vmem:[#allocation4] sm:$0xf] %vm734, %v742
        %v746 = vunpack.c.l.b16 %v733
        %v747 = vpack.c.b16 %v746, %v746
        %748 = vrot.lane.b32.xlu0 %v747, 120
        %v749 = vpop.permute.xlu0 %748
        %s751 = scalar_lea.vmem [#allocation2], 4
        %752 = vst.msk [vmem:[%s751] sm:$0xf] %vm734, %v749
        %753 = vrot.lane.b32.xlu0 %v740, 120
        %v754 = vpop.permute.xlu0 %753
        %s756 = scalar_lea.vmem [#allocation3], 4
        %757 = vst.msk [vmem:[%s756] sm:$0xf] %vm734, %v754
        %758 = vrot.lane.b32.xlu0 %v740, 88
        %v759 = vpop.permute.xlu0 %758
        %s761 = scalar_lea.vmem [#allocation4], 4
        %762 = vst.msk [vmem:[%s761] sm:$0xf] %vm734, %v759
        %763 = vrot.lane.b32.xlu0 %v747, 112
        %v764 = vpop.permute.xlu0 %763
        %s766 = scalar_lea.vmem [#allocation2], 8
        %767 = vst.msk [vmem:[%s766] sm:$0xf] %vm734, %v764
        %768 = vrot.lane.b32.xlu0 %v740, 112
        %v769 = vpop.permute.xlu0 %768
        %s771 = scalar_lea.vmem [#allocation3], 8
        %772 = vst.msk [vmem:[%s771] sm:$0xf] %vm734, %v769
        %773 = vrot.lane.b32.xlu0 %v740, 80
        %v774 = vpop.permute.xlu0 %773
        %s776 = scalar_lea.vmem [#allocation4], 8
        %777 = vst.msk [vmem:[%s776] sm:$0xf] %vm734, %v774
        %778 = vrot.lane.b32.xlu0 %v747, 104
        %v779 = vpop.permute.xlu0 %778
        %s781 = scalar_lea.vmem [#allocation2], 12
        %782 = vst.msk [vmem:[%s781] sm:$0xf] %vm734, %v779
        %783 = vrot.lane.b32.xlu0 %v740, 104
        %v784 = vpop.permute.xlu0 %783
        %s786 = scalar_lea.vmem [#allocation3], 12
        %787 = vst.msk [vmem:[%s786] sm:$0xf] %vm734, %v784
        %788 = vrot.lane.b32.xlu0 %v740, 72
        %v789 = vpop.permute.xlu0 %788
        %s791 = scalar_lea.vmem [#allocation4], 12
        %792 = vst.msk [vmem:[%s791] sm:$0xf] %vm734, %v789
        %v793 = vld [vmem:[#allocation2] sm:$0xf]
        %v794 = vld [vmem:[#allocation2 + $0x4] sm:$0xf]
        %v795 = vld [vmem:[#allocation2 + $0x8] sm:$0xf]
        %v796 = vld [vmem:[#allocation2 + $0xc] sm:$0xf]
        %v797 = vld [vmem:[#allocation3] sm:$0xf]
        %v798 = vld [vmem:[#allocation3 + $0x4] sm:$0xf]
        %v799 = vld [vmem:[#allocation3 + $0x8] sm:$0xf]
        %v800 = vld [vmem:[#allocation3 + $0xc] sm:$0xf]
        %vm801 = vcmask 64512
        %v803 = vsel %vm801, %v793, 0
        %v806 = vsel %vm801, %v797, 0
        %808 = vmatprep.subr.bf16.mxu0 0
        %809 = vmatpush1.bf16.xpose.msra.mxu0 %v806
        %810 = vmatprep.subr.bf16.mxu0 0
        %811 = vmatpush1.bf16.xpose.msra.mxu0 0
        %812 = vmatprep.subr.bf16.mxu0 0
        %813 = vmatpush1.bf16.xpose.msra.mxu0 0
        %814 = vmatprep.subr.bf16.mxu0 0
        %815 = vmatpush1.bf16.xpose.msra.mxu0 0
        %816 = vmatprep.subr.bf16.mxu0 0
        %817 = vmatpush1.bf16.xpose.msra.mxu0 0
        %818 = vmatprep.subr.bf16.mxu0 0
        %819 = vmatpush1.bf16.xpose.msra.mxu0 0
        %820 = vmatprep.subr.bf16.mxu0 0
        %821 = vmatpush1.bf16.xpose.msra.mxu0 0
        %822 = vmatprep.subr.bf16.mxu0 0
        %823 = vmatpush1.bf16.xpose.msra.mxu0 0
        %824 = vmatprep.subr.bf16.mxu0 0
        %825 = vmatpush1.bf16.xpose.msra.mxu0 0
        %826 = vmatprep.subr.bf16.mxu0 0
        %827 = vmatpush1.bf16.xpose.msra.mxu0 0
        %828 = vmatprep.subr.bf16.mxu0 0
        %829 = vmatpush1.bf16.xpose.msra.mxu0 0
        %830 = vmatprep.subr.bf16.mxu0 0
        %831 = vmatpush1.bf16.xpose.msra.mxu0 0
        %832 = vmatprep.subr.bf16.mxu0 0
        %833 = vmatpush1.bf16.xpose.msra.mxu0 0
        %834 = vmatprep.subr.bf16.mxu0 0
        %835 = vmatpush1.bf16.xpose.msra.mxu0 0
        %836 = vmatprep.subr.bf16.mxu0 0
        %837 = vmatpush1.bf16.xpose.msra.mxu0 0
        %838 = vmatprep.subr.bf16.mxu0 0
        %839 = vmatpush1.bf16.xpose.msra.mxu0 0
        %840 = vmatprep.mubr.bf16.mxu0 0
        %841 = vmatmul.mubr.bf16.gmra.mrb[0].mxu0 %v803
        %v842 = vpop.f32.mrb[0].mxu0
        %v843 = vadd.f32 0.0, %v842
        %v844 = vpop.f32.mrb[0].mxu0
        %v845 = vpop.f32.mrb[0].mxu0
        %v846 = vpop.f32.mrb[0].mxu0
        %847 = vdwg.mxu0
        %v849 = vsel %vm801, %v794, 0
        %v852 = vsel %vm801, %v798, 0
        %854 = vmatprep.subr.bf16.mxu0 0
        %855 = vmatpush1.bf16.xpose.msra.mxu0 %v852
        %856 = vmatprep.subr.bf16.mxu0 0
        %857 = vmatpush1.bf16.xpose.msra.mxu0 0
        %858 = vmatprep.subr.bf16.mxu0 0
        %859 = vmatpush1.bf16.xpose.msra.mxu0 0
        %860 = vmatprep.subr.bf16.mxu0 0
        %861 = vmatpush1.bf16.xpose.msra.mxu0 0
        %862 = vmatprep.subr.bf16.mxu0 0
        %863 = vmatpush1.bf16.xpose.msra.mxu0 0
        %864 = vmatprep.subr.bf16.mxu0 0
        %865 = vmatpush1.bf16.xpose.msra.mxu0 0
        %866 = vmatprep.subr.bf16.mxu0 0
        %867 = vmatpush1.bf16.xpose.msra.mxu0 0
        %868 = vmatprep.subr.bf16.mxu0 0
        %869 = vmatpush1.bf16.xpose.msra.mxu0 0
        %870 = vmatprep.subr.bf16.mxu0 0
        %871 = vmatpush1.bf16.xpose.msra.mxu0 0
        %872 = vmatprep.subr.bf16.mxu0 0
        %873 = vmatpush1.bf16.xpose.msra.mxu0 0
        %874 = vmatprep.subr.bf16.mxu0 0
        %875 = vmatpush1.bf16.xpose.msra.mxu0 0
        %876 = vmatprep.subr.bf16.mxu0 0
        %877 = vmatpush1.bf16.xpose.msra.mxu0 0
        %878 = vmatprep.subr.bf16.mxu0 0
        %879 = vmatpush1.bf16.xpose.msra.mxu0 0
        %880 = vmatprep.subr.bf16.mxu0 0
        %881 = vmatpush1.bf16.xpose.msra.mxu0 0
        %882 = vmatprep.subr.bf16.mxu0 0
        %883 = vmatpush1.bf16.xpose.msra.mxu0 0
        %884 = vmatprep.subr.bf16.mxu0 0
        %885 = vmatpush1.bf16.xpose.msra.mxu0 0
        %886 = vmatprep.mubr.bf16.mxu0 0
        %887 = vmatmul.mubr.bf16.gmra.mrb[0].mxu0 %v849
        %v888 = vpop.f32.mrb[0].mxu0
        %v889 = vadd.f32 0.0, %v888
        %v890 = vpop.f32.mrb[0].mxu0
        %v891 = vpop.f32.mrb[0].mxu0
        %v892 = vpop.f32.mrb[0].mxu0
        %893 = vdwg.mxu0
        %v895 = vsel %vm801, %v795, 0
        %v898 = vsel %vm801, %v799, 0
        %900 = vmatprep.subr.bf16.mxu0 0
        %901 = vmatpush1.bf16.xpose.msra.mxu0 %v898
        %902 = vmatprep.subr.bf16.mxu0 0
        %903 = vmatpush1.bf16.xpose.msra.mxu0 0
        %904 = vmatprep.subr.bf16.mxu0 0
        %905 = vmatpush1.bf16.xpose.msra.mxu0 0
        %906 = vmatprep.subr.bf16.mxu0 0
        %907 = vmatpush1.bf16.xpose.msra.mxu0 0
        %908 = vmatprep.subr.bf16.mxu0 0
        %909 = vmatpush1.bf16.xpose.msra.mxu0 0
        %910 = vmatprep.subr.bf16.mxu0 0
        %911 = vmatpush1.bf16.xpose.msra.mxu0 0
        %912 = vmatprep.subr.bf16.mxu0 0
        %913 = vmatpush1.bf16.xpose.msra.mxu0 0
        %914 = vmatprep.subr.bf16.mxu0 0
        %915 = vmatpush1.bf16.xpose.msra.mxu0 0
        %916 = vmatprep.subr.bf16.mxu0 0
        %917 = vmatpush1.bf16.xpose.msra.mxu0 0
        %918 = vmatprep.subr.bf16.mxu0 0
        %919 = vmatpush1.bf16.xpose.msra.mxu0 0
        %920 = vmatprep.subr.bf16.mxu0 0
        %921 = vmatpush1.bf16.xpose.msra.mxu0 0
        %922 = vmatprep.subr.bf16.mxu0 0
        %923 = vmatpush1.bf16.xpose.msra.mxu0 0
        %924 = vmatprep.subr.bf16.mxu0 0
        %925 = vmatpush1.bf16.xpose.msra.mxu0 0
        %926 = vmatprep.subr.bf16.mxu0 0
        %927 = vmatpush1.bf16.xpose.msra.mxu0 0
        %928 = vmatprep.subr.bf16.mxu0 0
        %929 = vmatpush1.bf16.xpose.msra.mxu0 0
        %930 = vmatprep.subr.bf16.mxu0 0
        %931 = vmatpush1.bf16.xpose.msra.mxu0 0
        %932 = vmatprep.mubr.bf16.mxu0 0
        %933 = vmatmul.mubr.bf16.gmra.mrb[0].mxu0 %v895
        %v934 = vpop.f32.mrb[0].mxu0
        %v935 = vadd.f32 0.0, %v934
        %v936 = vpop.f32.mrb[0].mxu0
        %v937 = vpop.f32.mrb[0].mxu0
        %v938 = vpop.f32.mrb[0].mxu0
        %939 = vdwg.mxu0
        %v941 = vsel %vm801, %v796, 0
        %v944 = vsel %vm801, %v800, 0
        %946 = vmatprep.subr.bf16.mxu0 0
        %947 = vmatpush1.bf16.xpose.msra.mxu0 %v944
        %948 = vmatprep.subr.bf16.mxu0 0
        %949 = vmatpush1.bf16.xpose.msra.mxu0 0
        %950 = vmatprep.subr.bf16.mxu0 0
        %951 = vmatpush1.bf16.xpose.msra.mxu0 0
        %952 = vmatprep.subr.bf16.mxu0 0
        %953 = vmatpush1.bf16.xpose.msra.mxu0 0
        %954 = vmatprep.subr.bf16.mxu0 0
        %955 = vmatpush1.bf16.xpose.msra.mxu0 0
        %956 = vmatprep.subr.bf16.mxu0 0
        %957 = vmatpush1.bf16.xpose.msra.mxu0 0
        %958 = vmatprep.subr.bf16.mxu0 0
        %959 = vmatpush1.bf16.xpose.msra.mxu0 0
        %960 = vmatprep.subr.bf16.mxu0 0
        %961 = vmatpush1.bf16.xpose.msra.mxu0 0
        %962 = vmatprep.subr.bf16.mxu0 0
        %963 = vmatpush1.bf16.xpose.msra.mxu0 0
        %964 = vmatprep.subr.bf16.mxu0 0
        %965 = vmatpush1.bf16.xpose.msra.mxu0 0
        %966 = vmatprep.subr.bf16.mxu0 0
        %967 = vmatpush1.bf16.xpose.msra.mxu0 0
        %968 = vmatprep.subr.bf16.mxu0 0
        %969 = vmatpush1.bf16.xpose.msra.mxu0 0
        %970 = vmatprep.subr.bf16.mxu0 0
        %971 = vmatpush1.bf16.xpose.msra.mxu0 0
        %972 = vmatprep.subr.bf16.mxu0 0
        %973 = vmatpush1.bf16.xpose.msra.mxu0 0
        %974 = vmatprep.subr.bf16.mxu0 0
        %975 = vmatpush1.bf16.xpose.msra.mxu0 0
        %976 = vmatprep.subr.bf16.mxu0 0
        %977 = vmatpush1.bf16.xpose.msra.mxu0 0
        %978 = vmatprep.mubr.bf16.mxu0 0
        %979 = vmatmul.mubr.bf16.gmra.mrb[0].mxu0 %v941
        %v980 = vpop.f32.mrb[0].mxu0
        %v981 = vadd.f32 0.0, %v980
        %v982 = vpop.f32.mrb[0].mxu0
        %v983 = vpop.f32.mrb[0].mxu0
        %v984 = vpop.f32.mrb[0].mxu0
        %985 = vdwg.mxu0
        %v986 = vmul.f32 %v843, 0.35355338
        %v987 = vmul.f32 %v889, 0.35355338
        %v988 = vmul.f32 %v935, 0.35355338
        %v989 = vmul.f32 %v981, 0.35355338
        %v990 = vsel %vm599, 16843009, 0
        %v991 = vunpack.c.0.s8 %v990
        %vm992 = vcmp.ne.s32.totalorder %v991, 0
        %v993 = vsel %vm992, 1, 0
        %v994 = vlaneseq
        %v995 = vshrl.u32 %v994, 7
        %v996 = vsub.s32 0, %v995
        %v997 = vrot.slane %v993, %v996
        %vm998 = vcmp.eq.s32.totalorder %v997, 1
        %v999 = vsel %vm998, %v986, -1e+09
        %v1000 = vsel %vm998, %v987, -1e+09
        %v1001 = vsel %vm998, %v988, -1e+09
        %v1002 = vsel %vm998, %v989, -1e+09
        %v1003 = vsel %vm801, %v999, -inf
        %1004 = vmax.xlane.f32.xlu0 %v1003
        %v1005 = vpop.xlane.xlu0 %1004
        %v1006 = vsel %vm801, %v1000, -inf
        %1007 = vmax.xlane.f32.xlu0 %v1006
        %v1008 = vpop.xlane.xlu0 %1007
        %v1009 = vsel %vm801, %v1001, -inf
        %1010 = vmax.xlane.f32.xlu0 %v1009
        %v1011 = vpop.xlane.xlu0 %1010
        %v1012 = vsel %vm801, %v1002, -inf
        %1013 = vmax.xlane.f32.xlu0 %v1012
        %v1014 = vpop.xlane.xlu0 %1013
        %v1015 = vsub.f32 %v999, %v1005
        %v1016 = vsub.f32 %v1000, %v1008
        %v1017 = vsub.f32 %v1001, %v1011
        %v1018 = vsub.f32 %v1002, %v1014
        %v1019 = vmul.f32 %v1015, 1.442695
        %v1020 = vpow.pop %v1019
        %v1021 = vmul.f32 %v1016, 1.442695
        %v1022 = vpow.pop %v1021
        %v1023 = vmul.f32 %v1017, 1.442695
        %v1024 = vpow.pop %v1023
        %v1025 = vmul.f32 %v1018, 1.442695
        %v1026 = vpow.pop %v1025
        %v1027 = vsel %vm801, %v1020, 0.0
        %1028 = vadd.xlane.f32.xlu0 %v1027
        %v1029 = vpop.xlane.xlu0 %1028
        %v1030 = vsel %vm801, %v1022, 0.0
        %1031 = vadd.xlane.f32.xlu0 %v1030
        %v1032 = vpop.xlane.xlu0 %1031
        %v1033 = vsel %vm801, %v1024, 0.0
        %1034 = vadd.xlane.f32.xlu0 %v1033
        %v1035 = vpop.xlane.xlu0 %1034
        %v1036 = vsel %vm801, %v1026, 0.0
        %1037 = vadd.xlane.f32.xlu0 %v1036
        %v1038 = vpop.xlane.xlu0 %1037
        %v1039 = vrcp.pop %v1029
        %v1040 = vrcp.pop %v1032
        %v1041 = vrcp.pop %v1035
        %v1042 = vrcp.pop %v1038
        %v1043 = vmul.f32 %v1020, %v1039
        %v1044 = vmul.f32 %v1022, %v1040
        %v1045 = vmul.f32 %v1024, %v1041
        %v1046 = vmul.f32 %v1026, %v1042
        %v1047 = vpack.c.bf16 %v1043, %v1043
        %v1048 = vpack.c.bf16 %v1044, %v1044
        %v1049 = vpack.c.bf16 %v1045, %v1045
        %v1050 = vpack.c.bf16 %v1046, %v1046
        %v1051 = vld [vmem:[#allocation4] sm:$0xf]
        %v1052 = vld [vmem:[#allocation4 + $0x4] sm:$0xf]
        %v1053 = vld [vmem:[#allocation4 + $0x8] sm:$0xf]
        %v1054 = vld [vmem:[#allocation4 + $0xc] sm:$0xf]
        %v1056 = vsel %vm801, %v1047, 0
        %vm1058 = vcmask 1043456
        %v1060 = vsel %vm1058, %v1051, 0
        %1062 = vmatprep.subr.bf16.mxu0 0
        %1063 = vmatpush1.bf16.msra.mxu0 %v1060
        %1064 = vmatprep.subr.bf16.mxu0 0
        %1065 = vmatpush1.bf16.msra.mxu0 0
        %1066 = vmatprep.subr.bf16.mxu0 0
        %1067 = vmatpush1.bf16.msra.mxu0 0
        %1068 = vmatprep.subr.bf16.mxu0 0
        %1069 = vmatpush1.bf16.msra.mxu0 0
        %1070 = vmatprep.subr.bf16.mxu0 0
        %1071 = vmatpush1.bf16.msra.mxu0 0
        %1072 = vmatprep.subr.bf16.mxu0 0
        %1073 = vmatpush1.bf16.msra.mxu0 0
        %1074 = vmatprep.subr.bf16.mxu0 0
        %1075 = vmatpush1.bf16.msra.mxu0 0
        %1076 = vmatprep.subr.bf16.mxu0 0
        %1077 = vmatpush1.bf16.msra.mxu0 0
        %1078 = vmatprep.subr.bf16.mxu0 0
        %1079 = vmatpush1.bf16.msra.mxu0 0
        %1080 = vmatprep.subr.bf16.mxu0 0
        %1081 = vmatpush1.bf16.msra.mxu0 0
        %1082 = vmatprep.subr.bf16.mxu0 0
        %1083 = vmatpush1.bf16.msra.mxu0 0
        %1084 = vmatprep.subr.bf16.mxu0 0
        %1085 = vmatpush1.bf16.msra.mxu0 0
        %1086 = vmatprep.subr.bf16.mxu0 0
        %1087 = vmatpush1.bf16.msra.mxu0 0
        %1088 = vmatprep.subr.bf16.mxu0 0
        %1089 = vmatpush1.bf16.msra.mxu0 0
        %1090 = vmatprep.subr.bf16.mxu0 0
        %1091 = vmatpush1.bf16.msra.mxu0 0
        %1092 = vmatprep.subr.bf16.mxu0 0
        %1093 = vmatpush1.bf16.msra.mxu0 0
        %1094 = vmatprep.mubr.bf16.mxu0 0
        %1095 = vmatmul.mubr.bf16.gmra.mrb[0].mxu0 %v1056
        %v1096 = vpop.f32.mrb[0].mxu0
        %v1097 = vadd.f32 0.0, %v1096
        %v1098 = vpop.f32.mrb[0].mxu0
        %v1099 = vpop.f32.mrb[0].mxu0
        %v1100 = vpop.f32.mrb[0].mxu0
        %1101 = vdwg.mxu0
        %v1103 = vsel %vm801, %v1048, 0
        %v1106 = vsel %vm1058, %v1052, 0
        %1108 = vmatprep.subr.bf16.mxu0 0
        %1109 = vmatpush1.bf16.msra.mxu0 %v1106
        %1110 = vmatprep.subr.bf16.mxu0 0
        %1111 = vmatpush1.bf16.msra.mxu0 0
        %1112 = vmatprep.subr.bf16.mxu0 0
        %1113 = vmatpush1.bf16.msra.mxu0 0
        %1114 = vmatprep.subr.bf16.mxu0 0
        %1115 = vmatpush1.bf16.msra.mxu0 0
        %1116 = vmatprep.subr.bf16.mxu0 0
        %1117 = vmatpush1.bf16.msra.mxu0 0
        %1118 = vmatprep.subr.bf16.mxu0 0
        %1119 = vmatpush1.bf16.msra.mxu0 0
        %1120 = vmatprep.subr.bf16.mxu0 0
        %1121 = vmatpush1.bf16.msra.mxu0 0
        %1122 = vmatprep.subr.bf16.mxu0 0
        %1123 = vmatpush1.bf16.msra.mxu0 0
        %1124 = vmatprep.subr.bf16.mxu0 0
        %1125 = vmatpush1.bf16.msra.mxu0 0
        %1126 = vmatprep.subr.bf16.mxu0 0
        %1127 = vmatpush1.bf16.msra.mxu0 0
        %1128 = vmatprep.subr.bf16.mxu0 0
        %1129 = vmatpush1.bf16.msra.mxu0 0
        %1130 = vmatprep.subr.bf16.mxu0 0
        %1131 = vmatpush1.bf16.msra.mxu0 0
        %1132 = vmatprep.subr.bf16.mxu0 0
        %1133 = vmatpush1.bf16.msra.mxu0 0
        %1134 = vmatprep.subr.bf16.mxu0 0
        %1135 = vmatpush1.bf16.msra.mxu0 0
        %1136 = vmatprep.subr.bf16.mxu0 0
        %1137 = vmatpush1.bf16.msra.mxu0 0
        %1138 = vmatprep.subr.bf16.mxu0 0
        %1139 = vmatpush1.bf16.msra.mxu0 0
        %1140 = vmatprep.mubr.bf16.mxu0 0
        %1141 = vmatmul.mubr.bf16.gmra.mrb[0].mxu0 %v1103
        %v1142 = vpop.f32.mrb[0].mxu0
        %v1143 = vadd.f32 0.0, %v1142
        %v1144 = vpop.f32.mrb[0].mxu0
        %v1145 = vpop.f32.mrb[0].mxu0
        %v1146 = vpop.f32.mrb[0].mxu0
        %1147 = vdwg.mxu0
        %v1149 = vsel %vm801, %v1049, 0
        %v1152 = vsel %vm1058, %v1053, 0
        %1154 = vmatprep.subr.bf16.mxu0 0
        %1155 = vmatpush1.bf16.msra.mxu0 %v1152
        %1156 = vmatprep.subr.bf16.mxu0 0
        %1157 = vmatpush1.bf16.msra.mxu0 0
        %1158 = vmatprep.subr.bf16.mxu0 0
        %1159 = vmatpush1.bf16.msra.mxu0 0
        %1160 = vmatprep.subr.bf16.mxu0 0
        %1161 = vmatpush1.bf16.msra.mxu0 0
        %1162 = vmatprep.subr.bf16.mxu0 0
        %1163 = vmatpush1.bf16.msra.mxu0 0
        %1164 = vmatprep.subr.bf16.mxu0 0
        %1165 = vmatpush1.bf16.msra.mxu0 0
        %1166 = vmatprep.subr.bf16.mxu0 0
        %1167 = vmatpush1.bf16.msra.mxu0 0
        %1168 = vmatprep.subr.bf16.mxu0 0
        %1169 = vmatpush1.bf16.msra.mxu0 0
        %1170 = vmatprep.subr.bf16.mxu0 0
        %1171 = vmatpush1.bf16.msra.mxu0 0
        %1172 = vmatprep.subr.bf16.mxu0 0
        %1173 = vmatpush1.bf16.msra.mxu0 0
        %1174 = vmatprep.subr.bf16.mxu0 0
        %1175 = vmatpush1.bf16.msra.mxu0 0
        %1176 = vmatprep.subr.bf16.mxu0 0
        %1177 = vmatpush1.bf16.msra.mxu0 0
        %1178 = vmatprep.subr.bf16.mxu0 0
        %1179 = vmatpush1.bf16.msra.mxu0 0
        %1180 = vmatprep.subr.bf16.mxu0 0
        %1181 = vmatpush1.bf16.msra.mxu0 0
        %1182 = vmatprep.subr.bf16.mxu0 0
        %1183 = vmatpush1.bf16.msra.mxu0 0
        %1184 = vmatprep.subr.bf16.mxu0 0
        %1185 = vmatpush1.bf16.msra.mxu0 0
        %1186 = vmatprep.mubr.bf16.mxu0 0
        %1187 = vmatmul.mubr.bf16.gmra.mrb[0].mxu0 %v1149
        %v1188 = vpop.f32.mrb[0].mxu0
        %v1189 = vadd.f32 0.0, %v1188
        %v1190 = vpop.f32.mrb[0].mxu0
        %v1191 = vpop.f32.mrb[0].mxu0
        %v1192 = vpop.f32.mrb[0].mxu0
        %1193 = vdwg.mxu0
        %v1195 = vsel %vm801, %v1050, 0
        %v1198 = vsel %vm1058, %v1054, 0
        %1200 = vmatprep.subr.bf16.mxu0 0
        %1201 = vmatpush1.bf16.msra.mxu0 %v1198
        %1202 = vmatprep.subr.bf16.mxu0 0
        %1203 = vmatpush1.bf16.msra.mxu0 0
        %1204 = vmatprep.subr.bf16.mxu0 0
        %1205 = vmatpush1.bf16.msra.mxu0 0
        %1206 = vmatprep.subr.bf16.mxu0 0
        %1207 = vmatpush1.bf16.msra.mxu0 0
        %1208 = vmatprep.subr.bf16.mxu0 0
        %1209 = vmatpush1.bf16.msra.mxu0 0
        %1210 = vmatprep.subr.bf16.mxu0 0
        %1211 = vmatpush1.bf16.msra.mxu0 0
        %1212 = vmatprep.subr.bf16.mxu0 0
        %1213 = vmatpush1.bf16.msra.mxu0 0
        %1214 = vmatprep.subr.bf16.mxu0 0
        %1215 = vmatpush1.bf16.msra.mxu0 0
        %1216 = vmatprep.subr.bf16.mxu0 0
        %1217 = vmatpush1.bf16.msra.mxu0 0
        %1218 = vmatprep.subr.bf16.mxu0 0
        %1219 = vmatpush1.bf16.msra.mxu0 0
        %1220 = vmatprep.subr.bf16.mxu0 0
        %1221 = vmatpush1.bf16.msra.mxu0 0
        %1222 = vmatprep.subr.bf16.mxu0 0
        %1223 = vmatpush1.bf16.msra.mxu0 0
        %1224 = vmatprep.subr.bf16.mxu0 0
        %1225 = vmatpush1.bf16.msra.mxu0 0
        %1226 = vmatprep.subr.bf16.mxu0 0
        %1227 = vmatpush1.bf16.msra.mxu0 0
        %1228 = vmatprep.subr.bf16.mxu0 0
        %1229 = vmatpush1.bf16.msra.mxu0 0
        %1230 = vmatprep.subr.bf16.mxu0 0
        %1231 = vmatpush1.bf16.msra.mxu0 0
        %1232 = vmatprep.mubr.bf16.mxu0 0
        %1233 = vmatmul.mubr.bf16.gmra.mrb[0].mxu0 %v1195
        %v1234 = vpop.f32.mrb[0].mxu0
        %v1235 = vadd.f32 0.0, %v1234
        %v1236 = vpop.f32.mrb[0].mxu0
        %v1237 = vpop.f32.mrb[0].mxu0
        %v1238 = vpop.f32.mrb[0].mxu0
        %1239 = vdwg.mxu0
        %v1240 = vpack.c.bf16 %v1097, %v1097
        %1241 = vst.msk [vmem:[#allocation5] sm:$0xf] %vm734, %v1240
        %v1242 = vpack.c.bf16 %v1143, %v1143
        %v1244 = vunpack.c.l.b16 %v1242
        %v1245 = vpack.c.b16 %v1244, %v1244
        %1246 = vrot.lane.b32.xlu0 %v1245, 8
        %v1247 = vpop.permute.xlu0 %1246
        %vm1249 = vcmask 126016
        %1250 = vst.msk [vmem:[#allocation5] sm:$0xf] %vm1249, %v1247
        %v1251 = vpack.c.bf16 %v1189, %v1189
        %v1253 = vunpack.c.l.b16 %v1251
        %v1254 = vpack.c.b16 %v1253, %v1253
        %1255 = vrot.lane.b32.xlu0 %v1254, 16
        %v1256 = vpop.permute.xlu0 %1255
        %vm1258 = vcmask 191616
        %1259 = vst.msk [vmem:[#allocation5] sm:$0xf] %vm1258, %v1256
        %v1260 = vpack.c.bf16 %v1235, %v1235
        %v1262 = vunpack.c.l.b16 %v1260
        %v1263 = vpack.c.b16 %v1262, %v1262
        %1264 = vrot.lane.b32.xlu0 %v1263, 24
        %v1265 = vpop.permute.xlu0 %1264
        %vm1267 = vcmask 257216
        %1268 = vst.msk [vmem:[#allocation5] sm:$0xf] %vm1267, %v1265
        %v1269 = vld [vmem:[#allocation5] sm:$0xf]
        %v1270 = vld [vmem:[#allocation18] sm:$0xf]
        %v1271 = vld [vmem:[#allocation18 + $0x4] sm:$0xf]
        %v1272 = vld [vmem:[#allocation18 + $0x8] sm:$0xf]
        %v1273 = vld [vmem:[#allocation18 + $0xc] sm:$0xf]
        %v1274 = vld [vmem:[#allocation20] sm:$0x1]
        %v1276 = vlaneseq
        %v1277 = vshrl.u32 %v1276, 7
        %v1278 = vsub.s32 0, %v1277
        %v1279 = vrot.slane %v1274, %v1278
        %v1285 = vunpack.c.l.b16 %v1270
        %v1286 = vunpack.c.l.b16 %v1271
        %v1287 = vunpack.c.l.b16 %v1272
        %v1288 = vunpack.c.l.b16 %v1273
        %v1289 = vpack.c.b16 %v1286, %v1285
        %v1290 = vpack.c.b16 %v1288, %v1287
        %v1294 = vsel %vm623, %v1269, 0
        %1296 = vmatprep.subr.bf16.mxu0 0
        %1297 = vmatpush1.bf16.msra.mxu0 %v1289
        %1298 = vmatprep.subr.bf16.mxu0 0
        %1299 = vmatpush1.bf16.msra.mxu0 %v1290
        %1300 = vmatprep.subr.bf16.mxu0 0
        %1301 = vmatpush1.bf16.msra.mxu0 0
        %1302 = vmatprep.subr.bf16.mxu0 0
        %1303 = vmatpush1.bf16.msra.mxu0 0
        %1304 = vmatprep.subr.bf16.mxu0 0
        %1305 = vmatpush1.bf16.msra.mxu0 0
        %1306 = vmatprep.subr.bf16.mxu0 0
        %1307 = vmatpush1.bf16.msra.mxu0 0
        %1308 = vmatprep.subr.bf16.mxu0 0
        %1309 = vmatpush1.bf16.msra.mxu0 0
        %1310 = vmatprep.subr.bf16.mxu0 0
        %1311 = vmatpush1.bf16.msra.mxu0 0
        %1312 = vmatprep.subr.bf16.mxu0 0
        %1313 = vmatpush1.bf16.msra.mxu0 0
        %1314 = vmatprep.subr.bf16.mxu0 0
        %1315 = vmatpush1.bf16.msra.mxu0 0
        %1316 = vmatprep.subr.bf16.mxu0 0
        %1317 = vmatpush1.bf16.msra.mxu0 0
        %1318 = vmatprep.subr.bf16.mxu0 0
        %1319 = vmatpush1.bf16.msra.mxu0 0
        %1320 = vmatprep.subr.bf16.mxu0 0
        %1321 = vmatpush1.bf16.msra.mxu0 0
        %1322 = vmatprep.subr.bf16.mxu0 0
        %1323 = vmatpush1.bf16.msra.mxu0 0
        %1324 = vmatprep.subr.bf16.mxu0 0
        %1325 = vmatpush1.bf16.msra.mxu0 0
        %1326 = vmatprep.subr.bf16.mxu0 0
        %1327 = vmatpush1.bf16.msra.mxu0 0
        %1328 = vmatprep.mubr.bf16.mxu0 0
        %1329 = vmatmul.mubr.bf16.gmra.mrb[0].mxu0 %v1294
        %v1330 = vpop.f32.mrb[0].mxu0
        %v1331 = vadd.f32 %v1279, %v1330
        %v1332 = vpop.f32.mrb[0].mxu0
        %v1333 = vpop.f32.mrb[0].mxu0
        %v1334 = vpop.f32.mrb[0].mxu0
        %1335 = vdwg.mxu0
        %v1336 = vunpack.c.l.bf16 %v596
        %v1337 = vadd.f32 %v1331, %v1336
        %v1338 = vsel %vm623, %v1337, 0.0
        %1339 = vadd.xlane.f32.xlu0 %v1338
        %v1340 = vpop.xlane.xlu0 %1339
        %v1341 = vrcp.pop 32.0
        %v1342 = vmul.f32 %v1340, %v1341
        %v1343 = vmul.f32 %v1337, %v1337
        %v1344 = vsel %vm623, %v1343, 0.0
        %1345 = vadd.xlane.f32.xlu0 %v1344
        %v1346 = vpop.xlane.xlu0 %1345
        %v1347 = vmul.f32 %v1346, %v1341
        %v1348 = vmul.f32 %v1342, %v1342
        %v1349 = vsub.f32 %v1347, %v1348
        %v1350 = vsub.f32 %v1337, %v1342
        %v1351 = vadd.f32 %v1349, 1e-05
        %v1352 = vrsqrt.pop %v1351
        %v1353 = vmul.f32 %v1350, %v1352
        %v1354 = vld [vmem:[#allocation21] sm:$0x1]
        %v1356 = vlaneseq
        %v1357 = vshrl.u32 %v1356, 7
        %v1358 = vsub.s32 0, %v1357
        %v1359 = vrot.slane %v1354, %v1358
        %v1361 = vmul.f32 %v1353, %v1359
        %v1362 = vld [vmem:[#allocation23] sm:$0x1]
        %v1364 = vlaneseq
        %v1365 = vshrl.u32 %v1364, 7
        %v1366 = vsub.s32 0, %v1365
        %v1367 = vrot.slane %v1362, %v1366
        %v1369 = vadd.f32 %v1361, %v1367
        %v1370 = vpack.c.bf16 %v1369, %v1369
        %vm1371 = vcmask 257024
        %1372 = vst.msk [vmem:[%s592] sm:$0xf] %vm1371, %v1370
        %s1373 = sand.u32 %s305, 1
        %s1374 = scalar_lea.sflag [#allocation8], %s1373
        %s1375 = sand.u32 %s305, 1
        %s1376 = smul.addr %s1375, 4
        %s1377 = scalar_lea.vmem [#allocation24], %s1376
        // Predicated region
        $region109: #{_lambda_.18} parent=63 // pred_check
          %p1378 = pneg %p315
        $region110: #{_lambda_.18} parent=63 // pred_check_branch
          %1380 = sbr.rel (%p1378) target = $region112
        $region111: #{_lambda_.18} parent=63 // pred_region
          %s1382 = ssub.s32 64, 64
          %1383 = vsyncadd %s1374, %s1382
          %s1384 = sadd.s32 %s40, %s39
          %s1385 = smul.addr %s1384, 64
          %s1386 = scalar_lea.hbm %s11, %s1385
          %s1388 = sshll.u32 %s1377, 4
          %s1389 = int_to_ptr.vmem [resolvable:$true] %s1388
          %1391 = dma.vmem_to_hbm [thread:$0]  %s1389, 64, %s1386, %s1374
        $region112: #{_lambda_.18} parent=63 // pred_fallthru
          _
      $region64: #{_lambda_.18} parent=5 // pred_fallthru
        _
      %p1392 = scmp.le.s32.totalorder 2, %s30
      // Predicated region
      $region113: #{_lambda_.18} parent=5 // pred_check
        %p1393 = pneg %p1392
      $region114: #{_lambda_.18} parent=5 // pred_check_branch
        %1395 = sbr.rel (%p1393) target = $region116
      $region115: #{_lambda_.18} parent=5 // pred_region
        %s1396 = ssub.s32 %s30, 2
        // Predicated region
        $region117: #{_lambda_.18} parent=115 // pred_check
          %p1397 = pneg %p321
        $region118: #{_lambda_.18} parent=115 // pred_check_branch
          %1399 = sbr.rel (%p1397) target = $region120
        $region119: #{_lambda_.18} parent=115 // pred_region
          %s1400 = sand.u32 %s306, 1
          %s1401 = scalar_lea.sflag [#allocation8], %s1400
          %s1402 = sand.u32 %s306, 1
          %s1403 = smul.addr %s1402, 4
          %s1404 = scalar_lea.vmem [#allocation24], %s1403
          %1405 = dma.done %s1401, 64
        $region120: #{_lambda_.18} parent=115 // pred_fallthru
          _
      $region116: #{_lambda_.18} parent=5 // pred_fallthru
        _
    $region6: #{_lambda_.18} parent=1 // loop_footer
      %s34 = sadd.s32 1, %s30
    $region7: #{_lambda_.18} parent=1 // loop_footer_branch
      %29 = sbr.rel target = $region3
    $region8: #{_lambda_.18} parent=1 // loop_exit
      _
    %1406 = vsyncpa [#allocation7], 1
    %s1407 = scalar_lea.sflag [#allocation7], 1
    %1408 = vsyncpa %s1407, 1
    %1409 = vsyncpa [#allocation10], 1
    %s1410 = scalar_lea.sflag [#allocation10], 1
    %1411 = vsyncpa %s1410, 1
    %1412 = vsyncpa [#allocation13], 1
    %1413 = vsyncpa [#allocation16], 1
    %1414 = vsyncpa [#allocation19], 1
    %1415 = vsyncpa [#allocation22], 1
    %1416 = vsyncpa [#allocation8], 1
    %s1417 = scalar_lea.sflag [#allocation8], 1
    %1418 = vsyncpa %s1417, 1

// kernel: _lambda_.35
$region0: #{_lambda_.35}
  #allocation0 [shape = 'u32[]', space=smem, size = 0x4, offset = 0x4, fixed_abs, tag = 'smem constant byte address 0x4 - core index']
  #allocation1 [shape = 'u32[144,128]{1,0:T(1,128)}', space=vmem, size = 0x12000, scoped, tag = 'internal scratch']
  #allocation2 [shape = 'f32[16,60]{1,0:T(8,128)}', space=vmem, size = 0x2000, scoped, tag = 'scratch operand']
  %s0 = inlined_call_operand.hbm [shape: bf16[16,32], index: 0, kind: input, shape index: {}]
  %s1 = inlined_call_operand.hbm [shape: bf16[32,60], index: 1, kind: input, shape index: {}]
  %s2 = inlined_call_operand.hbm [shape: f32[1,60], index: 2, kind: input, shape index: {}]
  %s3 = inlined_call_operand.hbm [shape: f32[16,60], index: 3, kind: output, shape index: {}]
  %s4 = sld [smem:[#allocation0]]
  $region42: #{_lambda_.35} parent=0
    _
  %s6 = ssub.s32 1, %s4
  %s7 = scalar_select 0, %s6, %s4
  $region1: #{_lambda_.35} parent=0
    #allocation3 [shape = 'u8[4096]{0}', space=vmem, size = 0x1000, scoped, tag = 'input window, operand 0, single buffered']
    #allocation4 [shape = 's32[1]{0}', space=sflag, size = 0x4, scoped, tag = 'scoped memory for _lambda_.35']
    #allocation5 [shape = 's32[1]{0}', space=sflag, size = 0x4, scoped, tag = 'scoped memory for _lambda_.35']
    #allocation6 [shape = 'u8[8192]{0}', space=vmem, size = 0x2000, scoped, tag = 'input window, operand 1, single buffered']
    #allocation7 [shape = 's32[1]{0}', space=sflag, size = 0x4, scoped, tag = 'scoped memory for _lambda_.35']
    #allocation8 [shape = 'u8[512]{0}', space=vmem, size = 0x400, scoped, tag = 'input window, operand 2, single buffered']
    #allocation9 [shape = 'u8[8192]{0}', space=vmem, size = 0x2000, scoped, tag = 'output window, operand 0, single buffered']
    %8 = vsyncpa [#allocation4], 0
    %9 = vsyncpa [#allocation7], 0
    %10 = vsyncpa [#allocation5], 0
    // Predicated region
    $region2: #{_lambda_.35} parent=1 // pred_check
      _
    $region3: #{_lambda_.35} parent=1 // pred_check_branch
      %12 = sbr.rel (0) target = $region5
    $region4: #{_lambda_.35} parent=1 // pred_region
      %s14 = ssub.s32 128, 128
      %15 = vsyncadd [#allocation4], %s14
      %s16 = sshll.u32 [#allocation3], 4
      %s17 = int_to_ptr.vmem [resolvable:$true] %s16
      %22 = dma.hbm_to_vmem [thread:$0]  %s0, 128, %s17, [#allocation4], 64, 64, 4
    $region5: #{_lambda_.35} parent=1 // pred_fallthru
      _
    // Predicated region
    $region6: #{_lambda_.35} parent=1 // pred_check
      _
    $region7: #{_lambda_.35} parent=1 // pred_check_branch
      %24 = sbr.rel (0) target = $region9
    $region8: #{_lambda_.35} parent=1 // pred_region
      %s26 = ssub.s32 256, 256
      %27 = vsyncadd [#allocation7], %s26
      %s28 = sshll.u32 [#allocation6], 4
      %s29 = int_to_ptr.vmem [resolvable:$true] %s28
      %34 = dma.hbm_to_vmem [thread:$0]  %s1, 256, %s29, [#allocation7], 64, 64, 4
    $region9: #{_lambda_.35} parent=1 // pred_fallthru
      _
    // Predicated region
    $region10: #{_lambda_.35} parent=1 // pred_check
      _
    $region11: #{_lambda_.35} parent=1 // pred_check_branch
      %36 = sbr.rel (0) target = $region13
    $region12: #{_lambda_.35} parent=1 // pred_region
      %s38 = ssub.s32 16, 16
      %39 = vsyncadd [#allocation7], %s38
      %s41 = sshll.u32 [#allocation8], 4
      %s42 = int_to_ptr.vmem [resolvable:$true] %s41
      %44 = dma.hbm_to_vmem [thread:$0]  %s2, 16, %s42, [#allocation7]
    $region13: #{_lambda_.35} parent=1 // pred_fallthru
      _
    // Predicated region
    $region14: #{_lambda_.35} parent=1 // pred_check
      _
    $region15: #{_lambda_.35} parent=1 // pred_check_branch
      %46 = sbr.rel (0) target = $region17
    $region16: #{_lambda_.35} parent=1 // pred_region
      %47 = dma.done [#allocation4], 128
    $region17: #{_lambda_.35} parent=1 // pred_fallthru
      _
    // Predicated region
    $region18: #{_lambda_.35} parent=1 // pred_check
      _
    $region19: #{_lambda_.35} parent=1 // pred_check_branch
      %49 = sbr.rel (0) target = $region21
    $region20: #{_lambda_.35} parent=1 // pred_region
      %50 = dma.done [#allocation7], 256
    $region21: #{_lambda_.35} parent=1 // pred_fallthru
      _
    // Predicated region
    $region22: #{_lambda_.35} parent=1 // pred_check
      _
    $region23: #{_lambda_.35} parent=1 // pred_check_branch
      %52 = sbr.rel (0) target = $region25
    $region24: #{_lambda_.35} parent=1 // pred_region
      %53 = dma.done [#allocation7], 16
    $region25: #{_lambda_.35} parent=1 // pred_fallthru
      _
    %p55 = scmp.eq.s32.totalorder 0, 0
    // Predicated region
    $region26: #{_lambda_.35} parent=1 // pred_check
      %p56 = pneg %p55
    $region27: #{_lambda_.35} parent=1 // pred_check_branch
      %58 = sbr.rel (%p56) target = $region29
    $region28: #{_lambda_.35} parent=1 // pred_region
      %vm59 = vcmask 490496
      %60 = vst.msk [vmem:[#allocation2] sm:$0xff] %vm59, 0.0
      %61 = vst.msk [vmem:[#allocation2 + $0x8] sm:$0xff] %vm59, 0.0
    $region29: #{_lambda_.35} parent=1 // pred_fallthru
      _
    %v62 = vld [vmem:[#allocation2] sm:$0xff]
    %v63 = vld [vmem:[#allocation2 + $0x8] sm:$0xff]
    %v64 = vld [vmem:[#allocation3] sm:$0xf]
    %v65 = vld [vmem:[#allocation3 + $0x4] sm:$0xf]
    %v66 = vld [vmem:[#allocation6] sm:$0xf]
    %v67 = vld [vmem:[#allocation6 + $0x4] sm:$0xf]
    %v68 = vld [vmem:[#allocation6 + $0x8] sm:$0xf]
    %v69 = vld [vmem:[#allocation6 + $0xc] sm:$0xf]
    %v72 = vunpack.c.l.b16 %v64
    %v73 = vunpack.c.l.b16 %v65
    %v74 = vpack.c.b16 %v73, %v72
    %v79 = vunpack.c.l.b16 %v66
    %v80 = vunpack.c.l.b16 %v67
    %v81 = vunpack.c.l.b16 %v68
    %v82 = vunpack.c.l.b16 %v69
    %v83 = vpack.c.b16 %v80, %v79
    %v84 = vpack.c.b16 %v82, %v81
    %vm87 = vcmask 261120
    %v89 = vsel %vm87, %v74, 0
    %91 = vmatprep.subr.bf16.mxu0 0
    %92 = vmatpush1.bf16.msra.mxu0 %v83
    %93 = vmatprep.subr.bf16.mxu0 0
    %94 = vmatpush1.bf16.msra.mxu0 %v84
    %95 = vmatprep.subr.bf16.mxu0 0
    %96 = vmatpush1.bf16.msra.mxu0 0
    %97 = vmatprep.subr.bf16.mxu0 0
    %98 = vmatpush1.bf16.msra.mxu0 0
    %99 = vmatprep.subr.bf16.mxu0 0
    %100 = vmatpush1.bf16.msra.mxu0 0
    %101 = vmatprep.subr.bf16.mxu0 0
    %102 = vmatpush1.bf16.msra.mxu0 0
    %103 = vmatprep.subr.bf16.mxu0 0
    %104 = vmatpush1.bf16.msra.mxu0 0
    %105 = vmatprep.subr.bf16.mxu0 0
    %106 = vmatpush1.bf16.msra.mxu0 0
    %107 = vmatprep.subr.bf16.mxu0 0
    %108 = vmatpush1.bf16.msra.mxu0 0
    %109 = vmatprep.subr.bf16.mxu0 0
    %110 = vmatpush1.bf16.msra.mxu0 0
    %111 = vmatprep.subr.bf16.mxu0 0
    %112 = vmatpush1.bf16.msra.mxu0 0
    %113 = vmatprep.subr.bf16.mxu0 0
    %114 = vmatpush1.bf16.msra.mxu0 0
    %115 = vmatprep.subr.bf16.mxu0 0
    %116 = vmatpush1.bf16.msra.mxu0 0
    %117 = vmatprep.subr.bf16.mxu0 0
    %118 = vmatpush1.bf16.msra.mxu0 0
    %119 = vmatprep.subr.bf16.mxu0 0
    %120 = vmatpush1.bf16.msra.mxu0 0
    %121 = vmatprep.subr.bf16.mxu0 0
    %122 = vmatpush1.bf16.msra.mxu0 0
    %123 = vmatprep.mubr.bf16.mxu0 0
    %124 = vmatmul.mubr.bf16.gmra.mrb[0].mxu0 %v89
    %v125 = vpop.f32.mrb[0].mxu0
    %v126 = vadd.f32 0.0, %v125
    %v127 = vpop.f32.mrb[0].mxu0
    %v128 = vpop.f32.mrb[0].mxu0
    %v129 = vadd.f32 0.0, %v128
    %v130 = vpop.f32.mrb[0].mxu0
    %131 = vdwg.mxu0
    %v132 = vadd.f32 %v62, %v126
    %v133 = vadd.f32 %v63, %v129
    %vm134 = vcmask 490496
    %135 = vst.msk [vmem:[#allocation2] sm:$0xff] %vm134, %v132
    %136 = vst.msk [vmem:[#allocation2 + $0x8] sm:$0xff] %vm134, %v133
    // Predicated region
    $region30: #{_lambda_.35} parent=1 // pred_check
      %p137 = pneg %p55
    $region31: #{_lambda_.35} parent=1 // pred_check_branch
      %139 = sbr.rel (%p137) target = $region33
    $region32: #{_lambda_.35} parent=1 // pred_region
      %v140 = vld [vmem:[#allocation2] sm:$0xff]
      %v141 = vld [vmem:[#allocation2 + $0x8] sm:$0xff]
      %v142 = vld [vmem:[#allocation8] sm:$0x1]
      %v144 = vlaneseq
      %v145 = vshrl.u32 %v144, 7
      %v146 = vsub.s32 0, %v145
      %v147 = vrot.slane %v142, %v146
      %v149 = vadd.f32 %v140, %v147
      %v150 = vadd.f32 %v141, %v147
      %151 = vst.msk [vmem:[#allocation9] sm:$0xff] %vm134, %v149
      %152 = vst.msk [vmem:[#allocation9 + $0x8] sm:$0xff] %vm134, %v150
    $region33: #{_lambda_.35} parent=1 // pred_fallthru
      _
    // Predicated region
    $region34: #{_lambda_.35} parent=1 // pred_check
      _
    $region35: #{_lambda_.35} parent=1 // pred_check_branch
      %154 = sbr.rel (0) target = $region37
    $region36: #{_lambda_.35} parent=1 // pred_region
      %s156 = ssub.s32 256, 256
      %157 = vsyncadd [#allocation5], %s156
      %s158 = sshll.u32 [#allocation9], 4
      %s159 = int_to_ptr.vmem [resolvable:$true] %s158
      %164 = dma.vmem_to_hbm [thread:$0]  %s159, 256, %s3, [#allocation5], 128, 128, 8
    $region37: #{_lambda_.35} parent=1 // pred_fallthru
      _
    // Predicated region
    $region38: #{_lambda_.35} parent=1 // pred_check
      _
    $region39: #{_lambda_.35} parent=1 // pred_check_branch
      %166 = sbr.rel (0) target = $region41
    $region40: #{_lambda_.35} parent=1 // pred_region
      %167 = dma.done [#allocation5], 256
    $region41: #{_lambda_.35} parent=1 // pred_fallthru
      _
    %168 = vsyncpa [#allocation4], 1
    %169 = vsyncpa [#allocation7], 1
    %170 = vsyncpa [#allocation5], 1

</llo_original>
